<compile_context>
chip_gen: v7x
topology: tpu7x:2x2x1
jax: 0.10.0
libtpu: 0.0.40
codegen_flags: <defaults>
</compile_context>

<pallas_src>
import jax
import jax.numpy as jnp
from jax.experimental import pallas as pl
from jax.experimental.pallas import tpu as pltpu

# ----------------------------- KAN constants -------------------------------
GRID_SIZE = 5
SPLINE_ORDER = 3
NUM_BASES = GRID_SIZE + SPLINE_ORDER            # 8
NUM_KNOTS = GRID_SIZE + 2 * SPLINE_ORDER + 1    # 12
H_GRID = 2.0 / GRID_SIZE                        # knot spacing (grid_range=[-1,1])
GRID0 = -1.0 - SPLINE_ORDER * H_GRID            # first knot (-2.2)
GRID_VALS = tuple(GRID0 + i * H_GRID for i in range(NUM_KNOTS))
NUM_ACT = 1 + NUM_BASES                         # SiLU + 8 spline bases
LANE_CHUNK = 128                                # streaming chunk (one lane tile)
FC_TD = 512                                     # fc reduction tile (lanes)


def _round_up(x, m):
    return ((x + m - 1) // m) * m


def _choose_tile(l4):
    """Pooled-position tile: multiple of 128, capped at 512, >=2 grid steps
    when possible (v7x has 2 TensorCores)."""
    l4p = _round_up(l4, 128)
    if l4p <= 128:
        return 128
    t = min(512, _round_up(l4p // 2, 128))
    return max(128, t)


def _feat_chunk(f_pad):
    """Feature-axis sub-block (bounds live vreg ranges); multiple of 16."""
    for c in (64, 48, 32, 16):
        if f_pad % c == 0:
            return c
    return f_pad


_BASIS_DTYPE = None


def _basis_dtype():
    """bf16 VALU math on v6e/v7x (2x rate); f32 on v5e and older (no bf16 VPU)."""
    global _BASIS_DTYPE
    if _BASIS_DTYPE is None:
        dt = jnp.bfloat16
        try:
            kind = jax.devices()[0].device_kind.lower()
            if any(v in kind for v in ("v2", "v3", "v4", "v5")):
                dt = jnp.float32
        except Exception:
            dt = jnp.float32
        _BASIS_DTYPE = dt
    return _BASIS_DTYPE


# ------------------------------- kernels ------------------------------------
def _cubic_bspline(u):
    """Branchless cardinal cubic B-spline on knots 0..4 (truncated-power form).

    Identical to the Cox-de Boor recursion on the uniform KAN grid (up to the
    measure-zero half-open indicator at exact knot points)."""
    s = jnp.abs(u - 2.0)
    a = jnp.maximum(2.0 - s, 0.0)
    b = jnp.maximum(1.0 - s, 0.0)
    return (a * a * a - 4.0 * (b * b * b)) * (1.0 / 6.0)


def _make_conv_kernel(compute_dtype):
    cd = compute_dtype

    def kernel(x_ref, w_ref, o_ref, slab_ref):
        """Fused KANLinear-on-patches + 2x2 max-pool epilogue (transposed layout).

        x_ref:    (4, F_pad, TL) bf16        patches^T, grouped by pool corner
        w_ref:    (C_pad, NUM_ACT*F_pad) bf16 fused [base | spline] weights
        o_ref:    (C_pad, TL) f32            pooled conv output^T (lane-dense)
        slab_ref: (2, NUM_ACT*F_pad, TL) bf16 double-banked activation slab
        """
        f_pad = x_ref.shape[1]
        tl = x_ref.shape[2]
        n_chunks = tl // LANE_CHUNK
        fcn = _feat_chunk(f_pad)
        n_fb = f_pad // fcn

        for c in range(4):                              # pool corner
            bank = c & 1                                # 2 banks: dot(c) overlaps fill(c+1)
            for q in range(n_chunks):                   # 128-lane chunk
                lo = q * LANE_CHUNK
                for fb in range(n_fb):                  # feature sub-block (vreg bound)
                    r0 = fb * fcn
                    x = x_ref[c, r0:r0 + fcn, lo:lo + LANE_CHUNK].astype(cd)
                    silu = x * jax.nn.sigmoid(x)
                    slab_ref[bank, r0:r0 + fcn, lo:lo + LANE_CHUNK] = (
                        silu.astype(jnp.bfloat16))
                    u = (x - GRID0) * (1.0 / H_GRID)    # shared across all bases
                    for t in range(NUM_BASES):          # one basis live at a time
                        b = _cubic_bspline(u - float(t))
                        row = (t + 1) * f_pad + r0
                        slab_ref[bank, row:row + fcn, lo:lo + LANE_CHUNK] = (
                            b.astype(jnp.bfloat16))
            # single fused matmul for this corner, folded into the running max
            y = jnp.dot(w_ref[...], slab_ref[bank],
                        preferred_element_type=jnp.float32)
            if c == 0:
                o_ref[...] = y
            else:
                o_ref[...] = jnp.maximum(o_ref[...], y)

    return kernel


def _fc_kernel(xt_ref, w_ref, b_ref, o_ref):
    """D-tiled linear: o^T (C_pad, N) accumulated across the reduction grid axis.

    xt_ref: (td, N) bf16; w_ref: (C_pad, td) bf16; b_ref: (C_pad, 1) f32."""
    k = pl.program_id(0)

    @pl.when(k == 0)
    def _():
        o_ref[...] = jnp.broadcast_to(b_ref[...], o_ref.shape)

    o_ref[...] += jnp.dot(w_ref[...], xt_ref[...],
                          preferred_element_type=jnp.float32)


# ------------------------------ wrappers -------------------------------------
def _pool_corner_patches(x, f_pad):
    """NCHW -> (4, F_pad, N*Ho*Wo) bf16: 3x3/pad-1 im2col, transposed and
    grouped by 2x2 max-pool corner; feature order = PyTorch unfold (c, kh, kw)."""
    n, c, h, w = x.shape
    ho, wo = h // 2, w // 2
    f = c * 9
    xp = jnp.pad(x, ((0, 0), (0, 0), (1, 1), (1, 1)))
    cols = [xp[:, :, kh:kh + h, kw:kw + w] for kh in range(3) for kw in range(3)]
    p = jnp.stack(cols, axis=2)                      # (N, C, 9, H, W)
    p = p.reshape(n, f, h, w)                        # features = (c, kh, kw)
    p = p.reshape(n, f, ho, 2, wo, 2)
    p = p.transpose(3, 5, 1, 0, 2, 4)                # (2, 2, F, N, Ho, Wo)
    p = p.reshape(4, f, n * ho * wo)
    if f_pad != f:                                   # zero weights for pad rows
        p = jnp.pad(p, ((0, 0), (0, f_pad - f), (0, 0)))
    return p.astype(jnp.bfloat16)                    # bf16 patches: halves HBM traffic


def prepare_kan_weights(base_w, spline_w, spline_scaler, f_pad):
    """Hoisted (once per model): fused (C_pad, NUM_ACT*F_pad) bf16 weights.
    Out-channels padded only to the sublane requirement (16)."""
    c_out, f = base_w.shape
    c_pad = _round_up(c_out, 16)
    scaled = spline_w * spline_scaler[..., None]                 # (C_out, F, S)
    blocks = [base_w] + [scaled[:, :, g] for g in range(NUM_BASES)]
    if f_pad != f:
        blocks = [jnp.pad(b, ((0, 0), (0, f_pad - f))) for b in blocks]
    wf = jnp.concatenate(blocks, axis=1)             # (C_out, NUM_ACT*F_pad)
    wf = jnp.pad(wf, ((0, c_pad - c_out), (0, 0)))   # sublane-pad out channels
    return wf.astype(jnp.bfloat16)


def prepare_fc_weights(fw, fb, td=FC_TD):
    """Hoisted: (C_pad8, D_pad) bf16 weight (classes on sublanes only) and
    (C_pad8, 1) f32 bias; D padded to a multiple of the reduction tile."""
    n_cls, d = fw.shape
    c_pad = _round_up(n_cls, 8)
    dp = _round_up(d, td)
    w = jnp.pad(fw, ((0, c_pad - n_cls), (0, dp - d))).astype(jnp.bfloat16)
    b = jnp.pad(fb, (0, c_pad - n_cls)).reshape(c_pad, 1).astype(jnp.float32)
    return w, b


def kan_conv_pool_pallas(patches_t, w_fused, c_out):
    """patches_t: (4, F_pad, L4) bf16; w_fused: (C_pad, NUM_ACT*F_pad) bf16
    -> (C_out, L4) f32 pooled conv output (transposed)."""
    _, f_pad, l4 = patches_t.shape
    c_pad = w_fused.shape[0]
    tl = _choose_tile(l4)
    l4p = _round_up(l4, tl)
    if l4p != l4:
        patches_t = jnp.pad(patches_t, ((0, 0), (0, 0), (0, l4p - l4)))
    # VMEM footprint (layer2, TL=512): 2x(4,144,512)bf16 + 2x(9*144,512)bf16 slab
    # + out/weight ~= 3.5 MiB -> fits every generation's default scoped VMEM.
    out = pl.pallas_call(
        _make_conv_kernel(_basis_dtype()),
        out_shape=jax.ShapeDtypeStruct((c_pad, l4p), jnp.float32),
        grid=(l4p // tl,),
        in_specs=[
            pl.BlockSpec((4, f_pad, tl), lambda i: (0, 0, i)),
            pl.BlockSpec((c_pad, NUM_ACT * f_pad), lambda i: (0, 0)),
        ],
        out_specs=pl.BlockSpec((c_pad, tl), lambda i: (0, i)),
        scratch_shapes=[pltpu.VMEM((2, NUM_ACT * f_pad, tl), jnp.bfloat16)],
        compiler_params=pltpu.CompilerParams(dimension_semantics=("parallel",)),
    )(patches_t, w_fused)
    return out[:c_out, :l4]          # drop padded channels / positions first


def kan_conv2d_maxpool(x, w_fused, c_out, f_pad):
    """x: (N, C_in, H, W) -> maxpool2x2(kan_conv2d(x)): (N, C_out, H/2, W/2)."""
    n, _, h, w = x.shape
    ho, wo = h // 2, w // 2
    patches_t = _pool_corner_patches(x, f_pad)                  # (4, F_pad, L4)
    out_t = kan_conv_pool_pallas(patches_t, w_fused, c_out)     # (C_out, L4)
    return out_t.reshape(c_out, n, ho, wo).transpose(1, 0, 2, 3)


def linear_pallas(x, w_pad, b_pad, num_classes):
    """x: (N, D) f32 -> (N, num_classes) via D-tiled fc (classes on sublanes)."""
    n, d = x.shape
    c_pad, dp = w_pad.shape
    td = FC_TD
    xt = x.T.astype(jnp.bfloat16)
    if dp != d:
        xt = jnp.pad(xt, ((0, dp - d), (0, 0)))
    out = pl.pallas_call(
        _fc_kernel,
        out_shape=jax.ShapeDtypeStruct((c_pad, n), jnp.float32),
        grid=(dp // td,),
        in_specs=[
            pl.BlockSpec((td, n), lambda k: (k, 0)),
            pl.BlockSpec((c_pad, td), lambda k: (0, k)),
            pl.BlockSpec((c_pad, 1), lambda k: (0, 0)),
        ],
        out_specs=pl.BlockSpec((c_pad, n), lambda k: (0, 0)),
        compiler_params=pltpu.CompilerParams(dimension_semantics=("arbitrary",)),
    )(xt, w_pad, b_pad)
    return out[:num_classes, :].T


def ckan_forward(x, layer1, layer2, fc_w, fc_b, num_classes):
    w1, c1, f1p = layer1
    w2, c2, f2p = layer2
    y = kan_conv2d_maxpool(x, w1, c1, f1p)      # (N, 16, H/2, W/2)
    y = kan_conv2d_maxpool(y, w2, c2, f2p)      # (N, 32, H/4, W/4)
    y = y.reshape(y.shape[0], -1)
    return linear_pallas(y, fc_w, fc_b, num_classes)


# --------------------------- pure-JAX reference ------------------------------
def _im2col_3x3_pad1(x):
    n, c, h, w = x.shape
    xp = jnp.pad(x, ((0, 0), (0, 0), (1, 1), (1, 1)))
    cols = [xp[:, :, kh:kh + h, kw:kw + w] for kh in range(3) for kw in range(3)]
    p = jnp.stack(cols, axis=2)                 # (N, C, 9, H, W)
    p = p.transpose(0, 3, 4, 1, 2)              # (N, H, W, C, 9)
    return p.reshape(n * h * w, c * 9)


def _kan_linear_ref(p, base_w, spline_w, spline_scaler):
    g = jnp.array(GRID_VALS, jnp.float32)
    base = jax.nn.silu(p) @ base_w.T
    xx = p[..., None]
    bases = ((xx >= g[:-1]) & (xx < g[1:])).astype(p.dtype)
    for k in range(1, SPLINE_ORDER + 1):
        bases = (
            (xx - g[:-(k + 1)]) / (g[k:-1] - g[:-(k + 1)]) * bases[..., :-1]
            + (g[k + 1:] - xx) / (g[k + 1:] - g[1:-k]) * bases[..., 1:]
        )
    scaled = spline_w * spline_scaler[..., None]
    return base + jnp.einsum("lfs,ofs->lo", bases, scaled)


def _kan_conv2d_ref(x, base_w, spline_w, spline_scaler):
    n, _, h, w = x.shape
    c_out = base_w.shape[0]
    out = _kan_linear_ref(_im2col_3x3_pad1(x), base_w, spline_w, spline_scaler)
    return out.reshape(n, h, w, c_out).transpose(0, 3, 1, 2)


def _maxpool_ref(x):
    n, c, h, w = x.shape
    return x.reshape(n, c, h // 2, 2, w // 2, 2).max(axis=(3, 5))


def ckan_forward_ref(x, p1, p2, fw, fb):
    y = _maxpool_ref(_kan_conv2d_ref(x, *p1))
    y = _maxpool_ref(_kan_conv2d_ref(y, *p2))
    y = y.reshape(y.shape[0], -1)
    return y @ fw.T + fb


# ------------------------------- params --------------------------------------
def init_kan_params(key, c_in, c_out, ksize=3):
    f = c_in * ksize * ksize
    k1, k2, k3 = jax.random.split(key, 3)
    base_w = jax.random.normal(k1, (c_out, f), jnp.float32) / jnp.sqrt(f)
    spline_w = jax.random.normal(k2, (c_out, f, NUM_BASES), jnp.float32) * 0.1
    spline_scaler = 1.0 + 0.1 * jax.random.normal(k3, (c_out, f), jnp.float32)
    return base_w, spline_w, spline_scaler


# --------------------------------- main ---------------------------------------
if __name__ == "__main__":
    key = jax.random.PRNGKey(0)
    kx, k1, k2, k3 = jax.random.split(key, 4)

    N, H, W = 2, 16, 16
    num_classes = 2
    x = jax.random.normal(kx, (N, 3, H, W), jnp.float32)

    p1 = init_kan_params(k1, 3, 16)      # ckan1: 3 -> 16, 3x3, pad 1
    p2 = init_kan_params(k2, 16, 32)     # ckan2: 16 -> 32, 3x3, pad 1

    d_fc = 32 * (H // 4) * (W // 4)      # module implies 32*(H/4)*(W/4)
    kf1, kf2 = jax.random.split(k3)
    fw = jax.random.normal(kf1, (num_classes, d_fc), jnp.float32) * 0.01
    fb = jax.random.normal(kf2, (num_classes,), jnp.float32) * 0.01

    # Hoisted weight transforms: fused/padded/bf16 layouts built once, not per
    # forward call.
    f1, f2 = 3 * 9, 16 * 9
    f1p, f2p = _round_up(f1, 16), _round_up(f2, 16)
    w1 = prepare_kan_weights(*p1, f1p)               # (16, 9*32) bf16
    w2 = prepare_kan_weights(*p2, f2p)               # (32, 9*144) bf16
    fc_w, fc_b = prepare_fc_weights(fw, fb)          # (8, D_pad) bf16, (8,1) f32

    out = jax.block_until_ready(
        ckan_forward(x, (w1, 16, f1p), (w2, 32, f2p), fc_w, fc_b, num_classes)
    )
    ref = ckan_forward_ref(x, p1, p2, fw, fb)

    assert out.shape == (N, num_classes), out.shape
    assert bool(jnp.all(jnp.isfinite(out)))
    # Patches / basis math / matmul operands run in bf16 across two cascaded
    # KAN-conv layers, so compare against the f32 reference at bf16 tolerance.
    assert jnp.allclose(out, ref, rtol=4e-2, atol=4e-2), (out, ref)
    print("KERNEL_OK")
</pallas_src>

<mosaic_0001>
module attributes {stable_mosaic.version = 11 : i64} {
  func.func @kernel(%arg0: i32, %arg1: memref<4x32x128xbf16, #tpu.memory_space<vmem>>, %arg2: memref<16x288xbf16, #tpu.memory_space<vmem>>, %arg3: memref<16x128xf32, #tpu.memory_space<vmem>>, %arg4: memref<2x288x128xbf16, #tpu.memory_space<vmem>>) attributes {dimension_semantics = [#tpu.dimension_semantics<parallel>], iteration_bounds = array<i64: 1>, scalar_prefetch = 0 : i64, scratch_operands = 1 : i64, tpu.core_type = #tpu.core_type<tc>, window_params = [{transform_indices = @transform_0, window_bounds = array<i64: 4, 32, 128>}, {pipeline_mode = #tpu.pipeline_mode<synchronous>, transform_indices = @transform_1, window_bounds = array<i64: 16, 288>}, {transform_indices = @transform_2, window_bounds = array<i64: 16, 128>}]} {
    %c0 = arith.constant 0 : index
    %c0_0 = arith.constant 0 : index
    %c0_1 = arith.constant 0 : index
    %0 = vector.load %arg1[%c0, %c0_0, %c0_1] : memref<4x32x128xbf16, #tpu.memory_space<vmem>>, vector<1x32x128xbf16>
    %1 = vector.shape_cast %0 : vector<1x32x128xbf16> to vector<32x128xbf16>
    %2 = arith.negf %1 : vector<32x128xbf16>
    %3 = math.exp %2 : vector<32x128xbf16>
    %cst = arith.constant 1.000000e+00 : bf16
    %4 = vector.broadcast %cst : bf16 to vector<32x128xbf16>
    %5 = arith.addf %4, %3 : vector<32x128xbf16>
    %6 = arith.divf %4, %5 : vector<32x128xbf16>
    %7 = arith.mulf %1, %6 : vector<32x128xbf16>
    %c0_2 = arith.constant 0 : index
    %c0_3 = arith.constant 0 : index
    %c0_4 = arith.constant 0 : index
    %8 = vector.load %arg4[%c0_2, %c0_3, %c0_4] : memref<2x288x128xbf16, #tpu.memory_space<vmem>>, vector<1x32x128xbf16>
    %9 = vector.shape_cast %8 : vector<1x32x128xbf16> to vector<32x128xbf16>
    %10 = vector.shape_cast %7 : vector<32x128xbf16> to vector<1x32x128xbf16>
    tpu.vector_store %arg4[%c0_2, %c0_3, %c0_4], %10 {strides = array<i32>} : memref<2x288x128xbf16, #tpu.memory_space<vmem>>, vector<1x32x128xbf16>,
    %cst_5 = arith.constant -2.203130e+00 : bf16
    %11 = vector.broadcast %cst_5 : bf16 to vector<32x128xbf16>
    %12 = arith.subf %1, %11 : vector<32x128xbf16>
    %cst_6 = arith.constant 2.500000e+00 : bf16
    %13 = vector.broadcast %cst_6 : bf16 to vector<32x128xbf16>
    %14 = arith.mulf %12, %13 : vector<32x128xbf16>
    %cst_7 = arith.constant 0.000000e+00 : bf16
    %15 = vector.broadcast %cst_7 : bf16 to vector<32x128xbf16>
    %16 = arith.subf %14, %15 : vector<32x128xbf16>
    %cst_8 = arith.constant 2.000000e+00 : bf16
    %17 = vector.broadcast %cst_8 : bf16 to vector<32x128xbf16>
    %18 = arith.subf %16, %17 : vector<32x128xbf16>
    %19 = math.absf %18 : vector<32x128xbf16>
    %cst_9 = arith.constant 2.000000e+00 : bf16
    %20 = vector.broadcast %cst_9 : bf16 to vector<32x128xbf16>
    %21 = arith.subf %20, %19 : vector<32x128xbf16>
    %cst_10 = arith.constant 0.000000e+00 : bf16
    %22 = vector.broadcast %cst_10 : bf16 to vector<32x128xbf16>
    %23 = arith.maximumf %21, %22 : vector<32x128xbf16>
    %cst_11 = arith.constant 1.000000e+00 : bf16
    %24 = vector.broadcast %cst_11 : bf16 to vector<32x128xbf16>
    %25 = arith.subf %24, %19 : vector<32x128xbf16>
    %cst_12 = arith.constant 0.000000e+00 : bf16
    %26 = vector.broadcast %cst_12 : bf16 to vector<32x128xbf16>
    %27 = arith.maximumf %25, %26 : vector<32x128xbf16>
    %28 = arith.mulf %23, %23 : vector<32x128xbf16>
    %29 = arith.mulf %28, %23 : vector<32x128xbf16>
    %30 = arith.mulf %27, %27 : vector<32x128xbf16>
    %31 = arith.mulf %30, %27 : vector<32x128xbf16>
    %cst_13 = arith.constant 4.000000e+00 : bf16
    %32 = vector.broadcast %cst_13 : bf16 to vector<32x128xbf16>
    %33 = arith.mulf %32, %31 : vector<32x128xbf16>
    %34 = arith.subf %29, %33 : vector<32x128xbf16>
    %cst_14 = arith.constant 1.669920e-01 : bf16
    %35 = vector.broadcast %cst_14 : bf16 to vector<32x128xbf16>
    %36 = arith.mulf %34, %35 : vector<32x128xbf16>
    %c0_15 = arith.constant 0 : index
    %c32 = arith.constant 32 : index
    %c0_16 = arith.constant 0 : index
    %37 = vector.load %arg4[%c0_15, %c32, %c0_16] : memref<2x288x128xbf16, #tpu.memory_space<vmem>>, vector<1x32x128xbf16>
    %38 = vector.shape_cast %37 : vector<1x32x128xbf16> to vector<32x128xbf16>
    %39 = vector.shape_cast %36 : vector<32x128xbf16> to vector<1x32x128xbf16>
    tpu.vector_store %arg4[%c0_15, %c32, %c0_16], %39 {strides = array<i32>} : memref<2x288x128xbf16, #tpu.memory_space<vmem>>, vector<1x32x128xbf16>,
    %cst_17 = arith.constant 1.000000e+00 : bf16
    %40 = vector.broadcast %cst_17 : bf16 to vector<32x128xbf16>
    %41 = arith.subf %14, %40 : vector<32x128xbf16>
    %cst_18 = arith.constant 2.000000e+00 : bf16
    %42 = vector.broadcast %cst_18 : bf16 to vector<32x128xbf16>
    %43 = arith.subf %41, %42 : vector<32x128xbf16>
    %44 = math.absf %43 : vector<32x128xbf16>
    %cst_19 = arith.constant 2.000000e+00 : bf16
    %45 = vector.broadcast %cst_19 : bf16 to vector<32x128xbf16>
    %46 = arith.subf %45, %44 : vector<32x128xbf16>
    %cst_20 = arith.constant 0.000000e+00 : bf16
    %47 = vector.broadcast %cst_20 : bf16 to vector<32x128xbf16>
    %48 = arith.maximumf %46, %47 : vector<32x128xbf16>
    %cst_21 = arith.constant 1.000000e+00 : bf16
    %49 = vector.broadcast %cst_21 : bf16 to vector<32x128xbf16>
    %50 = arith.subf %49, %44 : vector<32x128xbf16>
    %cst_22 = arith.constant 0.000000e+00 : bf16
    %51 = vector.broadcast %cst_22 : bf16 to vector<32x128xbf16>
    %52 = arith.maximumf %50, %51 : vector<32x128xbf16>
    %53 = arith.mulf %48, %48 : vector<32x128xbf16>
    %54 = arith.mulf %53, %48 : vector<32x128xbf16>
    %55 = arith.mulf %52, %52 : vector<32x128xbf16>
    %56 = arith.mulf %55, %52 : vector<32x128xbf16>
    %cst_23 = arith.constant 4.000000e+00 : bf16
    %57 = vector.broadcast %cst_23 : bf16 to vector<32x128xbf16>
    %58 = arith.mulf %57, %56 : vector<32x128xbf16>
    %59 = arith.subf %54, %58 : vector<32x128xbf16>
    %cst_24 = arith.constant 1.669920e-01 : bf16
    %60 = vector.broadcast %cst_24 : bf16 to vector<32x128xbf16>
    %61 = arith.mulf %59, %60 : vector<32x128xbf16>
    %c0_25 = arith.constant 0 : index
    %c64 = arith.constant 64 : index
    %c0_26 = arith.constant 0 : index
    %62 = vector.load %arg4[%c0_25, %c64, %c0_26] : memref<2x288x128xbf16, #tpu.memory_space<vmem>>, vector<1x32x128xbf16>
    %63 = vector.shape_cast %62 : vector<1x32x128xbf16> to vector<32x128xbf16>
    %64 = vector.shape_cast %61 : vector<32x128xbf16> to vector<1x32x128xbf16>
    tpu.vector_store %arg4[%c0_25, %c64, %c0_26], %64 {strides = array<i32>} : memref<2x288x128xbf16, #tpu.memory_space<vmem>>, vector<1x32x128xbf16>,
    %cst_27 = arith.constant 2.000000e+00 : bf16
    %65 = vector.broadcast %cst_27 : bf16 to vector<32x128xbf16>
    %66 = arith.subf %14, %65 : vector<32x128xbf16>
    %cst_28 = arith.constant 2.000000e+00 : bf16
    %67 = vector.broadcast %cst_28 : bf16 to vector<32x128xbf16>
    %68 = arith.subf %66, %67 : vector<32x128xbf16>
    %69 = math.absf %68 : vector<32x128xbf16>
    %cst_29 = arith.constant 2.000000e+00 : bf16
    %70 = vector.broadcast %cst_29 : bf16 to vector<32x128xbf16>
    %71 = arith.subf %70, %69 : vector<32x128xbf16>
    %cst_30 = arith.constant 0.000000e+00 : bf16
    %72 = vector.broadcast %cst_30 : bf16 to vector<32x128xbf16>
    %73 = arith.maximumf %71, %72 : vector<32x128xbf16>
    %cst_31 = arith.constant 1.000000e+00 : bf16
    %74 = vector.broadcast %cst_31 : bf16 to vector<32x128xbf16>
    %75 = arith.subf %74, %69 : vector<32x128xbf16>
    %cst_32 = arith.constant 0.000000e+00 : bf16
    %76 = vector.broadcast %cst_32 : bf16 to vector<32x128xbf16>
    %77 = arith.maximumf %75, %76 : vector<32x128xbf16>
    %78 = arith.mulf %73, %73 : vector<32x128xbf16>
    %79 = arith.mulf %78, %73 : vector<32x128xbf16>
    %80 = arith.mulf %77, %77 : vector<32x128xbf16>
    %81 = arith.mulf %80, %77 : vector<32x128xbf16>
    %cst_33 = arith.constant 4.000000e+00 : bf16
    %82 = vector.broadcast %cst_33 : bf16 to vector<32x128xbf16>
    %83 = arith.mulf %82, %81 : vector<32x128xbf16>
    %84 = arith.subf %79, %83 : vector<32x128xbf16>
    %cst_34 = arith.constant 1.669920e-01 : bf16
    %85 = vector.broadcast %cst_34 : bf16 to vector<32x128xbf16>
    %86 = arith.mulf %84, %85 : vector<32x128xbf16>
    %c0_35 = arith.constant 0 : index
    %c96 = arith.constant 96 : index
    %c0_36 = arith.constant 0 : index
    %87 = vector.load %arg4[%c0_35, %c96, %c0_36] : memref<2x288x128xbf16, #tpu.memory_space<vmem>>, vector<1x32x128xbf16>
    %88 = vector.shape_cast %87 : vector<1x32x128xbf16> to vector<32x128xbf16>
    %89 = vector.shape_cast %86 : vector<32x128xbf16> to vector<1x32x128xbf16>
    tpu.vector_store %arg4[%c0_35, %c96, %c0_36], %89 {strides = array<i32>} : memref<2x288x128xbf16, #tpu.memory_space<vmem>>, vector<1x32x128xbf16>,
    %cst_37 = arith.constant 3.000000e+00 : bf16
    %90 = vector.broadcast %cst_37 : bf16 to vector<32x128xbf16>
    %91 = arith.subf %14, %90 : vector<32x128xbf16>
    %cst_38 = arith.constant 2.000000e+00 : bf16
    %92 = vector.broadcast %cst_38 : bf16 to vector<32x128xbf16>
    %93 = arith.subf %91, %92 : vector<32x128xbf16>
    %94 = math.absf %93 : vector<32x128xbf16>
    %cst_39 = arith.constant 2.000000e+00 : bf16
    %95 = vector.broadcast %cst_39 : bf16 to vector<32x128xbf16>
    %96 = arith.subf %95, %94 : vector<32x128xbf16>
    %cst_40 = arith.constant 0.000000e+00 : bf16
    %97 = vector.broadcast %cst_40 : bf16 to vector<32x128xbf16>
    %98 = arith.maximumf %96, %97 : vector<32x128xbf16>
    %cst_41 = arith.constant 1.000000e+00 : bf16
    %99 = vector.broadcast %cst_41 : bf16 to vector<32x128xbf16>
    %100 = arith.subf %99, %94 : vector<32x128xbf16>
    %cst_42 = arith.constant 0.000000e+00 : bf16
    %101 = vector.broadcast %cst_42 : bf16 to vector<32x128xbf16>
    %102 = arith.maximumf %100, %101 : vector<32x128xbf16>
    %103 = arith.mulf %98, %98 : vector<32x128xbf16>
    %104 = arith.mulf %103, %98 : vector<32x128xbf16>
    %105 = arith.mulf %102, %102 : vector<32x128xbf16>
    %106 = arith.mulf %105, %102 : vector<32x128xbf16>
    %cst_43 = arith.constant 4.000000e+00 : bf16
    %107 = vector.broadcast %cst_43 : bf16 to vector<32x128xbf16>
    %108 = arith.mulf %107, %106 : vector<32x128xbf16>
    %109 = arith.subf %104, %108 : vector<32x128xbf16>
    %cst_44 = arith.constant 1.669920e-01 : bf16
    %110 = vector.broadcast %cst_44 : bf16 to vector<32x128xbf16>
    %111 = arith.mulf %109, %110 : vector<32x128xbf16>
    %c0_45 = arith.constant 0 : index
    %c128 = arith.constant 128 : index
    %c0_46 = arith.constant 0 : index
    %112 = vector.load %arg4[%c0_45, %c128, %c0_46] : memref<2x288x128xbf16, #tpu.memory_space<vmem>>, vector<1x32x128xbf16>
    %113 = vector.shape_cast %112 : vector<1x32x128xbf16> to vector<32x128xbf16>
    %114 = vector.shape_cast %111 : vector<32x128xbf16> to vector<1x32x128xbf16>
    tpu.vector_store %arg4[%c0_45, %c128, %c0_46], %114 {strides = array<i32>} : memref<2x288x128xbf16, #tpu.memory_space<vmem>>, vector<1x32x128xbf16>,
    %cst_47 = arith.constant 4.000000e+00 : bf16
    %115 = vector.broadcast %cst_47 : bf16 to vector<32x128xbf16>
    %116 = arith.subf %14, %115 : vector<32x128xbf16>
    %cst_48 = arith.constant 2.000000e+00 : bf16
    %117 = vector.broadcast %cst_48 : bf16 to vector<32x128xbf16>
    %118 = arith.subf %116, %117 : vector<32x128xbf16>
    %119 = math.absf %118 : vector<32x128xbf16>
    %cst_49 = arith.constant 2.000000e+00 : bf16
    %120 = vector.broadcast %cst_49 : bf16 to vector<32x128xbf16>
    %121 = arith.subf %120, %119 : vector<32x128xbf16>
    %cst_50 = arith.constant 0.000000e+00 : bf16
    %122 = vector.broadcast %cst_50 : bf16 to vector<32x128xbf16>
    %123 = arith.maximumf %121, %122 : vector<32x128xbf16>
    %cst_51 = arith.constant 1.000000e+00 : bf16
    %124 = vector.broadcast %cst_51 : bf16 to vector<32x128xbf16>
    %125 = arith.subf %124, %119 : vector<32x128xbf16>
    %cst_52 = arith.constant 0.000000e+00 : bf16
    %126 = vector.broadcast %cst_52 : bf16 to vector<32x128xbf16>
    %127 = arith.maximumf %125, %126 : vector<32x128xbf16>
    %128 = arith.mulf %123, %123 : vector<32x128xbf16>
    %129 = arith.mulf %128, %123 : vector<32x128xbf16>
    %130 = arith.mulf %127, %127 : vector<32x128xbf16>
    %131 = arith.mulf %130, %127 : vector<32x128xbf16>
    %cst_53 = arith.constant 4.000000e+00 : bf16
    %132 = vector.broadcast %cst_53 : bf16 to vector<32x128xbf16>
    %133 = arith.mulf %132, %131 : vector<32x128xbf16>
    %134 = arith.subf %129, %133 : vector<32x128xbf16>
    %cst_54 = arith.constant 1.669920e-01 : bf16
    %135 = vector.broadcast %cst_54 : bf16 to vector<32x128xbf16>
    %136 = arith.mulf %134, %135 : vector<32x128xbf16>
    %c0_55 = arith.constant 0 : index
    %c160 = arith.constant 160 : index
    %c0_56 = arith.constant 0 : index
    %137 = vector.load %arg4[%c0_55, %c160, %c0_56] : memref<2x288x128xbf16, #tpu.memory_space<vmem>>, vector<1x32x128xbf16>
    %138 = vector.shape_cast %137 : vector<1x32x128xbf16> to vector<32x128xbf16>
    %139 = vector.shape_cast %136 : vector<32x128xbf16> to vector<1x32x128xbf16>
    tpu.vector_store %arg4[%c0_55, %c160, %c0_56], %139 {strides = array<i32>} : memref<2x288x128xbf16, #tpu.memory_space<vmem>>, vector<1x32x128xbf16>,
    %cst_57 = arith.constant 5.000000e+00 : bf16
    %140 = vector.broadcast %cst_57 : bf16 to vector<32x128xbf16>
    %141 = arith.subf %14, %140 : vector<32x128xbf16>
    %cst_58 = arith.constant 2.000000e+00 : bf16
    %142 = vector.broadcast %cst_58 : bf16 to vector<32x128xbf16>
    %143 = arith.subf %141, %142 : vector<32x128xbf16>
    %144 = math.absf %143 : vector<32x128xbf16>
    %cst_59 = arith.constant 2.000000e+00 : bf16
    %145 = vector.broadcast %cst_59 : bf16 to vector<32x128xbf16>
    %146 = arith.subf %145, %144 : vector<32x128xbf16>
    %cst_60 = arith.constant 0.000000e+00 : bf16
    %147 = vector.broadcast %cst_60 : bf16 to vector<32x128xbf16>
    %148 = arith.maximumf %146, %147 : vector<32x128xbf16>
    %cst_61 = arith.constant 1.000000e+00 : bf16
    %149 = vector.broadcast %cst_61 : bf16 to vector<32x128xbf16>
    %150 = arith.subf %149, %144 : vector<32x128xbf16>
    %cst_62 = arith.constant 0.000000e+00 : bf16
    %151 = vector.broadcast %cst_62 : bf16 to vector<32x128xbf16>
    %152 = arith.maximumf %150, %151 : vector<32x128xbf16>
    %153 = arith.mulf %148, %148 : vector<32x128xbf16>
    %154 = arith.mulf %153, %148 : vector<32x128xbf16>
    %155 = arith.mulf %152, %152 : vector<32x128xbf16>
    %156 = arith.mulf %155, %152 : vector<32x128xbf16>
    %cst_63 = arith.constant 4.000000e+00 : bf16
    %157 = vector.broadcast %cst_63 : bf16 to vector<32x128xbf16>
    %158 = arith.mulf %157, %156 : vector<32x128xbf16>
    %159 = arith.subf %154, %158 : vector<32x128xbf16>
    %cst_64 = arith.constant 1.669920e-01 : bf16
    %160 = vector.broadcast %cst_64 : bf16 to vector<32x128xbf16>
    %161 = arith.mulf %159, %160 : vector<32x128xbf16>
    %c0_65 = arith.constant 0 : index
    %c192 = arith.constant 192 : index
    %c0_66 = arith.constant 0 : index
    %162 = vector.load %arg4[%c0_65, %c192, %c0_66] : memref<2x288x128xbf16, #tpu.memory_space<vmem>>, vector<1x32x128xbf16>
    %163 = vector.shape_cast %162 : vector<1x32x128xbf16> to vector<32x128xbf16>
    %164 = vector.shape_cast %161 : vector<32x128xbf16> to vector<1x32x128xbf16>
    tpu.vector_store %arg4[%c0_65, %c192, %c0_66], %164 {strides = array<i32>} : memref<2x288x128xbf16, #tpu.memory_space<vmem>>, vector<1x32x128xbf16>,
    %cst_67 = arith.constant 6.000000e+00 : bf16
    %165 = vector.broadcast %cst_67 : bf16 to vector<32x128xbf16>
    %166 = arith.subf %14, %165 : vector<32x128xbf16>
    %cst_68 = arith.constant 2.000000e+00 : bf16
    %167 = vector.broadcast %cst_68 : bf16 to vector<32x128xbf16>
    %168 = arith.subf %166, %167 : vector<32x128xbf16>
    %169 = math.absf %168 : vector<32x128xbf16>
    %cst_69 = arith.constant 2.000000e+00 : bf16
    %170 = vector.broadcast %cst_69 : bf16 to vector<32x128xbf16>
    %171 = arith.subf %170, %169 : vector<32x128xbf16>
    %cst_70 = arith.constant 0.000000e+00 : bf16
    %172 = vector.broadcast %cst_70 : bf16 to vector<32x128xbf16>
    %173 = arith.maximumf %171, %172 : vector<32x128xbf16>
    %cst_71 = arith.constant 1.000000e+00 : bf16
    %174 = vector.broadcast %cst_71 : bf16 to vector<32x128xbf16>
    %175 = arith.subf %174, %169 : vector<32x128xbf16>
    %cst_72 = arith.constant 0.000000e+00 : bf16
    %176 = vector.broadcast %cst_72 : bf16 to vector<32x128xbf16>
    %177 = arith.maximumf %175, %176 : vector<32x128xbf16>
    %178 = arith.mulf %173, %173 : vector<32x128xbf16>
    %179 = arith.mulf %178, %173 : vector<32x128xbf16>
    %180 = arith.mulf %177, %177 : vector<32x128xbf16>
    %181 = arith.mulf %180, %177 : vector<32x128xbf16>
    %cst_73 = arith.constant 4.000000e+00 : bf16
    %182 = vector.broadcast %cst_73 : bf16 to vector<32x128xbf16>
    %183 = arith.mulf %182, %181 : vector<32x128xbf16>
    %184 = arith.subf %179, %183 : vector<32x128xbf16>
    %cst_74 = arith.constant 1.669920e-01 : bf16
    %185 = vector.broadcast %cst_74 : bf16 to vector<32x128xbf16>
    %186 = arith.mulf %184, %185 : vector<32x128xbf16>
    %c0_75 = arith.constant 0 : index
    %c224 = arith.constant 224 : index
    %c0_76 = arith.constant 0 : index
    %187 = vector.load %arg4[%c0_75, %c224, %c0_76] : memref<2x288x128xbf16, #tpu.memory_space<vmem>>, vector<1x32x128xbf16>
    %188 = vector.shape_cast %187 : vector<1x32x128xbf16> to vector<32x128xbf16>
    %189 = vector.shape_cast %186 : vector<32x128xbf16> to vector<1x32x128xbf16>
    tpu.vector_store %arg4[%c0_75, %c224, %c0_76], %189 {strides = array<i32>} : memref<2x288x128xbf16, #tpu.memory_space<vmem>>, vector<1x32x128xbf16>,
    %cst_77 = arith.constant 7.000000e+00 : bf16
    %190 = vector.broadcast %cst_77 : bf16 to vector<32x128xbf16>
    %191 = arith.subf %14, %190 : vector<32x128xbf16>
    %cst_78 = arith.constant 2.000000e+00 : bf16
    %192 = vector.broadcast %cst_78 : bf16 to vector<32x128xbf16>
    %193 = arith.subf %191, %192 : vector<32x128xbf16>
    %194 = math.absf %193 : vector<32x128xbf16>
    %cst_79 = arith.constant 2.000000e+00 : bf16
    %195 = vector.broadcast %cst_79 : bf16 to vector<32x128xbf16>
    %196 = arith.subf %195, %194 : vector<32x128xbf16>
    %cst_80 = arith.constant 0.000000e+00 : bf16
    %197 = vector.broadcast %cst_80 : bf16 to vector<32x128xbf16>
    %198 = arith.maximumf %196, %197 : vector<32x128xbf16>
    %cst_81 = arith.constant 1.000000e+00 : bf16
    %199 = vector.broadcast %cst_81 : bf16 to vector<32x128xbf16>
    %200 = arith.subf %199, %194 : vector<32x128xbf16>
    %cst_82 = arith.constant 0.000000e+00 : bf16
    %201 = vector.broadcast %cst_82 : bf16 to vector<32x128xbf16>
    %202 = arith.maximumf %200, %201 : vector<32x128xbf16>
    %203 = arith.mulf %198, %198 : vector<32x128xbf16>
    %204 = arith.mulf %203, %198 : vector<32x128xbf16>
    %205 = arith.mulf %202, %202 : vector<32x128xbf16>
    %206 = arith.mulf %205, %202 : vector<32x128xbf16>
    %cst_83 = arith.constant 4.000000e+00 : bf16
    %207 = vector.broadcast %cst_83 : bf16 to vector<32x128xbf16>
    %208 = arith.mulf %207, %206 : vector<32x128xbf16>
    %209 = arith.subf %204, %208 : vector<32x128xbf16>
    %cst_84 = arith.constant 1.669920e-01 : bf16
    %210 = vector.broadcast %cst_84 : bf16 to vector<32x128xbf16>
    %211 = arith.mulf %209, %210 : vector<32x128xbf16>
    %c0_85 = arith.constant 0 : index
    %c256 = arith.constant 256 : index
    %c0_86 = arith.constant 0 : index
    %212 = vector.load %arg4[%c0_85, %c256, %c0_86] : memref<2x288x128xbf16, #tpu.memory_space<vmem>>, vector<1x32x128xbf16>
    %213 = vector.shape_cast %212 : vector<1x32x128xbf16> to vector<32x128xbf16>
    %214 = vector.shape_cast %211 : vector<32x128xbf16> to vector<1x32x128xbf16>
    tpu.vector_store %arg4[%c0_85, %c256, %c0_86], %214 {strides = array<i32>} : memref<2x288x128xbf16, #tpu.memory_space<vmem>>, vector<1x32x128xbf16>,
    %c0_87 = arith.constant 0 : index
    %c0_88 = arith.constant 0 : index
    %215 = vector.load %arg2[%c0_87, %c0_88] : memref<16x288xbf16, #tpu.memory_space<vmem>>, vector<16x288xbf16>
    %c0_89 = arith.constant 0 : index
    %c0_90 = arith.constant 0 : index
    %c0_91 = arith.constant 0 : index
    %216 = vector.load %arg4[%c0_89, %c0_90, %c0_91] : memref<2x288x128xbf16, #tpu.memory_space<vmem>>, vector<1x288x128xbf16>
    %217 = vector.shape_cast %216 : vector<1x288x128xbf16> to vector<288x128xbf16>
    %cst_92 = arith.constant dense<0.000000e+00> : vector<16x128xf32>
    %218 = tpu.matmul %215, %217, %cst_92 {dimension_numbers = #tpu.dot_dimension_numbers<[1], [0], [0], [1], [0, 0, 1, 1], [], []>} : vector<16x288xbf16>, vector<288x128xbf16>, vector<16x128xf32> -> vector<16x128xf32>
    %c0_93 = arith.constant 0 : index
    %c0_94 = arith.constant 0 : index
    %219 = vector.load %arg3[%c0_93, %c0_94] : memref<16x128xf32, #tpu.memory_space<vmem>>, vector<16x128xf32>
    tpu.vector_store %arg3[%c0_93, %c0_94], %218 {strides = array<i32>} : memref<16x128xf32, #tpu.memory_space<vmem>>, vector<16x128xf32>,
    %c1 = arith.constant 1 : index
    %c0_95 = arith.constant 0 : index
    %c0_96 = arith.constant 0 : index
    %220 = vector.load %arg1[%c1, %c0_95, %c0_96] : memref<4x32x128xbf16, #tpu.memory_space<vmem>>, vector<1x32x128xbf16>
    %221 = vector.shape_cast %220 : vector<1x32x128xbf16> to vector<32x128xbf16>
    %222 = arith.negf %221 : vector<32x128xbf16>
    %223 = math.exp %222 : vector<32x128xbf16>
    %cst_97 = arith.constant 1.000000e+00 : bf16
    %224 = vector.broadcast %cst_97 : bf16 to vector<32x128xbf16>
    %225 = arith.addf %224, %223 : vector<32x128xbf16>
    %226 = arith.divf %224, %225 : vector<32x128xbf16>
    %227 = arith.mulf %221, %226 : vector<32x128xbf16>
    %c1_98 = arith.constant 1 : index
    %c0_99 = arith.constant 0 : index
    %c0_100 = arith.constant 0 : index
    %228 = vector.load %arg4[%c1_98, %c0_99, %c0_100] : memref<2x288x128xbf16, #tpu.memory_space<vmem>>, vector<1x32x128xbf16>
    %229 = vector.shape_cast %228 : vector<1x32x128xbf16> to vector<32x128xbf16>
    %230 = vector.shape_cast %227 : vector<32x128xbf16> to vector<1x32x128xbf16>
    tpu.vector_store %arg4[%c1_98, %c0_99, %c0_100], %230 {strides = array<i32>} : memref<2x288x128xbf16, #tpu.memory_space<vmem>>, vector<1x32x128xbf16>,
    %cst_101 = arith.constant -2.203130e+00 : bf16
    %231 = vector.broadcast %cst_101 : bf16 to vector<32x128xbf16>
    %232 = arith.subf %221, %231 : vector<32x128xbf16>
    %cst_102 = arith.constant 2.500000e+00 : bf16
    %233 = vector.broadcast %cst_102 : bf16 to vector<32x128xbf16>
    %234 = arith.mulf %232, %233 : vector<32x128xbf16>
    %cst_103 = arith.constant 0.000000e+00 : bf16
    %235 = vector.broadcast %cst_103 : bf16 to vector<32x128xbf16>
    %236 = arith.subf %234, %235 : vector<32x128xbf16>
    %cst_104 = arith.constant 2.000000e+00 : bf16
    %237 = vector.broadcast %cst_104 : bf16 to vector<32x128xbf16>
    %238 = arith.subf %236, %237 : vector<32x128xbf16>
    %239 = math.absf %238 : vector<32x128xbf16>
    %cst_105 = arith.constant 2.000000e+00 : bf16
    %240 = vector.broadcast %cst_105 : bf16 to vector<32x128xbf16>
    %241 = arith.subf %240, %239 : vector<32x128xbf16>
    %cst_106 = arith.constant 0.000000e+00 : bf16
    %242 = vector.broadcast %cst_106 : bf16 to vector<32x128xbf16>
    %243 = arith.maximumf %241, %242 : vector<32x128xbf16>
    %cst_107 = arith.constant 1.000000e+00 : bf16
    %244 = vector.broadcast %cst_107 : bf16 to vector<32x128xbf16>
    %245 = arith.subf %244, %239 : vector<32x128xbf16>
    %cst_108 = arith.constant 0.000000e+00 : bf16
    %246 = vector.broadcast %cst_108 : bf16 to vector<32x128xbf16>
    %247 = arith.maximumf %245, %246 : vector<32x128xbf16>
    %248 = arith.mulf %243, %243 : vector<32x128xbf16>
    %249 = arith.mulf %248, %243 : vector<32x128xbf16>
    %250 = arith.mulf %247, %247 : vector<32x128xbf16>
    %251 = arith.mulf %250, %247 : vector<32x128xbf16>
    %cst_109 = arith.constant 4.000000e+00 : bf16
    %252 = vector.broadcast %cst_109 : bf16 to vector<32x128xbf16>
    %253 = arith.mulf %252, %251 : vector<32x128xbf16>
    %254 = arith.subf %249, %253 : vector<32x128xbf16>
    %cst_110 = arith.constant 1.669920e-01 : bf16
    %255 = vector.broadcast %cst_110 : bf16 to vector<32x128xbf16>
    %256 = arith.mulf %254, %255 : vector<32x128xbf16>
    %c1_111 = arith.constant 1 : index
    %c32_112 = arith.constant 32 : index
    %c0_113 = arith.constant 0 : index
    %257 = vector.load %arg4[%c1_111, %c32_112, %c0_113] : memref<2x288x128xbf16, #tpu.memory_space<vmem>>, vector<1x32x128xbf16>
    %258 = vector.shape_cast %257 : vector<1x32x128xbf16> to vector<32x128xbf16>
    %259 = vector.shape_cast %256 : vector<32x128xbf16> to vector<1x32x128xbf16>
    tpu.vector_store %arg4[%c1_111, %c32_112, %c0_113], %259 {strides = array<i32>} : memref<2x288x128xbf16, #tpu.memory_space<vmem>>, vector<1x32x128xbf16>,
    %cst_114 = arith.constant 1.000000e+00 : bf16
    %260 = vector.broadcast %cst_114 : bf16 to vector<32x128xbf16>
    %261 = arith.subf %234, %260 : vector<32x128xbf16>
    %cst_115 = arith.constant 2.000000e+00 : bf16
    %262 = vector.broadcast %cst_115 : bf16 to vector<32x128xbf16>
    %263 = arith.subf %261, %262 : vector<32x128xbf16>
    %264 = math.absf %263 : vector<32x128xbf16>
    %cst_116 = arith.constant 2.000000e+00 : bf16
    %265 = vector.broadcast %cst_116 : bf16 to vector<32x128xbf16>
    %266 = arith.subf %265, %264 : vector<32x128xbf16>
    %cst_117 = arith.constant 0.000000e+00 : bf16
    %267 = vector.broadcast %cst_117 : bf16 to vector<32x128xbf16>
    %268 = arith.maximumf %266, %267 : vector<32x128xbf16>
    %cst_118 = arith.constant 1.000000e+00 : bf16
    %269 = vector.broadcast %cst_118 : bf16 to vector<32x128xbf16>
    %270 = arith.subf %269, %264 : vector<32x128xbf16>
    %cst_119 = arith.constant 0.000000e+00 : bf16
    %271 = vector.broadcast %cst_119 : bf16 to vector<32x128xbf16>
    %272 = arith.maximumf %270, %271 : vector<32x128xbf16>
    %273 = arith.mulf %268, %268 : vector<32x128xbf16>
    %274 = arith.mulf %273, %268 : vector<32x128xbf16>
    %275 = arith.mulf %272, %272 : vector<32x128xbf16>
    %276 = arith.mulf %275, %272 : vector<32x128xbf16>
    %cst_120 = arith.constant 4.000000e+00 : bf16
    %277 = vector.broadcast %cst_120 : bf16 to vector<32x128xbf16>
    %278 = arith.mulf %277, %276 : vector<32x128xbf16>
    %279 = arith.subf %274, %278 : vector<32x128xbf16>
    %cst_121 = arith.constant 1.669920e-01 : bf16
    %280 = vector.broadcast %cst_121 : bf16 to vector<32x128xbf16>
    %281 = arith.mulf %279, %280 : vector<32x128xbf16>
    %c1_122 = arith.constant 1 : index
    %c64_123 = arith.constant 64 : index
    %c0_124 = arith.constant 0 : index
    %282 = vector.load %arg4[%c1_122, %c64_123, %c0_124] : memref<2x288x128xbf16, #tpu.memory_space<vmem>>, vector<1x32x128xbf16>
    %283 = vector.shape_cast %282 : vector<1x32x128xbf16> to vector<32x128xbf16>
    %284 = vector.shape_cast %281 : vector<32x128xbf16> to vector<1x32x128xbf16>
    tpu.vector_store %arg4[%c1_122, %c64_123, %c0_124], %284 {strides = array<i32>} : memref<2x288x128xbf16, #tpu.memory_space<vmem>>, vector<1x32x128xbf16>,
    %cst_125 = arith.constant 2.000000e+00 : bf16
    %285 = vector.broadcast %cst_125 : bf16 to vector<32x128xbf16>
    %286 = arith.subf %234, %285 : vector<32x128xbf16>
    %cst_126 = arith.constant 2.000000e+00 : bf16
    %287 = vector.broadcast %cst_126 : bf16 to vector<32x128xbf16>
    %288 = arith.subf %286, %287 : vector<32x128xbf16>
    %289 = math.absf %288 : vector<32x128xbf16>
    %cst_127 = arith.constant 2.000000e+00 : bf16
    %290 = vector.broadcast %cst_127 : bf16 to vector<32x128xbf16>
    %291 = arith.subf %290, %289 : vector<32x128xbf16>
    %cst_128 = arith.constant 0.000000e+00 : bf16
    %292 = vector.broadcast %cst_128 : bf16 to vector<32x128xbf16>
    %293 = arith.maximumf %291, %292 : vector<32x128xbf16>
    %cst_129 = arith.constant 1.000000e+00 : bf16
    %294 = vector.broadcast %cst_129 : bf16 to vector<32x128xbf16>
    %295 = arith.subf %294, %289 : vector<32x128xbf16>
    %cst_130 = arith.constant 0.000000e+00 : bf16
    %296 = vector.broadcast %cst_130 : bf16 to vector<32x128xbf16>
    %297 = arith.maximumf %295, %296 : vector<32x128xbf16>
    %298 = arith.mulf %293, %293 : vector<32x128xbf16>
    %299 = arith.mulf %298, %293 : vector<32x128xbf16>
    %300 = arith.mulf %297, %297 : vector<32x128xbf16>
    %301 = arith.mulf %300, %297 : vector<32x128xbf16>
    %cst_131 = arith.constant 4.000000e+00 : bf16
    %302 = vector.broadcast %cst_131 : bf16 to vector<32x128xbf16>
    %303 = arith.mulf %302, %301 : vector<32x128xbf16>
    %304 = arith.subf %299, %303 : vector<32x128xbf16>
    %cst_132 = arith.constant 1.669920e-01 : bf16
    %305 = vector.broadcast %cst_132 : bf16 to vector<32x128xbf16>
    %306 = arith.mulf %304, %305 : vector<32x128xbf16>
    %c1_133 = arith.constant 1 : index
    %c96_134 = arith.constant 96 : index
    %c0_135 = arith.constant 0 : index
    %307 = vector.load %arg4[%c1_133, %c96_134, %c0_135] : memref<2x288x128xbf16, #tpu.memory_space<vmem>>, vector<1x32x128xbf16>
    %308 = vector.shape_cast %307 : vector<1x32x128xbf16> to vector<32x128xbf16>
    %309 = vector.shape_cast %306 : vector<32x128xbf16> to vector<1x32x128xbf16>
    tpu.vector_store %arg4[%c1_133, %c96_134, %c0_135], %309 {strides = array<i32>} : memref<2x288x128xbf16, #tpu.memory_space<vmem>>, vector<1x32x128xbf16>,
    %cst_136 = arith.constant 3.000000e+00 : bf16
    %310 = vector.broadcast %cst_136 : bf16 to vector<32x128xbf16>
    %311 = arith.subf %234, %310 : vector<32x128xbf16>
    %cst_137 = arith.constant 2.000000e+00 : bf16
    %312 = vector.broadcast %cst_137 : bf16 to vector<32x128xbf16>
    %313 = arith.subf %311, %312 : vector<32x128xbf16>
    %314 = math.absf %313 : vector<32x128xbf16>
    %cst_138 = arith.constant 2.000000e+00 : bf16
    %315 = vector.broadcast %cst_138 : bf16 to vector<32x128xbf16>
    %316 = arith.subf %315, %314 : vector<32x128xbf16>
    %cst_139 = arith.constant 0.000000e+00 : bf16
    %317 = vector.broadcast %cst_139 : bf16 to vector<32x128xbf16>
    %318 = arith.maximumf %316, %317 : vector<32x128xbf16>
    %cst_140 = arith.constant 1.000000e+00 : bf16
    %319 = vector.broadcast %cst_140 : bf16 to vector<32x128xbf16>
    %320 = arith.subf %319, %314 : vector<32x128xbf16>
    %cst_141 = arith.constant 0.000000e+00 : bf16
    %321 = vector.broadcast %cst_141 : bf16 to vector<32x128xbf16>
    %322 = arith.maximumf %320, %321 : vector<32x128xbf16>
    %323 = arith.mulf %318, %318 : vector<32x128xbf16>
    %324 = arith.mulf %323, %318 : vector<32x128xbf16>
    %325 = arith.mulf %322, %322 : vector<32x128xbf16>
    %326 = arith.mulf %325, %322 : vector<32x128xbf16>
    %cst_142 = arith.constant 4.000000e+00 : bf16
    %327 = vector.broadcast %cst_142 : bf16 to vector<32x128xbf16>
    %328 = arith.mulf %327, %326 : vector<32x128xbf16>
    %329 = arith.subf %324, %328 : vector<32x128xbf16>
    %cst_143 = arith.constant 1.669920e-01 : bf16
    %330 = vector.broadcast %cst_143 : bf16 to vector<32x128xbf16>
    %331 = arith.mulf %329, %330 : vector<32x128xbf16>
    %c1_144 = arith.constant 1 : index
    %c128_145 = arith.constant 128 : index
    %c0_146 = arith.constant 0 : index
    %332 = vector.load %arg4[%c1_144, %c128_145, %c0_146] : memref<2x288x128xbf16, #tpu.memory_space<vmem>>, vector<1x32x128xbf16>
    %333 = vector.shape_cast %332 : vector<1x32x128xbf16> to vector<32x128xbf16>
    %334 = vector.shape_cast %331 : vector<32x128xbf16> to vector<1x32x128xbf16>
    tpu.vector_store %arg4[%c1_144, %c128_145, %c0_146], %334 {strides = array<i32>} : memref<2x288x128xbf16, #tpu.memory_space<vmem>>, vector<1x32x128xbf16>,
    %cst_147 = arith.constant 4.000000e+00 : bf16
    %335 = vector.broadcast %cst_147 : bf16 to vector<32x128xbf16>
    %336 = arith.subf %234, %335 : vector<32x128xbf16>
    %cst_148 = arith.constant 2.000000e+00 : bf16
    %337 = vector.broadcast %cst_148 : bf16 to vector<32x128xbf16>
    %338 = arith.subf %336, %337 : vector<32x128xbf16>
    %339 = math.absf %338 : vector<32x128xbf16>
    %cst_149 = arith.constant 2.000000e+00 : bf16
    %340 = vector.broadcast %cst_149 : bf16 to vector<32x128xbf16>
    %341 = arith.subf %340, %339 : vector<32x128xbf16>
    %cst_150 = arith.constant 0.000000e+00 : bf16
    %342 = vector.broadcast %cst_150 : bf16 to vector<32x128xbf16>
    %343 = arith.maximumf %341, %342 : vector<32x128xbf16>
    %cst_151 = arith.constant 1.000000e+00 : bf16
    %344 = vector.broadcast %cst_151 : bf16 to vector<32x128xbf16>
    %345 = arith.subf %344, %339 : vector<32x128xbf16>
    %cst_152 = arith.constant 0.000000e+00 : bf16
    %346 = vector.broadcast %cst_152 : bf16 to vector<32x128xbf16>
    %347 = arith.maximumf %345, %346 : vector<32x128xbf16>
    %348 = arith.mulf %343, %343 : vector<32x128xbf16>
    %349 = arith.mulf %348, %343 : vector<32x128xbf16>
    %350 = arith.mulf %347, %347 : vector<32x128xbf16>
    %351 = arith.mulf %350, %347 : vector<32x128xbf16>
    %cst_153 = arith.constant 4.000000e+00 : bf16
    %352 = vector.broadcast %cst_153 : bf16 to vector<32x128xbf16>
    %353 = arith.mulf %352, %351 : vector<32x128xbf16>
    %354 = arith.subf %349, %353 : vector<32x128xbf16>
    %cst_154 = arith.constant 1.669920e-01 : bf16
    %355 = vector.broadcast %cst_154 : bf16 to vector<32x128xbf16>
    %356 = arith.mulf %354, %355 : vector<32x128xbf16>
    %c1_155 = arith.constant 1 : index
    %c160_156 = arith.constant 160 : index
    %c0_157 = arith.constant 0 : index
    %357 = vector.load %arg4[%c1_155, %c160_156, %c0_157] : memref<2x288x128xbf16, #tpu.memory_space<vmem>>, vector<1x32x128xbf16>
    %358 = vector.shape_cast %357 : vector<1x32x128xbf16> to vector<32x128xbf16>
    %359 = vector.shape_cast %356 : vector<32x128xbf16> to vector<1x32x128xbf16>
    tpu.vector_store %arg4[%c1_155, %c160_156, %c0_157], %359 {strides = array<i32>} : memref<2x288x128xbf16, #tpu.memory_space<vmem>>, vector<1x32x128xbf16>,
    %cst_158 = arith.constant 5.000000e+00 : bf16
    %360 = vector.broadcast %cst_158 : bf16 to vector<32x128xbf16>
    %361 = arith.subf %234, %360 : vector<32x128xbf16>
    %cst_159 = arith.constant 2.000000e+00 : bf16
    %362 = vector.broadcast %cst_159 : bf16 to vector<32x128xbf16>
    %363 = arith.subf %361, %362 : vector<32x128xbf16>
    %364 = math.absf %363 : vector<32x128xbf16>
    %cst_160 = arith.constant 2.000000e+00 : bf16
    %365 = vector.broadcast %cst_160 : bf16 to vector<32x128xbf16>
    %366 = arith.subf %365, %364 : vector<32x128xbf16>
    %cst_161 = arith.constant 0.000000e+00 : bf16
    %367 = vector.broadcast %cst_161 : bf16 to vector<32x128xbf16>
    %368 = arith.maximumf %366, %367 : vector<32x128xbf16>
    %cst_162 = arith.constant 1.000000e+00 : bf16
    %369 = vector.broadcast %cst_162 : bf16 to vector<32x128xbf16>
    %370 = arith.subf %369, %364 : vector<32x128xbf16>
    %cst_163 = arith.constant 0.000000e+00 : bf16
    %371 = vector.broadcast %cst_163 : bf16 to vector<32x128xbf16>
    %372 = arith.maximumf %370, %371 : vector<32x128xbf16>
    %373 = arith.mulf %368, %368 : vector<32x128xbf16>
    %374 = arith.mulf %373, %368 : vector<32x128xbf16>
    %375 = arith.mulf %372, %372 : vector<32x128xbf16>
    %376 = arith.mulf %375, %372 : vector<32x128xbf16>
    %cst_164 = arith.constant 4.000000e+00 : bf16
    %377 = vector.broadcast %cst_164 : bf16 to vector<32x128xbf16>
    %378 = arith.mulf %377, %376 : vector<32x128xbf16>
    %379 = arith.subf %374, %378 : vector<32x128xbf16>
    %cst_165 = arith.constant 1.669920e-01 : bf16
    %380 = vector.broadcast %cst_165 : bf16 to vector<32x128xbf16>
    %381 = arith.mulf %379, %380 : vector<32x128xbf16>
    %c1_166 = arith.constant 1 : index
    %c192_167 = arith.constant 192 : index
    %c0_168 = arith.constant 0 : index
    %382 = vector.load %arg4[%c1_166, %c192_167, %c0_168] : memref<2x288x128xbf16, #tpu.memory_space<vmem>>, vector<1x32x128xbf16>
    %383 = vector.shape_cast %382 : vector<1x32x128xbf16> to vector<32x128xbf16>
    %384 = vector.shape_cast %381 : vector<32x128xbf16> to vector<1x32x128xbf16>
    tpu.vector_store %arg4[%c1_166, %c192_167, %c0_168], %384 {strides = array<i32>} : memref<2x288x128xbf16, #tpu.memory_space<vmem>>, vector<1x32x128xbf16>,
    %cst_169 = arith.constant 6.000000e+00 : bf16
    %385 = vector.broadcast %cst_169 : bf16 to vector<32x128xbf16>
    %386 = arith.subf %234, %385 : vector<32x128xbf16>
    %cst_170 = arith.constant 2.000000e+00 : bf16
    %387 = vector.broadcast %cst_170 : bf16 to vector<32x128xbf16>
    %388 = arith.subf %386, %387 : vector<32x128xbf16>
    %389 = math.absf %388 : vector<32x128xbf16>
    %cst_171 = arith.constant 2.000000e+00 : bf16
    %390 = vector.broadcast %cst_171 : bf16 to vector<32x128xbf16>
    %391 = arith.subf %390, %389 : vector<32x128xbf16>
    %cst_172 = arith.constant 0.000000e+00 : bf16
    %392 = vector.broadcast %cst_172 : bf16 to vector<32x128xbf16>
    %393 = arith.maximumf %391, %392 : vector<32x128xbf16>
    %cst_173 = arith.constant 1.000000e+00 : bf16
    %394 = vector.broadcast %cst_173 : bf16 to vector<32x128xbf16>
    %395 = arith.subf %394, %389 : vector<32x128xbf16>
    %cst_174 = arith.constant 0.000000e+00 : bf16
    %396 = vector.broadcast %cst_174 : bf16 to vector<32x128xbf16>
    %397 = arith.maximumf %395, %396 : vector<32x128xbf16>
    %398 = arith.mulf %393, %393 : vector<32x128xbf16>
    %399 = arith.mulf %398, %393 : vector<32x128xbf16>
    %400 = arith.mulf %397, %397 : vector<32x128xbf16>
    %401 = arith.mulf %400, %397 : vector<32x128xbf16>
    %cst_175 = arith.constant 4.000000e+00 : bf16
    %402 = vector.broadcast %cst_175 : bf16 to vector<32x128xbf16>
    %403 = arith.mulf %402, %401 : vector<32x128xbf16>
    %404 = arith.subf %399, %403 : vector<32x128xbf16>
    %cst_176 = arith.constant 1.669920e-01 : bf16
    %405 = vector.broadcast %cst_176 : bf16 to vector<32x128xbf16>
    %406 = arith.mulf %404, %405 : vector<32x128xbf16>
    %c1_177 = arith.constant 1 : index
    %c224_178 = arith.constant 224 : index
    %c0_179 = arith.constant 0 : index
    %407 = vector.load %arg4[%c1_177, %c224_178, %c0_179] : memref<2x288x128xbf16, #tpu.memory_space<vmem>>, vector<1x32x128xbf16>
    %408 = vector.shape_cast %407 : vector<1x32x128xbf16> to vector<32x128xbf16>
    %409 = vector.shape_cast %406 : vector<32x128xbf16> to vector<1x32x128xbf16>
    tpu.vector_store %arg4[%c1_177, %c224_178, %c0_179], %409 {strides = array<i32>} : memref<2x288x128xbf16, #tpu.memory_space<vmem>>, vector<1x32x128xbf16>,
    %cst_180 = arith.constant 7.000000e+00 : bf16
    %410 = vector.broadcast %cst_180 : bf16 to vector<32x128xbf16>
    %411 = arith.subf %234, %410 : vector<32x128xbf16>
    %cst_181 = arith.constant 2.000000e+00 : bf16
    %412 = vector.broadcast %cst_181 : bf16 to vector<32x128xbf16>
    %413 = arith.subf %411, %412 : vector<32x128xbf16>
    %414 = math.absf %413 : vector<32x128xbf16>
    %cst_182 = arith.constant 2.000000e+00 : bf16
    %415 = vector.broadcast %cst_182 : bf16 to vector<32x128xbf16>
    %416 = arith.subf %415, %414 : vector<32x128xbf16>
    %cst_183 = arith.constant 0.000000e+00 : bf16
    %417 = vector.broadcast %cst_183 : bf16 to vector<32x128xbf16>
    %418 = arith.maximumf %416, %417 : vector<32x128xbf16>
    %cst_184 = arith.constant 1.000000e+00 : bf16
    %419 = vector.broadcast %cst_184 : bf16 to vector<32x128xbf16>
    %420 = arith.subf %419, %414 : vector<32x128xbf16>
    %cst_185 = arith.constant 0.000000e+00 : bf16
    %421 = vector.broadcast %cst_185 : bf16 to vector<32x128xbf16>
    %422 = arith.maximumf %420, %421 : vector<32x128xbf16>
    %423 = arith.mulf %418, %418 : vector<32x128xbf16>
    %424 = arith.mulf %423, %418 : vector<32x128xbf16>
    %425 = arith.mulf %422, %422 : vector<32x128xbf16>
    %426 = arith.mulf %425, %422 : vector<32x128xbf16>
    %cst_186 = arith.constant 4.000000e+00 : bf16
    %427 = vector.broadcast %cst_186 : bf16 to vector<32x128xbf16>
    %428 = arith.mulf %427, %426 : vector<32x128xbf16>
    %429 = arith.subf %424, %428 : vector<32x128xbf16>
    %cst_187 = arith.constant 1.669920e-01 : bf16
    %430 = vector.broadcast %cst_187 : bf16 to vector<32x128xbf16>
    %431 = arith.mulf %429, %430 : vector<32x128xbf16>
    %c1_188 = arith.constant 1 : index
    %c256_189 = arith.constant 256 : index
    %c0_190 = arith.constant 0 : index
    %432 = vector.load %arg4[%c1_188, %c256_189, %c0_190] : memref<2x288x128xbf16, #tpu.memory_space<vmem>>, vector<1x32x128xbf16>
    %433 = vector.shape_cast %432 : vector<1x32x128xbf16> to vector<32x128xbf16>
    %434 = vector.shape_cast %431 : vector<32x128xbf16> to vector<1x32x128xbf16>
    tpu.vector_store %arg4[%c1_188, %c256_189, %c0_190], %434 {strides = array<i32>} : memref<2x288x128xbf16, #tpu.memory_space<vmem>>, vector<1x32x128xbf16>,
    %c0_191 = arith.constant 0 : index
    %c0_192 = arith.constant 0 : index
    %435 = vector.load %arg2[%c0_191, %c0_192] : memref<16x288xbf16, #tpu.memory_space<vmem>>, vector<16x288xbf16>
    %c1_193 = arith.constant 1 : index
    %c0_194 = arith.constant 0 : index
    %c0_195 = arith.constant 0 : index
    %436 = vector.load %arg4[%c1_193, %c0_194, %c0_195] : memref<2x288x128xbf16, #tpu.memory_space<vmem>>, vector<1x288x128xbf16>
    %437 = vector.shape_cast %436 : vector<1x288x128xbf16> to vector<288x128xbf16>
    %cst_196 = arith.constant dense<0.000000e+00> : vector<16x128xf32>
    %438 = tpu.matmul %435, %437, %cst_196 {dimension_numbers = #tpu.dot_dimension_numbers<[1], [0], [0], [1], [0, 0, 1, 1], [], []>} : vector<16x288xbf16>, vector<288x128xbf16>, vector<16x128xf32> -> vector<16x128xf32>
    %c0_197 = arith.constant 0 : index
    %c0_198 = arith.constant 0 : index
    %439 = vector.load %arg3[%c0_197, %c0_198] : memref<16x128xf32, #tpu.memory_space<vmem>>, vector<16x128xf32>
    %440 = arith.maximumf %439, %438 : vector<16x128xf32>
    %c0_199 = arith.constant 0 : index
    %c0_200 = arith.constant 0 : index
    %441 = vector.load %arg3[%c0_199, %c0_200] : memref<16x128xf32, #tpu.memory_space<vmem>>, vector<16x128xf32>
    tpu.vector_store %arg3[%c0_199, %c0_200], %440 {strides = array<i32>} : memref<16x128xf32, #tpu.memory_space<vmem>>, vector<16x128xf32>,
    %c2 = arith.constant 2 : index
    %c0_201 = arith.constant 0 : index
    %c0_202 = arith.constant 0 : index
    %442 = vector.load %arg1[%c2, %c0_201, %c0_202] : memref<4x32x128xbf16, #tpu.memory_space<vmem>>, vector<1x32x128xbf16>
    %443 = vector.shape_cast %442 : vector<1x32x128xbf16> to vector<32x128xbf16>
    %444 = arith.negf %443 : vector<32x128xbf16>
    %445 = math.exp %444 : vector<32x128xbf16>
    %cst_203 = arith.constant 1.000000e+00 : bf16
    %446 = vector.broadcast %cst_203 : bf16 to vector<32x128xbf16>
    %447 = arith.addf %446, %445 : vector<32x128xbf16>
    %448 = arith.divf %446, %447 : vector<32x128xbf16>
    %449 = arith.mulf %443, %448 : vector<32x128xbf16>
    %c0_204 = arith.constant 0 : index
    %c0_205 = arith.constant 0 : index
    %c0_206 = arith.constant 0 : index
    %450 = vector.load %arg4[%c0_204, %c0_205, %c0_206] : memref<2x288x128xbf16, #tpu.memory_space<vmem>>, vector<1x32x128xbf16>
    %451 = vector.shape_cast %450 : vector<1x32x128xbf16> to vector<32x128xbf16>
    %452 = vector.shape_cast %449 : vector<32x128xbf16> to vector<1x32x128xbf16>
    tpu.vector_store %arg4[%c0_204, %c0_205, %c0_206], %452 {strides = array<i32>} : memref<2x288x128xbf16, #tpu.memory_space<vmem>>, vector<1x32x128xbf16>,
    %cst_207 = arith.constant -2.203130e+00 : bf16
    %453 = vector.broadcast %cst_207 : bf16 to vector<32x128xbf16>
    %454 = arith.subf %443, %453 : vector<32x128xbf16>
    %cst_208 = arith.constant 2.500000e+00 : bf16
    %455 = vector.broadcast %cst_208 : bf16 to vector<32x128xbf16>
    %456 = arith.mulf %454, %455 : vector<32x128xbf16>
    %cst_209 = arith.constant 0.000000e+00 : bf16
    %457 = vector.broadcast %cst_209 : bf16 to vector<32x128xbf16>
    %458 = arith.subf %456, %457 : vector<32x128xbf16>
    %cst_210 = arith.constant 2.000000e+00 : bf16
    %459 = vector.broadcast %cst_210 : bf16 to vector<32x128xbf16>
    %460 = arith.subf %458, %459 : vector<32x128xbf16>
    %461 = math.absf %460 : vector<32x128xbf16>
    %cst_211 = arith.constant 2.000000e+00 : bf16
    %462 = vector.broadcast %cst_211 : bf16 to vector<32x128xbf16>
    %463 = arith.subf %462, %461 : vector<32x128xbf16>
    %cst_212 = arith.constant 0.000000e+00 : bf16
    %464 = vector.broadcast %cst_212 : bf16 to vector<32x128xbf16>
    %465 = arith.maximumf %463, %464 : vector<32x128xbf16>
    %cst_213 = arith.constant 1.000000e+00 : bf16
    %466 = vector.broadcast %cst_213 : bf16 to vector<32x128xbf16>
    %467 = arith.subf %466, %461 : vector<32x128xbf16>
    %cst_214 = arith.constant 0.000000e+00 : bf16
    %468 = vector.broadcast %cst_214 : bf16 to vector<32x128xbf16>
    %469 = arith.maximumf %467, %468 : vector<32x128xbf16>
    %470 = arith.mulf %465, %465 : vector<32x128xbf16>
    %471 = arith.mulf %470, %465 : vector<32x128xbf16>
    %472 = arith.mulf %469, %469 : vector<32x128xbf16>
    %473 = arith.mulf %472, %469 : vector<32x128xbf16>
    %cst_215 = arith.constant 4.000000e+00 : bf16
    %474 = vector.broadcast %cst_215 : bf16 to vector<32x128xbf16>
    %475 = arith.mulf %474, %473 : vector<32x128xbf16>
    %476 = arith.subf %471, %475 : vector<32x128xbf16>
    %cst_216 = arith.constant 1.669920e-01 : bf16
    %477 = vector.broadcast %cst_216 : bf16 to vector<32x128xbf16>
    %478 = arith.mulf %476, %477 : vector<32x128xbf16>
    %c0_217 = arith.constant 0 : index
    %c32_218 = arith.constant 32 : index
    %c0_219 = arith.constant 0 : index
    %479 = vector.load %arg4[%c0_217, %c32_218, %c0_219] : memref<2x288x128xbf16, #tpu.memory_space<vmem>>, vector<1x32x128xbf16>
    %480 = vector.shape_cast %479 : vector<1x32x128xbf16> to vector<32x128xbf16>
    %481 = vector.shape_cast %478 : vector<32x128xbf16> to vector<1x32x128xbf16>
    tpu.vector_store %arg4[%c0_217, %c32_218, %c0_219], %481 {strides = array<i32>} : memref<2x288x128xbf16, #tpu.memory_space<vmem>>, vector<1x32x128xbf16>,
    %cst_220 = arith.constant 1.000000e+00 : bf16
    %482 = vector.broadcast %cst_220 : bf16 to vector<32x128xbf16>
    %483 = arith.subf %456, %482 : vector<32x128xbf16>
    %cst_221 = arith.constant 2.000000e+00 : bf16
    %484 = vector.broadcast %cst_221 : bf16 to vector<32x128xbf16>
    %485 = arith.subf %483, %484 : vector<32x128xbf16>
    %486 = math.absf %485 : vector<32x128xbf16>
    %cst_222 = arith.constant 2.000000e+00 : bf16
    %487 = vector.broadcast %cst_222 : bf16 to vector<32x128xbf16>
    %488 = arith.subf %487, %486 : vector<32x128xbf16>
    %cst_223 = arith.constant 0.000000e+00 : bf16
    %489 = vector.broadcast %cst_223 : bf16 to vector<32x128xbf16>
    %490 = arith.maximumf %488, %489 : vector<32x128xbf16>
    %cst_224 = arith.constant 1.000000e+00 : bf16
    %491 = vector.broadcast %cst_224 : bf16 to vector<32x128xbf16>
    %492 = arith.subf %491, %486 : vector<32x128xbf16>
    %cst_225 = arith.constant 0.000000e+00 : bf16
    %493 = vector.broadcast %cst_225 : bf16 to vector<32x128xbf16>
    %494 = arith.maximumf %492, %493 : vector<32x128xbf16>
    %495 = arith.mulf %490, %490 : vector<32x128xbf16>
    %496 = arith.mulf %495, %490 : vector<32x128xbf16>
    %497 = arith.mulf %494, %494 : vector<32x128xbf16>
    %498 = arith.mulf %497, %494 : vector<32x128xbf16>
    %cst_226 = arith.constant 4.000000e+00 : bf16
    %499 = vector.broadcast %cst_226 : bf16 to vector<32x128xbf16>
    %500 = arith.mulf %499, %498 : vector<32x128xbf16>
    %501 = arith.subf %496, %500 : vector<32x128xbf16>
    %cst_227 = arith.constant 1.669920e-01 : bf16
    %502 = vector.broadcast %cst_227 : bf16 to vector<32x128xbf16>
    %503 = arith.mulf %501, %502 : vector<32x128xbf16>
    %c0_228 = arith.constant 0 : index
    %c64_229 = arith.constant 64 : index
    %c0_230 = arith.constant 0 : index
    %504 = vector.load %arg4[%c0_228, %c64_229, %c0_230] : memref<2x288x128xbf16, #tpu.memory_space<vmem>>, vector<1x32x128xbf16>
    %505 = vector.shape_cast %504 : vector<1x32x128xbf16> to vector<32x128xbf16>
    %506 = vector.shape_cast %503 : vector<32x128xbf16> to vector<1x32x128xbf16>
    tpu.vector_store %arg4[%c0_228, %c64_229, %c0_230], %506 {strides = array<i32>} : memref<2x288x128xbf16, #tpu.memory_space<vmem>>, vector<1x32x128xbf16>,
    %cst_231 = arith.constant 2.000000e+00 : bf16
    %507 = vector.broadcast %cst_231 : bf16 to vector<32x128xbf16>
    %508 = arith.subf %456, %507 : vector<32x128xbf16>
    %cst_232 = arith.constant 2.000000e+00 : bf16
    %509 = vector.broadcast %cst_232 : bf16 to vector<32x128xbf16>
    %510 = arith.subf %508, %509 : vector<32x128xbf16>
    %511 = math.absf %510 : vector<32x128xbf16>
    %cst_233 = arith.constant 2.000000e+00 : bf16
    %512 = vector.broadcast %cst_233 : bf16 to vector<32x128xbf16>
    %513 = arith.subf %512, %511 : vector<32x128xbf16>
    %cst_234 = arith.constant 0.000000e+00 : bf16
    %514 = vector.broadcast %cst_234 : bf16 to vector<32x128xbf16>
    %515 = arith.maximumf %513, %514 : vector<32x128xbf16>
    %cst_235 = arith.constant 1.000000e+00 : bf16
    %516 = vector.broadcast %cst_235 : bf16 to vector<32x128xbf16>
    %517 = arith.subf %516, %511 : vector<32x128xbf16>
    %cst_236 = arith.constant 0.000000e+00 : bf16
    %518 = vector.broadcast %cst_236 : bf16 to vector<32x128xbf16>
    %519 = arith.maximumf %517, %518 : vector<32x128xbf16>
    %520 = arith.mulf %515, %515 : vector<32x128xbf16>
    %521 = arith.mulf %520, %515 : vector<32x128xbf16>
    %522 = arith.mulf %519, %519 : vector<32x128xbf16>
    %523 = arith.mulf %522, %519 : vector<32x128xbf16>
    %cst_237 = arith.constant 4.000000e+00 : bf16
    %524 = vector.broadcast %cst_237 : bf16 to vector<32x128xbf16>
    %525 = arith.mulf %524, %523 : vector<32x128xbf16>
    %526 = arith.subf %521, %525 : vector<32x128xbf16>
    %cst_238 = arith.constant 1.669920e-01 : bf16
    %527 = vector.broadcast %cst_238 : bf16 to vector<32x128xbf16>
    %528 = arith.mulf %526, %527 : vector<32x128xbf16>
    %c0_239 = arith.constant 0 : index
    %c96_240 = arith.constant 96 : index
    %c0_241 = arith.constant 0 : index
    %529 = vector.load %arg4[%c0_239, %c96_240, %c0_241] : memref<2x288x128xbf16, #tpu.memory_space<vmem>>, vector<1x32x128xbf16>
    %530 = vector.shape_cast %529 : vector<1x32x128xbf16> to vector<32x128xbf16>
    %531 = vector.shape_cast %528 : vector<32x128xbf16> to vector<1x32x128xbf16>
    tpu.vector_store %arg4[%c0_239, %c96_240, %c0_241], %531 {strides = array<i32>} : memref<2x288x128xbf16, #tpu.memory_space<vmem>>, vector<1x32x128xbf16>,
    %cst_242 = arith.constant 3.000000e+00 : bf16
    %532 = vector.broadcast %cst_242 : bf16 to vector<32x128xbf16>
    %533 = arith.subf %456, %532 : vector<32x128xbf16>
    %cst_243 = arith.constant 2.000000e+00 : bf16
    %534 = vector.broadcast %cst_243 : bf16 to vector<32x128xbf16>
    %535 = arith.subf %533, %534 : vector<32x128xbf16>
    %536 = math.absf %535 : vector<32x128xbf16>
    %cst_244 = arith.constant 2.000000e+00 : bf16
    %537 = vector.broadcast %cst_244 : bf16 to vector<32x128xbf16>
    %538 = arith.subf %537, %536 : vector<32x128xbf16>
    %cst_245 = arith.constant 0.000000e+00 : bf16
    %539 = vector.broadcast %cst_245 : bf16 to vector<32x128xbf16>
    %540 = arith.maximumf %538, %539 : vector<32x128xbf16>
    %cst_246 = arith.constant 1.000000e+00 : bf16
    %541 = vector.broadcast %cst_246 : bf16 to vector<32x128xbf16>
    %542 = arith.subf %541, %536 : vector<32x128xbf16>
    %cst_247 = arith.constant 0.000000e+00 : bf16
    %543 = vector.broadcast %cst_247 : bf16 to vector<32x128xbf16>
    %544 = arith.maximumf %542, %543 : vector<32x128xbf16>
    %545 = arith.mulf %540, %540 : vector<32x128xbf16>
    %546 = arith.mulf %545, %540 : vector<32x128xbf16>
    %547 = arith.mulf %544, %544 : vector<32x128xbf16>
    %548 = arith.mulf %547, %544 : vector<32x128xbf16>
    %cst_248 = arith.constant 4.000000e+00 : bf16
    %549 = vector.broadcast %cst_248 : bf16 to vector<32x128xbf16>
    %550 = arith.mulf %549, %548 : vector<32x128xbf16>
    %551 = arith.subf %546, %550 : vector<32x128xbf16>
    %cst_249 = arith.constant 1.669920e-01 : bf16
    %552 = vector.broadcast %cst_249 : bf16 to vector<32x128xbf16>
    %553 = arith.mulf %551, %552 : vector<32x128xbf16>
    %c0_250 = arith.constant 0 : index
    %c128_251 = arith.constant 128 : index
    %c0_252 = arith.constant 0 : index
    %554 = vector.load %arg4[%c0_250, %c128_251, %c0_252] : memref<2x288x128xbf16, #tpu.memory_space<vmem>>, vector<1x32x128xbf16>
    %555 = vector.shape_cast %554 : vector<1x32x128xbf16> to vector<32x128xbf16>
    %556 = vector.shape_cast %553 : vector<32x128xbf16> to vector<1x32x128xbf16>
    tpu.vector_store %arg4[%c0_250, %c128_251, %c0_252], %556 {strides = array<i32>} : memref<2x288x128xbf16, #tpu.memory_space<vmem>>, vector<1x32x128xbf16>,
    %cst_253 = arith.constant 4.000000e+00 : bf16
    %557 = vector.broadcast %cst_253 : bf16 to vector<32x128xbf16>
    %558 = arith.subf %456, %557 : vector<32x128xbf16>
    %cst_254 = arith.constant 2.000000e+00 : bf16
    %559 = vector.broadcast %cst_254 : bf16 to vector<32x128xbf16>
    %560 = arith.subf %558, %559 : vector<32x128xbf16>
    %561 = math.absf %560 : vector<32x128xbf16>
    %cst_255 = arith.constant 2.000000e+00 : bf16
    %562 = vector.broadcast %cst_255 : bf16 to vector<32x128xbf16>
    %563 = arith.subf %562, %561 : vector<32x128xbf16>
    %cst_256 = arith.constant 0.000000e+00 : bf16
    %564 = vector.broadcast %cst_256 : bf16 to vector<32x128xbf16>
    %565 = arith.maximumf %563, %564 : vector<32x128xbf16>
    %cst_257 = arith.constant 1.000000e+00 : bf16
    %566 = vector.broadcast %cst_257 : bf16 to vector<32x128xbf16>
    %567 = arith.subf %566, %561 : vector<32x128xbf16>
    %cst_258 = arith.constant 0.000000e+00 : bf16
    %568 = vector.broadcast %cst_258 : bf16 to vector<32x128xbf16>
    %569 = arith.maximumf %567, %568 : vector<32x128xbf16>
    %570 = arith.mulf %565, %565 : vector<32x128xbf16>
    %571 = arith.mulf %570, %565 : vector<32x128xbf16>
    %572 = arith.mulf %569, %569 : vector<32x128xbf16>
    %573 = arith.mulf %572, %569 : vector<32x128xbf16>
    %cst_259 = arith.constant 4.000000e+00 : bf16
    %574 = vector.broadcast %cst_259 : bf16 to vector<32x128xbf16>
    %575 = arith.mulf %574, %573 : vector<32x128xbf16>
    %576 = arith.subf %571, %575 : vector<32x128xbf16>
    %cst_260 = arith.constant 1.669920e-01 : bf16
    %577 = vector.broadcast %cst_260 : bf16 to vector<32x128xbf16>
    %578 = arith.mulf %576, %577 : vector<32x128xbf16>
    %c0_261 = arith.constant 0 : index
    %c160_262 = arith.constant 160 : index
    %c0_263 = arith.constant 0 : index
    %579 = vector.load %arg4[%c0_261, %c160_262, %c0_263] : memref<2x288x128xbf16, #tpu.memory_space<vmem>>, vector<1x32x128xbf16>
    %580 = vector.shape_cast %579 : vector<1x32x128xbf16> to vector<32x128xbf16>
    %581 = vector.shape_cast %578 : vector<32x128xbf16> to vector<1x32x128xbf16>
    tpu.vector_store %arg4[%c0_261, %c160_262, %c0_263], %581 {strides = array<i32>} : memref<2x288x128xbf16, #tpu.memory_space<vmem>>, vector<1x32x128xbf16>,
    %cst_264 = arith.constant 5.000000e+00 : bf16
    %582 = vector.broadcast %cst_264 : bf16 to vector<32x128xbf16>
    %583 = arith.subf %456, %582 : vector<32x128xbf16>
    %cst_265 = arith.constant 2.000000e+00 : bf16
    %584 = vector.broadcast %cst_265 : bf16 to vector<32x128xbf16>
    %585 = arith.subf %583, %584 : vector<32x128xbf16>
    %586 = math.absf %585 : vector<32x128xbf16>
    %cst_266 = arith.constant 2.000000e+00 : bf16
    %587 = vector.broadcast %cst_266 : bf16 to vector<32x128xbf16>
    %588 = arith.subf %587, %586 : vector<32x128xbf16>
    %cst_267 = arith.constant 0.000000e+00 : bf16
    %589 = vector.broadcast %cst_267 : bf16 to vector<32x128xbf16>
    %590 = arith.maximumf %588, %589 : vector<32x128xbf16>
    %cst_268 = arith.constant 1.000000e+00 : bf16
    %591 = vector.broadcast %cst_268 : bf16 to vector<32x128xbf16>
    %592 = arith.subf %591, %586 : vector<32x128xbf16>
    %cst_269 = arith.constant 0.000000e+00 : bf16
    %593 = vector.broadcast %cst_269 : bf16 to vector<32x128xbf16>
    %594 = arith.maximumf %592, %593 : vector<32x128xbf16>
    %595 = arith.mulf %590, %590 : vector<32x128xbf16>
    %596 = arith.mulf %595, %590 : vector<32x128xbf16>
    %597 = arith.mulf %594, %594 : vector<32x128xbf16>
    %598 = arith.mulf %597, %594 : vector<32x128xbf16>
    %cst_270 = arith.constant 4.000000e+00 : bf16
    %599 = vector.broadcast %cst_270 : bf16 to vector<32x128xbf16>
    %600 = arith.mulf %599, %598 : vector<32x128xbf16>
    %601 = arith.subf %596, %600 : vector<32x128xbf16>
    %cst_271 = arith.constant 1.669920e-01 : bf16
    %602 = vector.broadcast %cst_271 : bf16 to vector<32x128xbf16>
    %603 = arith.mulf %601, %602 : vector<32x128xbf16>
    %c0_272 = arith.constant 0 : index
    %c192_273 = arith.constant 192 : index
    %c0_274 = arith.constant 0 : index
    %604 = vector.load %arg4[%c0_272, %c192_273, %c0_274] : memref<2x288x128xbf16, #tpu.memory_space<vmem>>, vector<1x32x128xbf16>
    %605 = vector.shape_cast %604 : vector<1x32x128xbf16> to vector<32x128xbf16>
    %606 = vector.shape_cast %603 : vector<32x128xbf16> to vector<1x32x128xbf16>
    tpu.vector_store %arg4[%c0_272, %c192_273, %c0_274], %606 {strides = array<i32>} : memref<2x288x128xbf16, #tpu.memory_space<vmem>>, vector<1x32x128xbf16>,
    %cst_275 = arith.constant 6.000000e+00 : bf16
    %607 = vector.broadcast %cst_275 : bf16 to vector<32x128xbf16>
    %608 = arith.subf %456, %607 : vector<32x128xbf16>
    %cst_276 = arith.constant 2.000000e+00 : bf16
    %609 = vector.broadcast %cst_276 : bf16 to vector<32x128xbf16>
    %610 = arith.subf %608, %609 : vector<32x128xbf16>
    %611 = math.absf %610 : vector<32x128xbf16>
    %cst_277 = arith.constant 2.000000e+00 : bf16
    %612 = vector.broadcast %cst_277 : bf16 to vector<32x128xbf16>
    %613 = arith.subf %612, %611 : vector<32x128xbf16>
    %cst_278 = arith.constant 0.000000e+00 : bf16
    %614 = vector.broadcast %cst_278 : bf16 to vector<32x128xbf16>
    %615 = arith.maximumf %613, %614 : vector<32x128xbf16>
    %cst_279 = arith.constant 1.000000e+00 : bf16
    %616 = vector.broadcast %cst_279 : bf16 to vector<32x128xbf16>
    %617 = arith.subf %616, %611 : vector<32x128xbf16>
    %cst_280 = arith.constant 0.000000e+00 : bf16
    %618 = vector.broadcast %cst_280 : bf16 to vector<32x128xbf16>
    %619 = arith.maximumf %617, %618 : vector<32x128xbf16>
    %620 = arith.mulf %615, %615 : vector<32x128xbf16>
    %621 = arith.mulf %620, %615 : vector<32x128xbf16>
    %622 = arith.mulf %619, %619 : vector<32x128xbf16>
    %623 = arith.mulf %622, %619 : vector<32x128xbf16>
    %cst_281 = arith.constant 4.000000e+00 : bf16
    %624 = vector.broadcast %cst_281 : bf16 to vector<32x128xbf16>
    %625 = arith.mulf %624, %623 : vector<32x128xbf16>
    %626 = arith.subf %621, %625 : vector<32x128xbf16>
    %cst_282 = arith.constant 1.669920e-01 : bf16
    %627 = vector.broadcast %cst_282 : bf16 to vector<32x128xbf16>
    %628 = arith.mulf %626, %627 : vector<32x128xbf16>
    %c0_283 = arith.constant 0 : index
    %c224_284 = arith.constant 224 : index
    %c0_285 = arith.constant 0 : index
    %629 = vector.load %arg4[%c0_283, %c224_284, %c0_285] : memref<2x288x128xbf16, #tpu.memory_space<vmem>>, vector<1x32x128xbf16>
    %630 = vector.shape_cast %629 : vector<1x32x128xbf16> to vector<32x128xbf16>
    %631 = vector.shape_cast %628 : vector<32x128xbf16> to vector<1x32x128xbf16>
    tpu.vector_store %arg4[%c0_283, %c224_284, %c0_285], %631 {strides = array<i32>} : memref<2x288x128xbf16, #tpu.memory_space<vmem>>, vector<1x32x128xbf16>,
    %cst_286 = arith.constant 7.000000e+00 : bf16
    %632 = vector.broadcast %cst_286 : bf16 to vector<32x128xbf16>
    %633 = arith.subf %456, %632 : vector<32x128xbf16>
    %cst_287 = arith.constant 2.000000e+00 : bf16
    %634 = vector.broadcast %cst_287 : bf16 to vector<32x128xbf16>
    %635 = arith.subf %633, %634 : vector<32x128xbf16>
    %636 = math.absf %635 : vector<32x128xbf16>
    %cst_288 = arith.constant 2.000000e+00 : bf16
    %637 = vector.broadcast %cst_288 : bf16 to vector<32x128xbf16>
    %638 = arith.subf %637, %636 : vector<32x128xbf16>
    %cst_289 = arith.constant 0.000000e+00 : bf16
    %639 = vector.broadcast %cst_289 : bf16 to vector<32x128xbf16>
    %640 = arith.maximumf %638, %639 : vector<32x128xbf16>
    %cst_290 = arith.constant 1.000000e+00 : bf16
    %641 = vector.broadcast %cst_290 : bf16 to vector<32x128xbf16>
    %642 = arith.subf %641, %636 : vector<32x128xbf16>
    %cst_291 = arith.constant 0.000000e+00 : bf16
    %643 = vector.broadcast %cst_291 : bf16 to vector<32x128xbf16>
    %644 = arith.maximumf %642, %643 : vector<32x128xbf16>
    %645 = arith.mulf %640, %640 : vector<32x128xbf16>
    %646 = arith.mulf %645, %640 : vector<32x128xbf16>
    %647 = arith.mulf %644, %644 : vector<32x128xbf16>
    %648 = arith.mulf %647, %644 : vector<32x128xbf16>
    %cst_292 = arith.constant 4.000000e+00 : bf16
    %649 = vector.broadcast %cst_292 : bf16 to vector<32x128xbf16>
    %650 = arith.mulf %649, %648 : vector<32x128xbf16>
    %651 = arith.subf %646, %650 : vector<32x128xbf16>
    %cst_293 = arith.constant 1.669920e-01 : bf16
    %652 = vector.broadcast %cst_293 : bf16 to vector<32x128xbf16>
    %653 = arith.mulf %651, %652 : vector<32x128xbf16>
    %c0_294 = arith.constant 0 : index
    %c256_295 = arith.constant 256 : index
    %c0_296 = arith.constant 0 : index
    %654 = vector.load %arg4[%c0_294, %c256_295, %c0_296] : memref<2x288x128xbf16, #tpu.memory_space<vmem>>, vector<1x32x128xbf16>
    %655 = vector.shape_cast %654 : vector<1x32x128xbf16> to vector<32x128xbf16>
    %656 = vector.shape_cast %653 : vector<32x128xbf16> to vector<1x32x128xbf16>
    tpu.vector_store %arg4[%c0_294, %c256_295, %c0_296], %656 {strides = array<i32>} : memref<2x288x128xbf16, #tpu.memory_space<vmem>>, vector<1x32x128xbf16>,
    %c0_297 = arith.constant 0 : index
    %c0_298 = arith.constant 0 : index
    %657 = vector.load %arg2[%c0_297, %c0_298] : memref<16x288xbf16, #tpu.memory_space<vmem>>, vector<16x288xbf16>
    %c0_299 = arith.constant 0 : index
    %c0_300 = arith.constant 0 : index
    %c0_301 = arith.constant 0 : index
    %658 = vector.load %arg4[%c0_299, %c0_300, %c0_301] : memref<2x288x128xbf16, #tpu.memory_space<vmem>>, vector<1x288x128xbf16>
    %659 = vector.shape_cast %658 : vector<1x288x128xbf16> to vector<288x128xbf16>
    %cst_302 = arith.constant dense<0.000000e+00> : vector<16x128xf32>
    %660 = tpu.matmul %657, %659, %cst_302 {dimension_numbers = #tpu.dot_dimension_numbers<[1], [0], [0], [1], [0, 0, 1, 1], [], []>} : vector<16x288xbf16>, vector<288x128xbf16>, vector<16x128xf32> -> vector<16x128xf32>
    %c0_303 = arith.constant 0 : index
    %c0_304 = arith.constant 0 : index
    %661 = vector.load %arg3[%c0_303, %c0_304] : memref<16x128xf32, #tpu.memory_space<vmem>>, vector<16x128xf32>
    %662 = arith.maximumf %661, %660 : vector<16x128xf32>
    %c0_305 = arith.constant 0 : index
    %c0_306 = arith.constant 0 : index
    %663 = vector.load %arg3[%c0_305, %c0_306] : memref<16x128xf32, #tpu.memory_space<vmem>>, vector<16x128xf32>
    tpu.vector_store %arg3[%c0_305, %c0_306], %662 {strides = array<i32>} : memref<16x128xf32, #tpu.memory_space<vmem>>, vector<16x128xf32>,
    %c3 = arith.constant 3 : index
    %c0_307 = arith.constant 0 : index
    %c0_308 = arith.constant 0 : index
    %664 = vector.load %arg1[%c3, %c0_307, %c0_308] : memref<4x32x128xbf16, #tpu.memory_space<vmem>>, vector<1x32x128xbf16>
    %665 = vector.shape_cast %664 : vector<1x32x128xbf16> to vector<32x128xbf16>
    %666 = arith.negf %665 : vector<32x128xbf16>
    %667 = math.exp %666 : vector<32x128xbf16>
    %cst_309 = arith.constant 1.000000e+00 : bf16
    %668 = vector.broadcast %cst_309 : bf16 to vector<32x128xbf16>
    %669 = arith.addf %668, %667 : vector<32x128xbf16>
    %670 = arith.divf %668, %669 : vector<32x128xbf16>
    %671 = arith.mulf %665, %670 : vector<32x128xbf16>
    %c1_310 = arith.constant 1 : index
    %c0_311 = arith.constant 0 : index
    %c0_312 = arith.constant 0 : index
    %672 = vector.load %arg4[%c1_310, %c0_311, %c0_312] : memref<2x288x128xbf16, #tpu.memory_space<vmem>>, vector<1x32x128xbf16>
    %673 = vector.shape_cast %672 : vector<1x32x128xbf16> to vector<32x128xbf16>
    %674 = vector.shape_cast %671 : vector<32x128xbf16> to vector<1x32x128xbf16>
    tpu.vector_store %arg4[%c1_310, %c0_311, %c0_312], %674 {strides = array<i32>} : memref<2x288x128xbf16, #tpu.memory_space<vmem>>, vector<1x32x128xbf16>,
    %cst_313 = arith.constant -2.203130e+00 : bf16
    %675 = vector.broadcast %cst_313 : bf16 to vector<32x128xbf16>
    %676 = arith.subf %665, %675 : vector<32x128xbf16>
    %cst_314 = arith.constant 2.500000e+00 : bf16
    %677 = vector.broadcast %cst_314 : bf16 to vector<32x128xbf16>
    %678 = arith.mulf %676, %677 : vector<32x128xbf16>
    %cst_315 = arith.constant 0.000000e+00 : bf16
    %679 = vector.broadcast %cst_315 : bf16 to vector<32x128xbf16>
    %680 = arith.subf %678, %679 : vector<32x128xbf16>
    %cst_316 = arith.constant 2.000000e+00 : bf16
    %681 = vector.broadcast %cst_316 : bf16 to vector<32x128xbf16>
    %682 = arith.subf %680, %681 : vector<32x128xbf16>
    %683 = math.absf %682 : vector<32x128xbf16>
    %cst_317 = arith.constant 2.000000e+00 : bf16
    %684 = vector.broadcast %cst_317 : bf16 to vector<32x128xbf16>
    %685 = arith.subf %684, %683 : vector<32x128xbf16>
    %cst_318 = arith.constant 0.000000e+00 : bf16
    %686 = vector.broadcast %cst_318 : bf16 to vector<32x128xbf16>
    %687 = arith.maximumf %685, %686 : vector<32x128xbf16>
    %cst_319 = arith.constant 1.000000e+00 : bf16
    %688 = vector.broadcast %cst_319 : bf16 to vector<32x128xbf16>
    %689 = arith.subf %688, %683 : vector<32x128xbf16>
    %cst_320 = arith.constant 0.000000e+00 : bf16
    %690 = vector.broadcast %cst_320 : bf16 to vector<32x128xbf16>
    %691 = arith.maximumf %689, %690 : vector<32x128xbf16>
    %692 = arith.mulf %687, %687 : vector<32x128xbf16>
    %693 = arith.mulf %692, %687 : vector<32x128xbf16>
    %694 = arith.mulf %691, %691 : vector<32x128xbf16>
    %695 = arith.mulf %694, %691 : vector<32x128xbf16>
    %cst_321 = arith.constant 4.000000e+00 : bf16
    %696 = vector.broadcast %cst_321 : bf16 to vector<32x128xbf16>
    %697 = arith.mulf %696, %695 : vector<32x128xbf16>
    %698 = arith.subf %693, %697 : vector<32x128xbf16>
    %cst_322 = arith.constant 1.669920e-01 : bf16
    %699 = vector.broadcast %cst_322 : bf16 to vector<32x128xbf16>
    %700 = arith.mulf %698, %699 : vector<32x128xbf16>
    %c1_323 = arith.constant 1 : index
    %c32_324 = arith.constant 32 : index
    %c0_325 = arith.constant 0 : index
    %701 = vector.load %arg4[%c1_323, %c32_324, %c0_325] : memref<2x288x128xbf16, #tpu.memory_space<vmem>>, vector<1x32x128xbf16>
    %702 = vector.shape_cast %701 : vector<1x32x128xbf16> to vector<32x128xbf16>
    %703 = vector.shape_cast %700 : vector<32x128xbf16> to vector<1x32x128xbf16>
    tpu.vector_store %arg4[%c1_323, %c32_324, %c0_325], %703 {strides = array<i32>} : memref<2x288x128xbf16, #tpu.memory_space<vmem>>, vector<1x32x128xbf16>,
    %cst_326 = arith.constant 1.000000e+00 : bf16
    %704 = vector.broadcast %cst_326 : bf16 to vector<32x128xbf16>
    %705 = arith.subf %678, %704 : vector<32x128xbf16>
    %cst_327 = arith.constant 2.000000e+00 : bf16
    %706 = vector.broadcast %cst_327 : bf16 to vector<32x128xbf16>
    %707 = arith.subf %705, %706 : vector<32x128xbf16>
    %708 = math.absf %707 : vector<32x128xbf16>
    %cst_328 = arith.constant 2.000000e+00 : bf16
    %709 = vector.broadcast %cst_328 : bf16 to vector<32x128xbf16>
    %710 = arith.subf %709, %708 : vector<32x128xbf16>
    %cst_329 = arith.constant 0.000000e+00 : bf16
    %711 = vector.broadcast %cst_329 : bf16 to vector<32x128xbf16>
    %712 = arith.maximumf %710, %711 : vector<32x128xbf16>
    %cst_330 = arith.constant 1.000000e+00 : bf16
    %713 = vector.broadcast %cst_330 : bf16 to vector<32x128xbf16>
    %714 = arith.subf %713, %708 : vector<32x128xbf16>
    %cst_331 = arith.constant 0.000000e+00 : bf16
    %715 = vector.broadcast %cst_331 : bf16 to vector<32x128xbf16>
    %716 = arith.maximumf %714, %715 : vector<32x128xbf16>
    %717 = arith.mulf %712, %712 : vector<32x128xbf16>
    %718 = arith.mulf %717, %712 : vector<32x128xbf16>
    %719 = arith.mulf %716, %716 : vector<32x128xbf16>
    %720 = arith.mulf %719, %716 : vector<32x128xbf16>
    %cst_332 = arith.constant 4.000000e+00 : bf16
    %721 = vector.broadcast %cst_332 : bf16 to vector<32x128xbf16>
    %722 = arith.mulf %721, %720 : vector<32x128xbf16>
    %723 = arith.subf %718, %722 : vector<32x128xbf16>
    %cst_333 = arith.constant 1.669920e-01 : bf16
    %724 = vector.broadcast %cst_333 : bf16 to vector<32x128xbf16>
    %725 = arith.mulf %723, %724 : vector<32x128xbf16>
    %c1_334 = arith.constant 1 : index
    %c64_335 = arith.constant 64 : index
    %c0_336 = arith.constant 0 : index
    %726 = vector.load %arg4[%c1_334, %c64_335, %c0_336] : memref<2x288x128xbf16, #tpu.memory_space<vmem>>, vector<1x32x128xbf16>
    %727 = vector.shape_cast %726 : vector<1x32x128xbf16> to vector<32x128xbf16>
    %728 = vector.shape_cast %725 : vector<32x128xbf16> to vector<1x32x128xbf16>
    tpu.vector_store %arg4[%c1_334, %c64_335, %c0_336], %728 {strides = array<i32>} : memref<2x288x128xbf16, #tpu.memory_space<vmem>>, vector<1x32x128xbf16>,
    %cst_337 = arith.constant 2.000000e+00 : bf16
    %729 = vector.broadcast %cst_337 : bf16 to vector<32x128xbf16>
    %730 = arith.subf %678, %729 : vector<32x128xbf16>
    %cst_338 = arith.constant 2.000000e+00 : bf16
    %731 = vector.broadcast %cst_338 : bf16 to vector<32x128xbf16>
    %732 = arith.subf %730, %731 : vector<32x128xbf16>
    %733 = math.absf %732 : vector<32x128xbf16>
    %cst_339 = arith.constant 2.000000e+00 : bf16
    %734 = vector.broadcast %cst_339 : bf16 to vector<32x128xbf16>
    %735 = arith.subf %734, %733 : vector<32x128xbf16>
    %cst_340 = arith.constant 0.000000e+00 : bf16
    %736 = vector.broadcast %cst_340 : bf16 to vector<32x128xbf16>
    %737 = arith.maximumf %735, %736 : vector<32x128xbf16>
    %cst_341 = arith.constant 1.000000e+00 : bf16
    %738 = vector.broadcast %cst_341 : bf16 to vector<32x128xbf16>
    %739 = arith.subf %738, %733 : vector<32x128xbf16>
    %cst_342 = arith.constant 0.000000e+00 : bf16
    %740 = vector.broadcast %cst_342 : bf16 to vector<32x128xbf16>
    %741 = arith.maximumf %739, %740 : vector<32x128xbf16>
    %742 = arith.mulf %737, %737 : vector<32x128xbf16>
    %743 = arith.mulf %742, %737 : vector<32x128xbf16>
    %744 = arith.mulf %741, %741 : vector<32x128xbf16>
    %745 = arith.mulf %744, %741 : vector<32x128xbf16>
    %cst_343 = arith.constant 4.000000e+00 : bf16
    %746 = vector.broadcast %cst_343 : bf16 to vector<32x128xbf16>
    %747 = arith.mulf %746, %745 : vector<32x128xbf16>
    %748 = arith.subf %743, %747 : vector<32x128xbf16>
    %cst_344 = arith.constant 1.669920e-01 : bf16
    %749 = vector.broadcast %cst_344 : bf16 to vector<32x128xbf16>
    %750 = arith.mulf %748, %749 : vector<32x128xbf16>
    %c1_345 = arith.constant 1 : index
    %c96_346 = arith.constant 96 : index
    %c0_347 = arith.constant 0 : index
    %751 = vector.load %arg4[%c1_345, %c96_346, %c0_347] : memref<2x288x128xbf16, #tpu.memory_space<vmem>>, vector<1x32x128xbf16>
    %752 = vector.shape_cast %751 : vector<1x32x128xbf16> to vector<32x128xbf16>
    %753 = vector.shape_cast %750 : vector<32x128xbf16> to vector<1x32x128xbf16>
    tpu.vector_store %arg4[%c1_345, %c96_346, %c0_347], %753 {strides = array<i32>} : memref<2x288x128xbf16, #tpu.memory_space<vmem>>, vector<1x32x128xbf16>,
    %cst_348 = arith.constant 3.000000e+00 : bf16
    %754 = vector.broadcast %cst_348 : bf16 to vector<32x128xbf16>
    %755 = arith.subf %678, %754 : vector<32x128xbf16>
    %cst_349 = arith.constant 2.000000e+00 : bf16
    %756 = vector.broadcast %cst_349 : bf16 to vector<32x128xbf16>
    %757 = arith.subf %755, %756 : vector<32x128xbf16>
    %758 = math.absf %757 : vector<32x128xbf16>
    %cst_350 = arith.constant 2.000000e+00 : bf16
    %759 = vector.broadcast %cst_350 : bf16 to vector<32x128xbf16>
    %760 = arith.subf %759, %758 : vector<32x128xbf16>
    %cst_351 = arith.constant 0.000000e+00 : bf16
    %761 = vector.broadcast %cst_351 : bf16 to vector<32x128xbf16>
    %762 = arith.maximumf %760, %761 : vector<32x128xbf16>
    %cst_352 = arith.constant 1.000000e+00 : bf16
    %763 = vector.broadcast %cst_352 : bf16 to vector<32x128xbf16>
    %764 = arith.subf %763, %758 : vector<32x128xbf16>
    %cst_353 = arith.constant 0.000000e+00 : bf16
    %765 = vector.broadcast %cst_353 : bf16 to vector<32x128xbf16>
    %766 = arith.maximumf %764, %765 : vector<32x128xbf16>
    %767 = arith.mulf %762, %762 : vector<32x128xbf16>
    %768 = arith.mulf %767, %762 : vector<32x128xbf16>
    %769 = arith.mulf %766, %766 : vector<32x128xbf16>
    %770 = arith.mulf %769, %766 : vector<32x128xbf16>
    %cst_354 = arith.constant 4.000000e+00 : bf16
    %771 = vector.broadcast %cst_354 : bf16 to vector<32x128xbf16>
    %772 = arith.mulf %771, %770 : vector<32x128xbf16>
    %773 = arith.subf %768, %772 : vector<32x128xbf16>
    %cst_355 = arith.constant 1.669920e-01 : bf16
    %774 = vector.broadcast %cst_355 : bf16 to vector<32x128xbf16>
    %775 = arith.mulf %773, %774 : vector<32x128xbf16>
    %c1_356 = arith.constant 1 : index
    %c128_357 = arith.constant 128 : index
    %c0_358 = arith.constant 0 : index
    %776 = vector.load %arg4[%c1_356, %c128_357, %c0_358] : memref<2x288x128xbf16, #tpu.memory_space<vmem>>, vector<1x32x128xbf16>
    %777 = vector.shape_cast %776 : vector<1x32x128xbf16> to vector<32x128xbf16>
    %778 = vector.shape_cast %775 : vector<32x128xbf16> to vector<1x32x128xbf16>
    tpu.vector_store %arg4[%c1_356, %c128_357, %c0_358], %778 {strides = array<i32>} : memref<2x288x128xbf16, #tpu.memory_space<vmem>>, vector<1x32x128xbf16>,
    %cst_359 = arith.constant 4.000000e+00 : bf16
    %779 = vector.broadcast %cst_359 : bf16 to vector<32x128xbf16>
    %780 = arith.subf %678, %779 : vector<32x128xbf16>
    %cst_360 = arith.constant 2.000000e+00 : bf16
    %781 = vector.broadcast %cst_360 : bf16 to vector<32x128xbf16>
    %782 = arith.subf %780, %781 : vector<32x128xbf16>
    %783 = math.absf %782 : vector<32x128xbf16>
    %cst_361 = arith.constant 2.000000e+00 : bf16
    %784 = vector.broadcast %cst_361 : bf16 to vector<32x128xbf16>
    %785 = arith.subf %784, %783 : vector<32x128xbf16>
    %cst_362 = arith.constant 0.000000e+00 : bf16
    %786 = vector.broadcast %cst_362 : bf16 to vector<32x128xbf16>
    %787 = arith.maximumf %785, %786 : vector<32x128xbf16>
    %cst_363 = arith.constant 1.000000e+00 : bf16
    %788 = vector.broadcast %cst_363 : bf16 to vector<32x128xbf16>
    %789 = arith.subf %788, %783 : vector<32x128xbf16>
    %cst_364 = arith.constant 0.000000e+00 : bf16
    %790 = vector.broadcast %cst_364 : bf16 to vector<32x128xbf16>
    %791 = arith.maximumf %789, %790 : vector<32x128xbf16>
    %792 = arith.mulf %787, %787 : vector<32x128xbf16>
    %793 = arith.mulf %792, %787 : vector<32x128xbf16>
    %794 = arith.mulf %791, %791 : vector<32x128xbf16>
    %795 = arith.mulf %794, %791 : vector<32x128xbf16>
    %cst_365 = arith.constant 4.000000e+00 : bf16
    %796 = vector.broadcast %cst_365 : bf16 to vector<32x128xbf16>
    %797 = arith.mulf %796, %795 : vector<32x128xbf16>
    %798 = arith.subf %793, %797 : vector<32x128xbf16>
    %cst_366 = arith.constant 1.669920e-01 : bf16
    %799 = vector.broadcast %cst_366 : bf16 to vector<32x128xbf16>
    %800 = arith.mulf %798, %799 : vector<32x128xbf16>
    %c1_367 = arith.constant 1 : index
    %c160_368 = arith.constant 160 : index
    %c0_369 = arith.constant 0 : index
    %801 = vector.load %arg4[%c1_367, %c160_368, %c0_369] : memref<2x288x128xbf16, #tpu.memory_space<vmem>>, vector<1x32x128xbf16>
    %802 = vector.shape_cast %801 : vector<1x32x128xbf16> to vector<32x128xbf16>
    %803 = vector.shape_cast %800 : vector<32x128xbf16> to vector<1x32x128xbf16>
    tpu.vector_store %arg4[%c1_367, %c160_368, %c0_369], %803 {strides = array<i32>} : memref<2x288x128xbf16, #tpu.memory_space<vmem>>, vector<1x32x128xbf16>,
    %cst_370 = arith.constant 5.000000e+00 : bf16
    %804 = vector.broadcast %cst_370 : bf16 to vector<32x128xbf16>
    %805 = arith.subf %678, %804 : vector<32x128xbf16>
    %cst_371 = arith.constant 2.000000e+00 : bf16
    %806 = vector.broadcast %cst_371 : bf16 to vector<32x128xbf16>
    %807 = arith.subf %805, %806 : vector<32x128xbf16>
    %808 = math.absf %807 : vector<32x128xbf16>
    %cst_372 = arith.constant 2.000000e+00 : bf16
    %809 = vector.broadcast %cst_372 : bf16 to vector<32x128xbf16>
    %810 = arith.subf %809, %808 : vector<32x128xbf16>
    %cst_373 = arith.constant 0.000000e+00 : bf16
    %811 = vector.broadcast %cst_373 : bf16 to vector<32x128xbf16>
    %812 = arith.maximumf %810, %811 : vector<32x128xbf16>
    %cst_374 = arith.constant 1.000000e+00 : bf16
    %813 = vector.broadcast %cst_374 : bf16 to vector<32x128xbf16>
    %814 = arith.subf %813, %808 : vector<32x128xbf16>
    %cst_375 = arith.constant 0.000000e+00 : bf16
    %815 = vector.broadcast %cst_375 : bf16 to vector<32x128xbf16>
    %816 = arith.maximumf %814, %815 : vector<32x128xbf16>
    %817 = arith.mulf %812, %812 : vector<32x128xbf16>
    %818 = arith.mulf %817, %812 : vector<32x128xbf16>
    %819 = arith.mulf %816, %816 : vector<32x128xbf16>
    %820 = arith.mulf %819, %816 : vector<32x128xbf16>
    %cst_376 = arith.constant 4.000000e+00 : bf16
    %821 = vector.broadcast %cst_376 : bf16 to vector<32x128xbf16>
    %822 = arith.mulf %821, %820 : vector<32x128xbf16>
    %823 = arith.subf %818, %822 : vector<32x128xbf16>
    %cst_377 = arith.constant 1.669920e-01 : bf16
    %824 = vector.broadcast %cst_377 : bf16 to vector<32x128xbf16>
    %825 = arith.mulf %823, %824 : vector<32x128xbf16>
    %c1_378 = arith.constant 1 : index
    %c192_379 = arith.constant 192 : index
    %c0_380 = arith.constant 0 : index
    %826 = vector.load %arg4[%c1_378, %c192_379, %c0_380] : memref<2x288x128xbf16, #tpu.memory_space<vmem>>, vector<1x32x128xbf16>
    %827 = vector.shape_cast %826 : vector<1x32x128xbf16> to vector<32x128xbf16>
    %828 = vector.shape_cast %825 : vector<32x128xbf16> to vector<1x32x128xbf16>
    tpu.vector_store %arg4[%c1_378, %c192_379, %c0_380], %828 {strides = array<i32>} : memref<2x288x128xbf16, #tpu.memory_space<vmem>>, vector<1x32x128xbf16>,
    %cst_381 = arith.constant 6.000000e+00 : bf16
    %829 = vector.broadcast %cst_381 : bf16 to vector<32x128xbf16>
    %830 = arith.subf %678, %829 : vector<32x128xbf16>
    %cst_382 = arith.constant 2.000000e+00 : bf16
    %831 = vector.broadcast %cst_382 : bf16 to vector<32x128xbf16>
    %832 = arith.subf %830, %831 : vector<32x128xbf16>
    %833 = math.absf %832 : vector<32x128xbf16>
    %cst_383 = arith.constant 2.000000e+00 : bf16
    %834 = vector.broadcast %cst_383 : bf16 to vector<32x128xbf16>
    %835 = arith.subf %834, %833 : vector<32x128xbf16>
    %cst_384 = arith.constant 0.000000e+00 : bf16
    %836 = vector.broadcast %cst_384 : bf16 to vector<32x128xbf16>
    %837 = arith.maximumf %835, %836 : vector<32x128xbf16>
    %cst_385 = arith.constant 1.000000e+00 : bf16
    %838 = vector.broadcast %cst_385 : bf16 to vector<32x128xbf16>
    %839 = arith.subf %838, %833 : vector<32x128xbf16>
    %cst_386 = arith.constant 0.000000e+00 : bf16
    %840 = vector.broadcast %cst_386 : bf16 to vector<32x128xbf16>
    %841 = arith.maximumf %839, %840 : vector<32x128xbf16>
    %842 = arith.mulf %837, %837 : vector<32x128xbf16>
    %843 = arith.mulf %842, %837 : vector<32x128xbf16>
    %844 = arith.mulf %841, %841 : vector<32x128xbf16>
    %845 = arith.mulf %844, %841 : vector<32x128xbf16>
    %cst_387 = arith.constant 4.000000e+00 : bf16
    %846 = vector.broadcast %cst_387 : bf16 to vector<32x128xbf16>
    %847 = arith.mulf %846, %845 : vector<32x128xbf16>
    %848 = arith.subf %843, %847 : vector<32x128xbf16>
    %cst_388 = arith.constant 1.669920e-01 : bf16
    %849 = vector.broadcast %cst_388 : bf16 to vector<32x128xbf16>
    %850 = arith.mulf %848, %849 : vector<32x128xbf16>
    %c1_389 = arith.constant 1 : index
    %c224_390 = arith.constant 224 : index
    %c0_391 = arith.constant 0 : index
    %851 = vector.load %arg4[%c1_389, %c224_390, %c0_391] : memref<2x288x128xbf16, #tpu.memory_space<vmem>>, vector<1x32x128xbf16>
    %852 = vector.shape_cast %851 : vector<1x32x128xbf16> to vector<32x128xbf16>
    %853 = vector.shape_cast %850 : vector<32x128xbf16> to vector<1x32x128xbf16>
    tpu.vector_store %arg4[%c1_389, %c224_390, %c0_391], %853 {strides = array<i32>} : memref<2x288x128xbf16, #tpu.memory_space<vmem>>, vector<1x32x128xbf16>,
    %cst_392 = arith.constant 7.000000e+00 : bf16
    %854 = vector.broadcast %cst_392 : bf16 to vector<32x128xbf16>
    %855 = arith.subf %678, %854 : vector<32x128xbf16>
    %cst_393 = arith.constant 2.000000e+00 : bf16
    %856 = vector.broadcast %cst_393 : bf16 to vector<32x128xbf16>
    %857 = arith.subf %855, %856 : vector<32x128xbf16>
    %858 = math.absf %857 : vector<32x128xbf16>
    %cst_394 = arith.constant 2.000000e+00 : bf16
    %859 = vector.broadcast %cst_394 : bf16 to vector<32x128xbf16>
    %860 = arith.subf %859, %858 : vector<32x128xbf16>
    %cst_395 = arith.constant 0.000000e+00 : bf16
    %861 = vector.broadcast %cst_395 : bf16 to vector<32x128xbf16>
    %862 = arith.maximumf %860, %861 : vector<32x128xbf16>
    %cst_396 = arith.constant 1.000000e+00 : bf16
    %863 = vector.broadcast %cst_396 : bf16 to vector<32x128xbf16>
    %864 = arith.subf %863, %858 : vector<32x128xbf16>
    %cst_397 = arith.constant 0.000000e+00 : bf16
    %865 = vector.broadcast %cst_397 : bf16 to vector<32x128xbf16>
    %866 = arith.maximumf %864, %865 : vector<32x128xbf16>
    %867 = arith.mulf %862, %862 : vector<32x128xbf16>
    %868 = arith.mulf %867, %862 : vector<32x128xbf16>
    %869 = arith.mulf %866, %866 : vector<32x128xbf16>
    %870 = arith.mulf %869, %866 : vector<32x128xbf16>
    %cst_398 = arith.constant 4.000000e+00 : bf16
    %871 = vector.broadcast %cst_398 : bf16 to vector<32x128xbf16>
    %872 = arith.mulf %871, %870 : vector<32x128xbf16>
    %873 = arith.subf %868, %872 : vector<32x128xbf16>
    %cst_399 = arith.constant 1.669920e-01 : bf16
    %874 = vector.broadcast %cst_399 : bf16 to vector<32x128xbf16>
    %875 = arith.mulf %873, %874 : vector<32x128xbf16>
    %c1_400 = arith.constant 1 : index
    %c256_401 = arith.constant 256 : index
    %c0_402 = arith.constant 0 : index
    %876 = vector.load %arg4[%c1_400, %c256_401, %c0_402] : memref<2x288x128xbf16, #tpu.memory_space<vmem>>, vector<1x32x128xbf16>
    %877 = vector.shape_cast %876 : vector<1x32x128xbf16> to vector<32x128xbf16>
    %878 = vector.shape_cast %875 : vector<32x128xbf16> to vector<1x32x128xbf16>
    tpu.vector_store %arg4[%c1_400, %c256_401, %c0_402], %878 {strides = array<i32>} : memref<2x288x128xbf16, #tpu.memory_space<vmem>>, vector<1x32x128xbf16>,
    %c0_403 = arith.constant 0 : index
    %c0_404 = arith.constant 0 : index
    %879 = vector.load %arg2[%c0_403, %c0_404] : memref<16x288xbf16, #tpu.memory_space<vmem>>, vector<16x288xbf16>
    %c1_405 = arith.constant 1 : index
    %c0_406 = arith.constant 0 : index
    %c0_407 = arith.constant 0 : index
    %880 = vector.load %arg4[%c1_405, %c0_406, %c0_407] : memref<2x288x128xbf16, #tpu.memory_space<vmem>>, vector<1x288x128xbf16>
    %881 = vector.shape_cast %880 : vector<1x288x128xbf16> to vector<288x128xbf16>
    %cst_408 = arith.constant dense<0.000000e+00> : vector<16x128xf32>
    %882 = tpu.matmul %879, %881, %cst_408 {dimension_numbers = #tpu.dot_dimension_numbers<[1], [0], [0], [1], [0, 0, 1, 1], [], []>} : vector<16x288xbf16>, vector<288x128xbf16>, vector<16x128xf32> -> vector<16x128xf32>
    %c0_409 = arith.constant 0 : index
    %c0_410 = arith.constant 0 : index
    %883 = vector.load %arg3[%c0_409, %c0_410] : memref<16x128xf32, #tpu.memory_space<vmem>>, vector<16x128xf32>
    %884 = arith.maximumf %883, %882 : vector<16x128xf32>
    %c0_411 = arith.constant 0 : index
    %c0_412 = arith.constant 0 : index
    %885 = vector.load %arg3[%c0_411, %c0_412] : memref<16x128xf32, #tpu.memory_space<vmem>>, vector<16x128xf32>
    tpu.vector_store %arg3[%c0_411, %c0_412], %884 {strides = array<i32>} : memref<16x128xf32, #tpu.memory_space<vmem>>, vector<16x128xf32>,
    return
  }
  func.func @transform_0(%arg0: i32) -> (i32, i32, i32) {
    %c0_i32 = arith.constant 0 : i32
    %c0_i32_0 = arith.constant 0 : i32
    %c0_i32_1 = arith.constant 0 : i32
    return %c0_i32, %c0_i32_0, %arg0 : i32, i32, i32
  }
  func.func @transform_1(%arg0: i32) -> (i32, i32) {
    %c0_i32 = arith.constant 0 : i32
    %c0_i32_0 = arith.constant 0 : i32
    %c0_i32_1 = arith.constant 0 : i32
    return %c0_i32, %c0_i32_0 : i32, i32
  }
  func.func @transform_2(%arg0: i32) -> (i32, i32) {
    %c0_i32 = arith.constant 0 : i32
    %c0_i32_0 = arith.constant 0 : i32
    return %c0_i32, %arg0 : i32, i32
  }
}

</mosaic_0001>

<llo_original>
// kernel: tpu_custom_call.1
$region0: #{tpu_custom_call.1}
  #allocation0 [shape = 'u32[]', space=smem, size = 0x4, offset = 0x4, fixed_abs, tag = 'smem constant byte address 0x4 - core index']
  #allocation1 [shape = 'u32[144,128]{1,0:T(1,128)}', space=vmem, size = 0x12000, scoped, tag = 'internal scratch']
  #allocation2 [shape = 'bf16[2,288,128]{2,1,0:T(16,128)(2,1)}', space=vmem, size = 0x24000, scoped, tag = 'scratch operand']
  %s0 = inlined_call_operand.hbm [shape: bf16[4,32,128], index: 0, kind: input, shape index: {}]
  %s1 = inlined_call_operand.hbm [shape: bf16[16,288], index: 1, kind: input, shape index: {}]
  %s2 = inlined_call_operand.hbm [shape: f32[16,128], index: 2, kind: output, shape index: {}]
  %s3 = sld [smem:[#allocation0]]
  $region26: #{tpu_custom_call.1} parent=0
    _
  %s5 = ssub.s32 1, %s3
  %s6 = scalar_select 0, %s5, %s3
  $region1: #{tpu_custom_call.1} parent=0
    #allocation3 [shape = 'u8[32768]{0}', space=vmem, size = 0x8000, scoped, tag = 'input window, operand 0, single buffered']
    #allocation4 [shape = 's32[1]{0}', space=sflag, size = 0x4, scoped, tag = 'scoped memory for tpu_custom_call.1']
    #allocation5 [shape = 's32[1]{0}', space=sflag, size = 0x4, scoped, tag = 'scoped memory for tpu_custom_call.1']
    #allocation6 [shape = 'u8[12288]{0}', space=vmem, size = 0x3000, scoped, tag = 'input window, operand 1, single buffered']
    #allocation7 [shape = 's32[1]{0}', space=sflag, size = 0x4, scoped, tag = 'scoped memory for tpu_custom_call.1']
    #allocation8 [shape = 'u8[8192]{0}', space=vmem, size = 0x2000, scoped, tag = 'output window, operand 0, single buffered']
    %7 = vsyncpa [#allocation4], 0
    %8 = vsyncpa [#allocation7], 0
    %9 = vsyncpa [#allocation5], 0
    // Predicated region
    $region2: #{tpu_custom_call.1} parent=1 // pred_check
      _
    $region3: #{tpu_custom_call.1} parent=1 // pred_check_branch
      %11 = sbr.rel (0) target = $region5
    $region4: #{tpu_custom_call.1} parent=1 // pred_region
      %s13 = ssub.s32 1024, 1024
      %14 = vsyncadd [#allocation4], %s13
      %s15 = sshll.u32 [#allocation3], 4
      %s16 = int_to_ptr.vmem [resolvable:$true] %s15
      %21 = dma.hbm_to_vmem [thread:$0]  %s0, 1024, %s16, [#allocation4], 64, 64, 4
    $region5: #{tpu_custom_call.1} parent=1 // pred_fallthru
      _
    // Predicated region
    $region6: #{tpu_custom_call.1} parent=1 // pred_check
      _
    $region7: #{tpu_custom_call.1} parent=1 // pred_check_branch
      %23 = sbr.rel (0) target = $region9
    $region8: #{tpu_custom_call.1} parent=1 // pred_region
      %s25 = ssub.s32 384, 384
      %26 = vsyncadd [#allocation7], %s25
      %s27 = sshll.u32 [#allocation6], 4
      %s28 = int_to_ptr.vmem [resolvable:$true] %s27
      %33 = dma.hbm_to_vmem [thread:$0]  %s1, 384, %s28, [#allocation7], 192, 192, 12
    $region9: #{tpu_custom_call.1} parent=1 // pred_fallthru
      _
    // Predicated region
    $region10: #{tpu_custom_call.1} parent=1 // pred_check
      _
    $region11: #{tpu_custom_call.1} parent=1 // pred_check_branch
      %35 = sbr.rel (0) target = $region13
    $region12: #{tpu_custom_call.1} parent=1 // pred_region
      %36 = dma.done [#allocation4], 1024
    $region13: #{tpu_custom_call.1} parent=1 // pred_fallthru
      _
    // Predicated region
    $region14: #{tpu_custom_call.1} parent=1 // pred_check
      _
    $region15: #{tpu_custom_call.1} parent=1 // pred_check_branch
      %38 = sbr.rel (0) target = $region17
    $region16: #{tpu_custom_call.1} parent=1 // pred_region
      %39 = dma.done [#allocation7], 384
    $region17: #{tpu_custom_call.1} parent=1 // pred_fallthru
      _
    %v51 = vld [vmem:[#allocation3] sm:$0xf]
    %v52 = vld [vmem:[#allocation3 + $0x4] sm:$0xf]
    %v53 = vld [vmem:[#allocation3 + $0x8] sm:$0xf]
    %v54 = vld [vmem:[#allocation3 + $0xc] sm:$0xf]
    %v55 = vxor.u32 %v51, 2147516416
    %v56 = vxor.u32 %v52, 2147516416
    %v57 = vxor.u32 %v53, 2147516416
    %v58 = vxor.u32 %v54, 2147516416
    %v60 = vmul.bf16 %v55, 1069105081
    %v61 = vpow.bf16.pop %v60
    %v63 = vmul.bf16 %v56, 1069105081
    %v64 = vpow.bf16.pop %v63
    %v66 = vmul.bf16 %v57, 1069105081
    %v67 = vpow.bf16.pop %v66
    %v69 = vmul.bf16 %v58, 1069105081
    %v70 = vpow.bf16.pop %v69
    %v71 = vadd.bf16 %v61, 1065369472
    %v72 = vadd.bf16 %v64, 1065369472
    %v73 = vadd.bf16 %v67, 1065369472
    %v74 = vadd.bf16 %v70, 1065369472
    %v75 = vrcp.bf16.pop %v71
    %v76 = vmul.bf16 1065369472, %v75
    %v77 = vrcp.bf16.pop %v72
    %v78 = vmul.bf16 1065369472, %v77
    %v79 = vrcp.bf16.pop %v73
    %v80 = vmul.bf16 1065369472, %v79
    %v81 = vrcp.bf16.pop %v74
    %v82 = vmul.bf16 1065369472, %v81
    %v83 = vmul.bf16 %v51, %v76
    %v84 = vmul.bf16 %v52, %v78
    %v85 = vmul.bf16 %v53, %v80
    %v86 = vmul.bf16 %v54, %v82
    %v91 = vunpack.c.l.b16 %v83
    %v92 = vunpack.c.l.b16 %v84
    %v93 = vunpack.c.l.b16 %v85
    %v94 = vunpack.c.l.b16 %v86
    %v95 = vpack.c.b16 %v92, %v91
    %v96 = vpack.c.b16 %v94, %v93
    %99 = vst [vmem:[#allocation2] sm:$0xff] %v95
    %100 = vst [vmem:[#allocation2 + $0x8] sm:$0xff] %v96
    %v101 = vsub.bf16 %v51, 3222126605
    %v102 = vsub.bf16 %v52, 3222126605
    %v103 = vsub.bf16 %v53, 3222126605
    %v104 = vsub.bf16 %v54, 3222126605
    %v105 = vmul.bf16 %v101, 1075855392
    %v106 = vmul.bf16 %v102, 1075855392
    %v107 = vmul.bf16 %v103, 1075855392
    %v108 = vmul.bf16 %v104, 1075855392
    %v109 = vsub.bf16 %v105, 1073758208
    %v110 = vsub.bf16 %v106, 1073758208
    %v111 = vsub.bf16 %v107, 1073758208
    %v112 = vsub.bf16 %v108, 1073758208
    %v113 = vand.u32 2147450879, %v109
    %v114 = vand.u32 2147450879, %v110
    %v115 = vand.u32 2147450879, %v111
    %v116 = vand.u32 2147450879, %v112
    %v117 = vsub.bf16 1073758208, %v113
    %v118 = vsub.bf16 1073758208, %v114
    %v119 = vsub.bf16 1073758208, %v115
    %v120 = vsub.bf16 1073758208, %v116
    %v121 = vmax.bf16 %v117, 0
    %v122 = vmax.bf16 %v118, 0
    %v123 = vmax.bf16 %v119, 0
    %v124 = vmax.bf16 %v120, 0
    %v125 = vsub.bf16 1065369472, %v113
    %v126 = vsub.bf16 1065369472, %v114
    %v127 = vsub.bf16 1065369472, %v115
    %v128 = vsub.bf16 1065369472, %v116
    %v129 = vmax.bf16 %v125, 0
    %v130 = vmax.bf16 %v126, 0
    %v131 = vmax.bf16 %v127, 0
    %v132 = vmax.bf16 %v128, 0
    %v133 = vmul.bf16 %v121, %v121
    %v134 = vmul.bf16 %v122, %v122
    %v135 = vmul.bf16 %v123, %v123
    %v136 = vmul.bf16 %v124, %v124
    %v137 = vmul.bf16 %v133, %v121
    %v138 = vmul.bf16 %v134, %v122
    %v139 = vmul.bf16 %v135, %v123
    %v140 = vmul.bf16 %v136, %v124
    %v141 = vmul.bf16 %v129, %v129
    %v142 = vmul.bf16 %v130, %v130
    %v143 = vmul.bf16 %v131, %v131
    %v144 = vmul.bf16 %v132, %v132
    %v145 = vmul.bf16 %v141, %v129
    %v146 = vmul.bf16 %v142, %v130
    %v147 = vmul.bf16 %v143, %v131
    %v148 = vmul.bf16 %v144, %v132
    %v149 = vmul.bf16 %v145, 1082146944
    %v150 = vmul.bf16 %v146, 1082146944
    %v151 = vmul.bf16 %v147, 1082146944
    %v152 = vmul.bf16 %v148, 1082146944
    %v153 = vsub.bf16 %v137, %v149
    %v154 = vsub.bf16 %v138, %v150
    %v155 = vsub.bf16 %v139, %v151
    %v156 = vsub.bf16 %v140, %v152
    %v157 = vmul.bf16 %v153, 1043021355
    %v158 = vmul.bf16 %v154, 1043021355
    %v159 = vmul.bf16 %v155, 1043021355
    %v160 = vmul.bf16 %v156, 1043021355
    %v165 = vunpack.c.l.b16 %v157
    %v166 = vunpack.c.l.b16 %v158
    %v167 = vunpack.c.l.b16 %v159
    %v168 = vunpack.c.l.b16 %v160
    %v169 = vpack.c.b16 %v166, %v165
    %v170 = vpack.c.b16 %v168, %v167
    %173 = vst [vmem:[#allocation2 + $0x10] sm:$0xff] %v169
    %174 = vst [vmem:[#allocation2 + $0x18] sm:$0xff] %v170
    %v175 = vsub.bf16 %v105, 1065369472
    %v176 = vsub.bf16 %v106, 1065369472
    %v177 = vsub.bf16 %v107, 1065369472
    %v178 = vsub.bf16 %v108, 1065369472
    %v179 = vsub.bf16 %v175, 1073758208
    %v180 = vsub.bf16 %v176, 1073758208
    %v181 = vsub.bf16 %v177, 1073758208
    %v182 = vsub.bf16 %v178, 1073758208
    %v183 = vand.u32 2147450879, %v179
    %v184 = vand.u32 2147450879, %v180
    %v185 = vand.u32 2147450879, %v181
    %v186 = vand.u32 2147450879, %v182
    %v187 = vsub.bf16 1073758208, %v183
    %v188 = vsub.bf16 1073758208, %v184
    %v189 = vsub.bf16 1073758208, %v185
    %v190 = vsub.bf16 1073758208, %v186
    %v191 = vmax.bf16 %v187, 0
    %v192 = vmax.bf16 %v188, 0
    %v193 = vmax.bf16 %v189, 0
    %v194 = vmax.bf16 %v190, 0
    %v195 = vsub.bf16 1065369472, %v183
    %v196 = vsub.bf16 1065369472, %v184
    %v197 = vsub.bf16 1065369472, %v185
    %v198 = vsub.bf16 1065369472, %v186
    %v199 = vmax.bf16 %v195, 0
    %v200 = vmax.bf16 %v196, 0
    %v201 = vmax.bf16 %v197, 0
    %v202 = vmax.bf16 %v198, 0
    %v203 = vmul.bf16 %v191, %v191
    %v204 = vmul.bf16 %v192, %v192
    %v205 = vmul.bf16 %v193, %v193
    %v206 = vmul.bf16 %v194, %v194
    %v207 = vmul.bf16 %v203, %v191
    %v208 = vmul.bf16 %v204, %v192
    %v209 = vmul.bf16 %v205, %v193
    %v210 = vmul.bf16 %v206, %v194
    %v211 = vmul.bf16 %v199, %v199
    %v212 = vmul.bf16 %v200, %v200
    %v213 = vmul.bf16 %v201, %v201
    %v214 = vmul.bf16 %v202, %v202
    %v215 = vmul.bf16 %v211, %v199
    %v216 = vmul.bf16 %v212, %v200
    %v217 = vmul.bf16 %v213, %v201
    %v218 = vmul.bf16 %v214, %v202
    %v219 = vmul.bf16 %v215, 1082146944
    %v220 = vmul.bf16 %v216, 1082146944
    %v221 = vmul.bf16 %v217, 1082146944
    %v222 = vmul.bf16 %v218, 1082146944
    %v223 = vsub.bf16 %v207, %v219
    %v224 = vsub.bf16 %v208, %v220
    %v225 = vsub.bf16 %v209, %v221
    %v226 = vsub.bf16 %v210, %v222
    %v227 = vmul.bf16 %v223, 1043021355
    %v228 = vmul.bf16 %v224, 1043021355
    %v229 = vmul.bf16 %v225, 1043021355
    %v230 = vmul.bf16 %v226, 1043021355
    %v235 = vunpack.c.l.b16 %v227
    %v236 = vunpack.c.l.b16 %v228
    %v237 = vunpack.c.l.b16 %v229
    %v238 = vunpack.c.l.b16 %v230
    %v239 = vpack.c.b16 %v236, %v235
    %v240 = vpack.c.b16 %v238, %v237
    %243 = vst [vmem:[#allocation2 + $0x20] sm:$0xff] %v239
    %244 = vst [vmem:[#allocation2 + $0x28] sm:$0xff] %v240
    %v245 = vsub.bf16 %v109, 1073758208
    %v246 = vsub.bf16 %v110, 1073758208
    %v247 = vsub.bf16 %v111, 1073758208
    %v248 = vsub.bf16 %v112, 1073758208
    %v249 = vand.u32 2147450879, %v245
    %v250 = vand.u32 2147450879, %v246
    %v251 = vand.u32 2147450879, %v247
    %v252 = vand.u32 2147450879, %v248
    %v253 = vsub.bf16 1073758208, %v249
    %v254 = vsub.bf16 1073758208, %v250
    %v255 = vsub.bf16 1073758208, %v251
    %v256 = vsub.bf16 1073758208, %v252
    %v257 = vmax.bf16 %v253, 0
    %v258 = vmax.bf16 %v254, 0
    %v259 = vmax.bf16 %v255, 0
    %v260 = vmax.bf16 %v256, 0
    %v261 = vsub.bf16 1065369472, %v249
    %v262 = vsub.bf16 1065369472, %v250
    %v263 = vsub.bf16 1065369472, %v251
    %v264 = vsub.bf16 1065369472, %v252
    %v265 = vmax.bf16 %v261, 0
    %v266 = vmax.bf16 %v262, 0
    %v267 = vmax.bf16 %v263, 0
    %v268 = vmax.bf16 %v264, 0
    %v269 = vmul.bf16 %v257, %v257
    %v270 = vmul.bf16 %v258, %v258
    %v271 = vmul.bf16 %v259, %v259
    %v272 = vmul.bf16 %v260, %v260
    %v273 = vmul.bf16 %v269, %v257
    %v274 = vmul.bf16 %v270, %v258
    %v275 = vmul.bf16 %v271, %v259
    %v276 = vmul.bf16 %v272, %v260
    %v277 = vmul.bf16 %v265, %v265
    %v278 = vmul.bf16 %v266, %v266
    %v279 = vmul.bf16 %v267, %v267
    %v280 = vmul.bf16 %v268, %v268
    %v281 = vmul.bf16 %v277, %v265
    %v282 = vmul.bf16 %v278, %v266
    %v283 = vmul.bf16 %v279, %v267
    %v284 = vmul.bf16 %v280, %v268
    %v285 = vmul.bf16 %v281, 1082146944
    %v286 = vmul.bf16 %v282, 1082146944
    %v287 = vmul.bf16 %v283, 1082146944
    %v288 = vmul.bf16 %v284, 1082146944
    %v289 = vsub.bf16 %v273, %v285
    %v290 = vsub.bf16 %v274, %v286
    %v291 = vsub.bf16 %v275, %v287
    %v292 = vsub.bf16 %v276, %v288
    %v293 = vmul.bf16 %v289, 1043021355
    %v294 = vmul.bf16 %v290, 1043021355
    %v295 = vmul.bf16 %v291, 1043021355
    %v296 = vmul.bf16 %v292, 1043021355
    %v301 = vunpack.c.l.b16 %v293
    %v302 = vunpack.c.l.b16 %v294
    %v303 = vunpack.c.l.b16 %v295
    %v304 = vunpack.c.l.b16 %v296
    %v305 = vpack.c.b16 %v302, %v301
    %v306 = vpack.c.b16 %v304, %v303
    %309 = vst [vmem:[#allocation2 + $0x30] sm:$0xff] %v305
    %310 = vst [vmem:[#allocation2 + $0x38] sm:$0xff] %v306
    %v311 = vsub.bf16 %v105, 1077952576
    %v312 = vsub.bf16 %v106, 1077952576
    %v313 = vsub.bf16 %v107, 1077952576
    %v314 = vsub.bf16 %v108, 1077952576
    %v315 = vsub.bf16 %v311, 1073758208
    %v316 = vsub.bf16 %v312, 1073758208
    %v317 = vsub.bf16 %v313, 1073758208
    %v318 = vsub.bf16 %v314, 1073758208
    %v319 = vand.u32 2147450879, %v315
    %v320 = vand.u32 2147450879, %v316
    %v321 = vand.u32 2147450879, %v317
    %v322 = vand.u32 2147450879, %v318
    %v323 = vsub.bf16 1073758208, %v319
    %v324 = vsub.bf16 1073758208, %v320
    %v325 = vsub.bf16 1073758208, %v321
    %v326 = vsub.bf16 1073758208, %v322
    %v327 = vmax.bf16 %v323, 0
    %v328 = vmax.bf16 %v324, 0
    %v329 = vmax.bf16 %v325, 0
    %v330 = vmax.bf16 %v326, 0
    %v331 = vsub.bf16 1065369472, %v319
    %v332 = vsub.bf16 1065369472, %v320
    %v333 = vsub.bf16 1065369472, %v321
    %v334 = vsub.bf16 1065369472, %v322
    %v335 = vmax.bf16 %v331, 0
    %v336 = vmax.bf16 %v332, 0
    %v337 = vmax.bf16 %v333, 0
    %v338 = vmax.bf16 %v334, 0
    %v339 = vmul.bf16 %v327, %v327
    %v340 = vmul.bf16 %v328, %v328
    %v341 = vmul.bf16 %v329, %v329
    %v342 = vmul.bf16 %v330, %v330
    %v343 = vmul.bf16 %v339, %v327
    %v344 = vmul.bf16 %v340, %v328
    %v345 = vmul.bf16 %v341, %v329
    %v346 = vmul.bf16 %v342, %v330
    %v347 = vmul.bf16 %v335, %v335
    %v348 = vmul.bf16 %v336, %v336
    %v349 = vmul.bf16 %v337, %v337
    %v350 = vmul.bf16 %v338, %v338
    %v351 = vmul.bf16 %v347, %v335
    %v352 = vmul.bf16 %v348, %v336
    %v353 = vmul.bf16 %v349, %v337
    %v354 = vmul.bf16 %v350, %v338
    %v355 = vmul.bf16 %v351, 1082146944
    %v356 = vmul.bf16 %v352, 1082146944
    %v357 = vmul.bf16 %v353, 1082146944
    %v358 = vmul.bf16 %v354, 1082146944
    %v359 = vsub.bf16 %v343, %v355
    %v360 = vsub.bf16 %v344, %v356
    %v361 = vsub.bf16 %v345, %v357
    %v362 = vsub.bf16 %v346, %v358
    %v363 = vmul.bf16 %v359, 1043021355
    %v364 = vmul.bf16 %v360, 1043021355
    %v365 = vmul.bf16 %v361, 1043021355
    %v366 = vmul.bf16 %v362, 1043021355
    %v371 = vunpack.c.l.b16 %v363
    %v372 = vunpack.c.l.b16 %v364
    %v373 = vunpack.c.l.b16 %v365
    %v374 = vunpack.c.l.b16 %v366
    %v375 = vpack.c.b16 %v372, %v371
    %v376 = vpack.c.b16 %v374, %v373
    %379 = vst [vmem:[#allocation2 + $0x40] sm:$0xff] %v375
    %380 = vst [vmem:[#allocation2 + $0x48] sm:$0xff] %v376
    %v381 = vsub.bf16 %v105, 1082146944
    %v382 = vsub.bf16 %v106, 1082146944
    %v383 = vsub.bf16 %v107, 1082146944
    %v384 = vsub.bf16 %v108, 1082146944
    %v385 = vsub.bf16 %v381, 1073758208
    %v386 = vsub.bf16 %v382, 1073758208
    %v387 = vsub.bf16 %v383, 1073758208
    %v388 = vsub.bf16 %v384, 1073758208
    %v389 = vand.u32 2147450879, %v385
    %v390 = vand.u32 2147450879, %v386
    %v391 = vand.u32 2147450879, %v387
    %v392 = vand.u32 2147450879, %v388
    %v393 = vsub.bf16 1073758208, %v389
    %v394 = vsub.bf16 1073758208, %v390
    %v395 = vsub.bf16 1073758208, %v391
    %v396 = vsub.bf16 1073758208, %v392
    %v397 = vmax.bf16 %v393, 0
    %v398 = vmax.bf16 %v394, 0
    %v399 = vmax.bf16 %v395, 0
    %v400 = vmax.bf16 %v396, 0
    %v401 = vsub.bf16 1065369472, %v389
    %v402 = vsub.bf16 1065369472, %v390
    %v403 = vsub.bf16 1065369472, %v391
    %v404 = vsub.bf16 1065369472, %v392
    %v405 = vmax.bf16 %v401, 0
    %v406 = vmax.bf16 %v402, 0
    %v407 = vmax.bf16 %v403, 0
    %v408 = vmax.bf16 %v404, 0
    %v409 = vmul.bf16 %v397, %v397
    %v410 = vmul.bf16 %v398, %v398
    %v411 = vmul.bf16 %v399, %v399
    %v412 = vmul.bf16 %v400, %v400
    %v413 = vmul.bf16 %v409, %v397
    %v414 = vmul.bf16 %v410, %v398
    %v415 = vmul.bf16 %v411, %v399
    %v416 = vmul.bf16 %v412, %v400
    %v417 = vmul.bf16 %v405, %v405
    %v418 = vmul.bf16 %v406, %v406
    %v419 = vmul.bf16 %v407, %v407
    %v420 = vmul.bf16 %v408, %v408
    %v421 = vmul.bf16 %v417, %v405
    %v422 = vmul.bf16 %v418, %v406
    %v423 = vmul.bf16 %v419, %v407
    %v424 = vmul.bf16 %v420, %v408
    %v425 = vmul.bf16 %v421, 1082146944
    %v426 = vmul.bf16 %v422, 1082146944
    %v427 = vmul.bf16 %v423, 1082146944
    %v428 = vmul.bf16 %v424, 1082146944
    %v429 = vsub.bf16 %v413, %v425
    %v430 = vsub.bf16 %v414, %v426
    %v431 = vsub.bf16 %v415, %v427
    %v432 = vsub.bf16 %v416, %v428
    %v433 = vmul.bf16 %v429, 1043021355
    %v434 = vmul.bf16 %v430, 1043021355
    %v435 = vmul.bf16 %v431, 1043021355
    %v436 = vmul.bf16 %v432, 1043021355
    %v441 = vunpack.c.l.b16 %v433
    %v442 = vunpack.c.l.b16 %v434
    %v443 = vunpack.c.l.b16 %v435
    %v444 = vunpack.c.l.b16 %v436
    %v445 = vpack.c.b16 %v442, %v441
    %v446 = vpack.c.b16 %v444, %v443
    %449 = vst [vmem:[#allocation2 + $0x50] sm:$0xff] %v445
    %450 = vst [vmem:[#allocation2 + $0x58] sm:$0xff] %v446
    %v451 = vsub.bf16 %v105, 1084244128
    %v452 = vsub.bf16 %v106, 1084244128
    %v453 = vsub.bf16 %v107, 1084244128
    %v454 = vsub.bf16 %v108, 1084244128
    %v455 = vsub.bf16 %v451, 1073758208
    %v456 = vsub.bf16 %v452, 1073758208
    %v457 = vsub.bf16 %v453, 1073758208
    %v458 = vsub.bf16 %v454, 1073758208
    %v459 = vand.u32 2147450879, %v455
    %v460 = vand.u32 2147450879, %v456
    %v461 = vand.u32 2147450879, %v457
    %v462 = vand.u32 2147450879, %v458
    %v463 = vsub.bf16 1073758208, %v459
    %v464 = vsub.bf16 1073758208, %v460
    %v465 = vsub.bf16 1073758208, %v461
    %v466 = vsub.bf16 1073758208, %v462
    %v467 = vmax.bf16 %v463, 0
    %v468 = vmax.bf16 %v464, 0
    %v469 = vmax.bf16 %v465, 0
    %v470 = vmax.bf16 %v466, 0
    %v471 = vsub.bf16 1065369472, %v459
    %v472 = vsub.bf16 1065369472, %v460
    %v473 = vsub.bf16 1065369472, %v461
    %v474 = vsub.bf16 1065369472, %v462
    %v475 = vmax.bf16 %v471, 0
    %v476 = vmax.bf16 %v472, 0
    %v477 = vmax.bf16 %v473, 0
    %v478 = vmax.bf16 %v474, 0
    %v479 = vmul.bf16 %v467, %v467
    %v480 = vmul.bf16 %v468, %v468
    %v481 = vmul.bf16 %v469, %v469
    %v482 = vmul.bf16 %v470, %v470
    %v483 = vmul.bf16 %v479, %v467
    %v484 = vmul.bf16 %v480, %v468
    %v485 = vmul.bf16 %v481, %v469
    %v486 = vmul.bf16 %v482, %v470
    %v487 = vmul.bf16 %v475, %v475
    %v488 = vmul.bf16 %v476, %v476
    %v489 = vmul.bf16 %v477, %v477
    %v490 = vmul.bf16 %v478, %v478
    %v491 = vmul.bf16 %v487, %v475
    %v492 = vmul.bf16 %v488, %v476
    %v493 = vmul.bf16 %v489, %v477
    %v494 = vmul.bf16 %v490, %v478
    %v495 = vmul.bf16 %v491, 1082146944
    %v496 = vmul.bf16 %v492, 1082146944
    %v497 = vmul.bf16 %v493, 1082146944
    %v498 = vmul.bf16 %v494, 1082146944
    %v499 = vsub.bf16 %v483, %v495
    %v500 = vsub.bf16 %v484, %v496
    %v501 = vsub.bf16 %v485, %v497
    %v502 = vsub.bf16 %v486, %v498
    %v503 = vmul.bf16 %v499, 1043021355
    %v504 = vmul.bf16 %v500, 1043021355
    %v505 = vmul.bf16 %v501, 1043021355
    %v506 = vmul.bf16 %v502, 1043021355
    %v511 = vunpack.c.l.b16 %v503
    %v512 = vunpack.c.l.b16 %v504
    %v513 = vunpack.c.l.b16 %v505
    %v514 = vunpack.c.l.b16 %v506
    %v515 = vpack.c.b16 %v512, %v511
    %v516 = vpack.c.b16 %v514, %v513
    %519 = vst [vmem:[#allocation2 + $0x60] sm:$0xff] %v515
    %520 = vst [vmem:[#allocation2 + $0x68] sm:$0xff] %v516
    %v521 = vsub.bf16 %v105, 1086341312
    %v522 = vsub.bf16 %v106, 1086341312
    %v523 = vsub.bf16 %v107, 1086341312
    %v524 = vsub.bf16 %v108, 1086341312
    %v525 = vsub.bf16 %v521, 1073758208
    %v526 = vsub.bf16 %v522, 1073758208
    %v527 = vsub.bf16 %v523, 1073758208
    %v528 = vsub.bf16 %v524, 1073758208
    %v529 = vand.u32 2147450879, %v525
    %v530 = vand.u32 2147450879, %v526
    %v531 = vand.u32 2147450879, %v527
    %v532 = vand.u32 2147450879, %v528
    %v533 = vsub.bf16 1073758208, %v529
    %v534 = vsub.bf16 1073758208, %v530
    %v535 = vsub.bf16 1073758208, %v531
    %v536 = vsub.bf16 1073758208, %v532
    %v537 = vmax.bf16 %v533, 0
    %v538 = vmax.bf16 %v534, 0
    %v539 = vmax.bf16 %v535, 0
    %v540 = vmax.bf16 %v536, 0
    %v541 = vsub.bf16 1065369472, %v529
    %v542 = vsub.bf16 1065369472, %v530
    %v543 = vsub.bf16 1065369472, %v531
    %v544 = vsub.bf16 1065369472, %v532
    %v545 = vmax.bf16 %v541, 0
    %v546 = vmax.bf16 %v542, 0
    %v547 = vmax.bf16 %v543, 0
    %v548 = vmax.bf16 %v544, 0
    %v549 = vmul.bf16 %v537, %v537
    %v550 = vmul.bf16 %v538, %v538
    %v551 = vmul.bf16 %v539, %v539
    %v552 = vmul.bf16 %v540, %v540
    %v553 = vmul.bf16 %v549, %v537
    %v554 = vmul.bf16 %v550, %v538
    %v555 = vmul.bf16 %v551, %v539
    %v556 = vmul.bf16 %v552, %v540
    %v557 = vmul.bf16 %v545, %v545
    %v558 = vmul.bf16 %v546, %v546
    %v559 = vmul.bf16 %v547, %v547
    %v560 = vmul.bf16 %v548, %v548
    %v561 = vmul.bf16 %v557, %v545
    %v562 = vmul.bf16 %v558, %v546
    %v563 = vmul.bf16 %v559, %v547
    %v564 = vmul.bf16 %v560, %v548
    %v565 = vmul.bf16 %v561, 1082146944
    %v566 = vmul.bf16 %v562, 1082146944
    %v567 = vmul.bf16 %v563, 1082146944
    %v568 = vmul.bf16 %v564, 1082146944
    %v569 = vsub.bf16 %v553, %v565
    %v570 = vsub.bf16 %v554, %v566
    %v571 = vsub.bf16 %v555, %v567
    %v572 = vsub.bf16 %v556, %v568
    %v573 = vmul.bf16 %v569, 1043021355
    %v574 = vmul.bf16 %v570, 1043021355
    %v575 = vmul.bf16 %v571, 1043021355
    %v576 = vmul.bf16 %v572, 1043021355
    %v581 = vunpack.c.l.b16 %v573
    %v582 = vunpack.c.l.b16 %v574
    %v583 = vunpack.c.l.b16 %v575
    %v584 = vunpack.c.l.b16 %v576
    %v585 = vpack.c.b16 %v582, %v581
    %v586 = vpack.c.b16 %v584, %v583
    %589 = vst [vmem:[#allocation2 + $0x70] sm:$0xff] %v585
    %590 = vst [vmem:[#allocation2 + $0x78] sm:$0xff] %v586
    %v591 = vsub.bf16 %v105, 1088438496
    %v592 = vsub.bf16 %v106, 1088438496
    %v593 = vsub.bf16 %v107, 1088438496
    %v594 = vsub.bf16 %v108, 1088438496
    %v595 = vsub.bf16 %v591, 1073758208
    %v596 = vsub.bf16 %v592, 1073758208
    %v597 = vsub.bf16 %v593, 1073758208
    %v598 = vsub.bf16 %v594, 1073758208
    %v599 = vand.u32 2147450879, %v595
    %v600 = vand.u32 2147450879, %v596
    %v601 = vand.u32 2147450879, %v597
    %v602 = vand.u32 2147450879, %v598
    %v603 = vsub.bf16 1073758208, %v599
    %v604 = vsub.bf16 1073758208, %v600
    %v605 = vsub.bf16 1073758208, %v601
    %v606 = vsub.bf16 1073758208, %v602
    %v607 = vmax.bf16 %v603, 0
    %v608 = vmax.bf16 %v604, 0
    %v609 = vmax.bf16 %v605, 0
    %v610 = vmax.bf16 %v606, 0
    %v611 = vsub.bf16 1065369472, %v599
    %v612 = vsub.bf16 1065369472, %v600
    %v613 = vsub.bf16 1065369472, %v601
    %v614 = vsub.bf16 1065369472, %v602
    %v615 = vmax.bf16 %v611, 0
    %v616 = vmax.bf16 %v612, 0
    %v617 = vmax.bf16 %v613, 0
    %v618 = vmax.bf16 %v614, 0
    %v619 = vmul.bf16 %v607, %v607
    %v620 = vmul.bf16 %v608, %v608
    %v621 = vmul.bf16 %v609, %v609
    %v622 = vmul.bf16 %v610, %v610
    %v623 = vmul.bf16 %v619, %v607
    %v624 = vmul.bf16 %v620, %v608
    %v625 = vmul.bf16 %v621, %v609
    %v626 = vmul.bf16 %v622, %v610
    %v627 = vmul.bf16 %v615, %v615
    %v628 = vmul.bf16 %v616, %v616
    %v629 = vmul.bf16 %v617, %v617
    %v630 = vmul.bf16 %v618, %v618
    %v631 = vmul.bf16 %v627, %v615
    %v632 = vmul.bf16 %v628, %v616
    %v633 = vmul.bf16 %v629, %v617
    %v634 = vmul.bf16 %v630, %v618
    %v635 = vmul.bf16 %v631, 1082146944
    %v636 = vmul.bf16 %v632, 1082146944
    %v637 = vmul.bf16 %v633, 1082146944
    %v638 = vmul.bf16 %v634, 1082146944
    %v639 = vsub.bf16 %v623, %v635
    %v640 = vsub.bf16 %v624, %v636
    %v641 = vsub.bf16 %v625, %v637
    %v642 = vsub.bf16 %v626, %v638
    %v643 = vmul.bf16 %v639, 1043021355
    %v644 = vmul.bf16 %v640, 1043021355
    %v645 = vmul.bf16 %v641, 1043021355
    %v646 = vmul.bf16 %v642, 1043021355
    %v651 = vunpack.c.l.b16 %v643
    %v652 = vunpack.c.l.b16 %v644
    %v653 = vunpack.c.l.b16 %v645
    %v654 = vunpack.c.l.b16 %v646
    %v655 = vpack.c.b16 %v652, %v651
    %v656 = vpack.c.b16 %v654, %v653
    %659 = vst [vmem:[#allocation2 + $0x80] sm:$0xff] %v655
    %660 = vst [vmem:[#allocation2 + $0x88] sm:$0xff] %v656
    %v661 = vld [vmem:[#allocation6] sm:$0xff]
    %v662 = vld [vmem:[#allocation6 + $0x8] sm:$0xf]
    %v663 = vld [vmem:[#allocation6 + $0xc] sm:$0xff]
    %v664 = vld [vmem:[#allocation6 + $0x14] sm:$0xf]
    %v665 = vld [vmem:[#allocation2] sm:$0xff]
    %v666 = vld [vmem:[#allocation2 + $0x8] sm:$0xff]
    %v667 = vld [vmem:[#allocation2 + $0x10] sm:$0xff]
    %v668 = vld [vmem:[#allocation2 + $0x18] sm:$0xff]
    %v669 = vld [vmem:[#allocation2 + $0x20] sm:$0xff]
    %v670 = vld [vmem:[#allocation2 + $0x28] sm:$0xff]
    %v671 = vld [vmem:[#allocation2 + $0x30] sm:$0xff]
    %v672 = vld [vmem:[#allocation2 + $0x38] sm:$0xff]
    %v673 = vld [vmem:[#allocation2 + $0x40] sm:$0xff]
    %v674 = vld [vmem:[#allocation2 + $0x48] sm:$0xff]
    %v675 = vld [vmem:[#allocation2 + $0x50] sm:$0xff]
    %v676 = vld [vmem:[#allocation2 + $0x58] sm:$0xff]
    %v677 = vld [vmem:[#allocation2 + $0x60] sm:$0xff]
    %v678 = vld [vmem:[#allocation2 + $0x68] sm:$0xff]
    %v679 = vld [vmem:[#allocation2 + $0x70] sm:$0xff]
    %v680 = vld [vmem:[#allocation2 + $0x78] sm:$0xff]
    %v681 = vld [vmem:[#allocation2 + $0x80] sm:$0xff]
    %v682 = vld [vmem:[#allocation2 + $0x88] sm:$0xff]
    %v687 = vunpack.c.l.b16 %v661
    %v688 = vunpack.c.h.b16 %v661
    %v689 = vunpack.c.l.b16 %v662
    %v690 = vunpack.c.l.b16 %v663
    %v691 = vunpack.c.h.b16 %v663
    %v692 = vunpack.c.l.b16 %v664
    %v693 = vpack.c.b16 %v690, %v687
    %v694 = vpack.c.b16 %v691, %v688
    %v695 = vpack.c.b16 %v692, %v689
    %vm698 = vcmask 261120
    %v700 = vsel %vm698, %v695, 0
    %702 = vmatprep.subr.bf16.mxu0 0
    %703 = vmatpush1.bf16.msra.mxu0 %v665
    %704 = vmatprep.subr.bf16.mxu0 0
    %705 = vmatpush1.bf16.msra.mxu0 %v666
    %706 = vmatprep.subr.bf16.mxu0 0
    %707 = vmatpush1.bf16.msra.mxu0 %v667
    %708 = vmatprep.subr.bf16.mxu0 0
    %709 = vmatpush1.bf16.msra.mxu0 %v668
    %710 = vmatprep.subr.bf16.mxu0 0
    %711 = vmatpush1.bf16.msra.mxu0 %v669
    %712 = vmatprep.subr.bf16.mxu0 0
    %713 = vmatpush1.bf16.msra.mxu0 %v670
    %714 = vmatprep.subr.bf16.mxu0 0
    %715 = vmatpush1.bf16.msra.mxu0 %v671
    %716 = vmatprep.subr.bf16.mxu0 0
    %717 = vmatpush1.bf16.msra.mxu0 %v672
    %718 = vmatprep.subr.bf16.mxu0 0
    %719 = vmatpush1.bf16.msra.mxu0 %v673
    %720 = vmatprep.subr.bf16.mxu0 0
    %721 = vmatpush1.bf16.msra.mxu0 %v674
    %722 = vmatprep.subr.bf16.mxu0 0
    %723 = vmatpush1.bf16.msra.mxu0 %v675
    %724 = vmatprep.subr.bf16.mxu0 0
    %725 = vmatpush1.bf16.msra.mxu0 %v676
    %726 = vmatprep.subr.bf16.mxu0 0
    %727 = vmatpush1.bf16.msra.mxu0 %v677
    %728 = vmatprep.subr.bf16.mxu0 0
    %729 = vmatpush1.bf16.msra.mxu0 %v678
    %730 = vmatprep.subr.bf16.mxu0 0
    %731 = vmatpush1.bf16.msra.mxu0 %v679
    %732 = vmatprep.subr.bf16.mxu0 0
    %733 = vmatpush1.bf16.msra.mxu0 %v680
    %734 = vmatprep.mubr.bf16.mxu0 %v694
    %735 = vmatmul.mubr.bf16.gmra.mrb[0].mxu0 %v693
    %v736 = vpop.f32.mrb[0].mxu0
    %v737 = vadd.f32 0.0, %v736
    %v738 = vpop.f32.mrb[0].mxu0
    %v739 = vpop.f32.mrb[0].mxu0
    %v740 = vadd.f32 0.0, %v739
    %v741 = vpop.f32.mrb[0].mxu0
    %742 = vdwg.mxu0
    %743 = vmatprep.subr.bf16.mxu0 0
    %744 = vmatpush1.bf16.msra.mxu0 %v681
    %745 = vmatprep.subr.bf16.mxu0 0
    %746 = vmatpush1.bf16.msra.mxu0 %v682
    %747 = vmatprep.subr.bf16.mxu0 0
    %748 = vmatpush1.bf16.msra.mxu0 0
    %749 = vmatprep.subr.bf16.mxu0 0
    %750 = vmatpush1.bf16.msra.mxu0 0
    %751 = vmatprep.subr.bf16.mxu0 0
    %752 = vmatpush1.bf16.msra.mxu0 0
    %753 = vmatprep.subr.bf16.mxu0 0
    %754 = vmatpush1.bf16.msra.mxu0 0
    %755 = vmatprep.subr.bf16.mxu0 0
    %756 = vmatpush1.bf16.msra.mxu0 0
    %757 = vmatprep.subr.bf16.mxu0 0
    %758 = vmatpush1.bf16.msra.mxu0 0
    %759 = vmatprep.subr.bf16.mxu0 0
    %760 = vmatpush1.bf16.msra.mxu0 0
    %761 = vmatprep.subr.bf16.mxu0 0
    %762 = vmatpush1.bf16.msra.mxu0 0
    %763 = vmatprep.subr.bf16.mxu0 0
    %764 = vmatpush1.bf16.msra.mxu0 0
    %765 = vmatprep.subr.bf16.mxu0 0
    %766 = vmatpush1.bf16.msra.mxu0 0
    %767 = vmatprep.subr.bf16.mxu0 0
    %768 = vmatpush1.bf16.msra.mxu0 0
    %769 = vmatprep.subr.bf16.mxu0 0
    %770 = vmatpush1.bf16.msra.mxu0 0
    %771 = vmatprep.subr.bf16.mxu0 0
    %772 = vmatpush1.bf16.msra.mxu0 0
    %773 = vmatprep.subr.bf16.mxu0 0
    %774 = vmatpush1.bf16.msra.mxu0 0
    %775 = vmatprep.mubr.bf16.mxu0 0
    %776 = vmatmul.mubr.bf16.gmra.mrb[0].mxu0 %v700
    %v777 = vpop.f32.mrb[0].mxu0
    %v778 = vadd.f32 %v737, %v777
    %v779 = vpop.f32.mrb[0].mxu0
    %v780 = vpop.f32.mrb[0].mxu0
    %v781 = vadd.f32 %v740, %v780
    %v782 = vpop.f32.mrb[0].mxu0
    %783 = vdwg.mxu0
    %784 = vst [vmem:[#allocation8] sm:$0xff] %v778
    %785 = vst [vmem:[#allocation8 + $0x8] sm:$0xff] %v781
    %s786 = scalar_lea.vmem [#allocation3], 16
    %v787 = vld [vmem:[%s786] sm:$0xf]
    %v788 = vld [vmem:[%s786 + $0x4] sm:$0xf]
    %v789 = vld [vmem:[%s786 + $0x8] sm:$0xf]
    %v790 = vld [vmem:[%s786 + $0xc] sm:$0xf]
    %v791 = vxor.u32 %v787, 2147516416
    %v792 = vxor.u32 %v788, 2147516416
    %v793 = vxor.u32 %v789, 2147516416
    %v794 = vxor.u32 %v790, 2147516416
    %v796 = vmul.bf16 %v791, 1069105081
    %v797 = vpow.bf16.pop %v796
    %v799 = vmul.bf16 %v792, 1069105081
    %v800 = vpow.bf16.pop %v799
    %v802 = vmul.bf16 %v793, 1069105081
    %v803 = vpow.bf16.pop %v802
    %v805 = vmul.bf16 %v794, 1069105081
    %v806 = vpow.bf16.pop %v805
    %v807 = vadd.bf16 %v797, 1065369472
    %v808 = vadd.bf16 %v800, 1065369472
    %v809 = vadd.bf16 %v803, 1065369472
    %v810 = vadd.bf16 %v806, 1065369472
    %v811 = vrcp.bf16.pop %v807
    %v812 = vmul.bf16 1065369472, %v811
    %v813 = vrcp.bf16.pop %v808
    %v814 = vmul.bf16 1065369472, %v813
    %v815 = vrcp.bf16.pop %v809
    %v816 = vmul.bf16 1065369472, %v815
    %v817 = vrcp.bf16.pop %v810
    %v818 = vmul.bf16 1065369472, %v817
    %v819 = vmul.bf16 %v787, %v812
    %v820 = vmul.bf16 %v788, %v814
    %v821 = vmul.bf16 %v789, %v816
    %v822 = vmul.bf16 %v790, %v818
    %v827 = vunpack.c.l.b16 %v819
    %v828 = vunpack.c.l.b16 %v820
    %v829 = vunpack.c.l.b16 %v821
    %v830 = vunpack.c.l.b16 %v822
    %v831 = vpack.c.b16 %v828, %v827
    %v832 = vpack.c.b16 %v830, %v829
    %s835 = scalar_lea.vmem [#allocation2], 144
    %836 = vst [vmem:[%s835] sm:$0xff] %v831
    %837 = vst [vmem:[%s835 + $0x8] sm:$0xff] %v832
    %v838 = vsub.bf16 %v787, 3222126605
    %v839 = vsub.bf16 %v788, 3222126605
    %v840 = vsub.bf16 %v789, 3222126605
    %v841 = vsub.bf16 %v790, 3222126605
    %v842 = vmul.bf16 %v838, 1075855392
    %v843 = vmul.bf16 %v839, 1075855392
    %v844 = vmul.bf16 %v840, 1075855392
    %v845 = vmul.bf16 %v841, 1075855392
    %v846 = vsub.bf16 %v842, 1073758208
    %v847 = vsub.bf16 %v843, 1073758208
    %v848 = vsub.bf16 %v844, 1073758208
    %v849 = vsub.bf16 %v845, 1073758208
    %v850 = vand.u32 2147450879, %v846
    %v851 = vand.u32 2147450879, %v847
    %v852 = vand.u32 2147450879, %v848
    %v853 = vand.u32 2147450879, %v849
    %v854 = vsub.bf16 1073758208, %v850
    %v855 = vsub.bf16 1073758208, %v851
    %v856 = vsub.bf16 1073758208, %v852
    %v857 = vsub.bf16 1073758208, %v853
    %v858 = vmax.bf16 %v854, 0
    %v859 = vmax.bf16 %v855, 0
    %v860 = vmax.bf16 %v856, 0
    %v861 = vmax.bf16 %v857, 0
    %v862 = vsub.bf16 1065369472, %v850
    %v863 = vsub.bf16 1065369472, %v851
    %v864 = vsub.bf16 1065369472, %v852
    %v865 = vsub.bf16 1065369472, %v853
    %v866 = vmax.bf16 %v862, 0
    %v867 = vmax.bf16 %v863, 0
    %v868 = vmax.bf16 %v864, 0
    %v869 = vmax.bf16 %v865, 0
    %v870 = vmul.bf16 %v858, %v858
    %v871 = vmul.bf16 %v859, %v859
    %v872 = vmul.bf16 %v860, %v860
    %v873 = vmul.bf16 %v861, %v861
    %v874 = vmul.bf16 %v870, %v858
    %v875 = vmul.bf16 %v871, %v859
    %v876 = vmul.bf16 %v872, %v860
    %v877 = vmul.bf16 %v873, %v861
    %v878 = vmul.bf16 %v866, %v866
    %v879 = vmul.bf16 %v867, %v867
    %v880 = vmul.bf16 %v868, %v868
    %v881 = vmul.bf16 %v869, %v869
    %v882 = vmul.bf16 %v878, %v866
    %v883 = vmul.bf16 %v879, %v867
    %v884 = vmul.bf16 %v880, %v868
    %v885 = vmul.bf16 %v881, %v869
    %v886 = vmul.bf16 %v882, 1082146944
    %v887 = vmul.bf16 %v883, 1082146944
    %v888 = vmul.bf16 %v884, 1082146944
    %v889 = vmul.bf16 %v885, 1082146944
    %v890 = vsub.bf16 %v874, %v886
    %v891 = vsub.bf16 %v875, %v887
    %v892 = vsub.bf16 %v876, %v888
    %v893 = vsub.bf16 %v877, %v889
    %v894 = vmul.bf16 %v890, 1043021355
    %v895 = vmul.bf16 %v891, 1043021355
    %v896 = vmul.bf16 %v892, 1043021355
    %v897 = vmul.bf16 %v893, 1043021355
    %v902 = vunpack.c.l.b16 %v894
    %v903 = vunpack.c.l.b16 %v895
    %v904 = vunpack.c.l.b16 %v896
    %v905 = vunpack.c.l.b16 %v897
    %v906 = vpack.c.b16 %v903, %v902
    %v907 = vpack.c.b16 %v905, %v904
    %910 = vst [vmem:[%s835 + $0x10] sm:$0xff] %v906
    %911 = vst [vmem:[%s835 + $0x18] sm:$0xff] %v907
    %v912 = vsub.bf16 %v842, 1065369472
    %v913 = vsub.bf16 %v843, 1065369472
    %v914 = vsub.bf16 %v844, 1065369472
    %v915 = vsub.bf16 %v845, 1065369472
    %v916 = vsub.bf16 %v912, 1073758208
    %v917 = vsub.bf16 %v913, 1073758208
    %v918 = vsub.bf16 %v914, 1073758208
    %v919 = vsub.bf16 %v915, 1073758208
    %v920 = vand.u32 2147450879, %v916
    %v921 = vand.u32 2147450879, %v917
    %v922 = vand.u32 2147450879, %v918
    %v923 = vand.u32 2147450879, %v919
    %v924 = vsub.bf16 1073758208, %v920
    %v925 = vsub.bf16 1073758208, %v921
    %v926 = vsub.bf16 1073758208, %v922
    %v927 = vsub.bf16 1073758208, %v923
    %v928 = vmax.bf16 %v924, 0
    %v929 = vmax.bf16 %v925, 0
    %v930 = vmax.bf16 %v926, 0
    %v931 = vmax.bf16 %v927, 0
    %v932 = vsub.bf16 1065369472, %v920
    %v933 = vsub.bf16 1065369472, %v921
    %v934 = vsub.bf16 1065369472, %v922
    %v935 = vsub.bf16 1065369472, %v923
    %v936 = vmax.bf16 %v932, 0
    %v937 = vmax.bf16 %v933, 0
    %v938 = vmax.bf16 %v934, 0
    %v939 = vmax.bf16 %v935, 0
    %v940 = vmul.bf16 %v928, %v928
    %v941 = vmul.bf16 %v929, %v929
    %v942 = vmul.bf16 %v930, %v930
    %v943 = vmul.bf16 %v931, %v931
    %v944 = vmul.bf16 %v940, %v928
    %v945 = vmul.bf16 %v941, %v929
    %v946 = vmul.bf16 %v942, %v930
    %v947 = vmul.bf16 %v943, %v931
    %v948 = vmul.bf16 %v936, %v936
    %v949 = vmul.bf16 %v937, %v937
    %v950 = vmul.bf16 %v938, %v938
    %v951 = vmul.bf16 %v939, %v939
    %v952 = vmul.bf16 %v948, %v936
    %v953 = vmul.bf16 %v949, %v937
    %v954 = vmul.bf16 %v950, %v938
    %v955 = vmul.bf16 %v951, %v939
    %v956 = vmul.bf16 %v952, 1082146944
    %v957 = vmul.bf16 %v953, 1082146944
    %v958 = vmul.bf16 %v954, 1082146944
    %v959 = vmul.bf16 %v955, 1082146944
    %v960 = vsub.bf16 %v944, %v956
    %v961 = vsub.bf16 %v945, %v957
    %v962 = vsub.bf16 %v946, %v958
    %v963 = vsub.bf16 %v947, %v959
    %v964 = vmul.bf16 %v960, 1043021355
    %v965 = vmul.bf16 %v961, 1043021355
    %v966 = vmul.bf16 %v962, 1043021355
    %v967 = vmul.bf16 %v963, 1043021355
    %v972 = vunpack.c.l.b16 %v964
    %v973 = vunpack.c.l.b16 %v965
    %v974 = vunpack.c.l.b16 %v966
    %v975 = vunpack.c.l.b16 %v967
    %v976 = vpack.c.b16 %v973, %v972
    %v977 = vpack.c.b16 %v975, %v974
    %980 = vst [vmem:[%s835 + $0x20] sm:$0xff] %v976
    %981 = vst [vmem:[%s835 + $0x28] sm:$0xff] %v977
    %v982 = vsub.bf16 %v846, 1073758208
    %v983 = vsub.bf16 %v847, 1073758208
    %v984 = vsub.bf16 %v848, 1073758208
    %v985 = vsub.bf16 %v849, 1073758208
    %v986 = vand.u32 2147450879, %v982
    %v987 = vand.u32 2147450879, %v983
    %v988 = vand.u32 2147450879, %v984
    %v989 = vand.u32 2147450879, %v985
    %v990 = vsub.bf16 1073758208, %v986
    %v991 = vsub.bf16 1073758208, %v987
    %v992 = vsub.bf16 1073758208, %v988
    %v993 = vsub.bf16 1073758208, %v989
    %v994 = vmax.bf16 %v990, 0
    %v995 = vmax.bf16 %v991, 0
    %v996 = vmax.bf16 %v992, 0
    %v997 = vmax.bf16 %v993, 0
    %v998 = vsub.bf16 1065369472, %v986
    %v999 = vsub.bf16 1065369472, %v987
    %v1000 = vsub.bf16 1065369472, %v988
    %v1001 = vsub.bf16 1065369472, %v989
    %v1002 = vmax.bf16 %v998, 0
    %v1003 = vmax.bf16 %v999, 0
    %v1004 = vmax.bf16 %v1000, 0
    %v1005 = vmax.bf16 %v1001, 0
    %v1006 = vmul.bf16 %v994, %v994
    %v1007 = vmul.bf16 %v995, %v995
    %v1008 = vmul.bf16 %v996, %v996
    %v1009 = vmul.bf16 %v997, %v997
    %v1010 = vmul.bf16 %v1006, %v994
    %v1011 = vmul.bf16 %v1007, %v995
    %v1012 = vmul.bf16 %v1008, %v996
    %v1013 = vmul.bf16 %v1009, %v997
    %v1014 = vmul.bf16 %v1002, %v1002
    %v1015 = vmul.bf16 %v1003, %v1003
    %v1016 = vmul.bf16 %v1004, %v1004
    %v1017 = vmul.bf16 %v1005, %v1005
    %v1018 = vmul.bf16 %v1014, %v1002
    %v1019 = vmul.bf16 %v1015, %v1003
    %v1020 = vmul.bf16 %v1016, %v1004
    %v1021 = vmul.bf16 %v1017, %v1005
    %v1022 = vmul.bf16 %v1018, 1082146944
    %v1023 = vmul.bf16 %v1019, 1082146944
    %v1024 = vmul.bf16 %v1020, 1082146944
    %v1025 = vmul.bf16 %v1021, 1082146944
    %v1026 = vsub.bf16 %v1010, %v1022
    %v1027 = vsub.bf16 %v1011, %v1023
    %v1028 = vsub.bf16 %v1012, %v1024
    %v1029 = vsub.bf16 %v1013, %v1025
    %v1030 = vmul.bf16 %v1026, 1043021355
    %v1031 = vmul.bf16 %v1027, 1043021355
    %v1032 = vmul.bf16 %v1028, 1043021355
    %v1033 = vmul.bf16 %v1029, 1043021355
    %v1038 = vunpack.c.l.b16 %v1030
    %v1039 = vunpack.c.l.b16 %v1031
    %v1040 = vunpack.c.l.b16 %v1032
    %v1041 = vunpack.c.l.b16 %v1033
    %v1042 = vpack.c.b16 %v1039, %v1038
    %v1043 = vpack.c.b16 %v1041, %v1040
    %1046 = vst [vmem:[%s835 + $0x30] sm:$0xff] %v1042
    %1047 = vst [vmem:[%s835 + $0x38] sm:$0xff] %v1043
    %v1048 = vsub.bf16 %v842, 1077952576
    %v1049 = vsub.bf16 %v843, 1077952576
    %v1050 = vsub.bf16 %v844, 1077952576
    %v1051 = vsub.bf16 %v845, 1077952576
    %v1052 = vsub.bf16 %v1048, 1073758208
    %v1053 = vsub.bf16 %v1049, 1073758208
    %v1054 = vsub.bf16 %v1050, 1073758208
    %v1055 = vsub.bf16 %v1051, 1073758208
    %v1056 = vand.u32 2147450879, %v1052
    %v1057 = vand.u32 2147450879, %v1053
    %v1058 = vand.u32 2147450879, %v1054
    %v1059 = vand.u32 2147450879, %v1055
    %v1060 = vsub.bf16 1073758208, %v1056
    %v1061 = vsub.bf16 1073758208, %v1057
    %v1062 = vsub.bf16 1073758208, %v1058
    %v1063 = vsub.bf16 1073758208, %v1059
    %v1064 = vmax.bf16 %v1060, 0
    %v1065 = vmax.bf16 %v1061, 0
    %v1066 = vmax.bf16 %v1062, 0
    %v1067 = vmax.bf16 %v1063, 0
    %v1068 = vsub.bf16 1065369472, %v1056
    %v1069 = vsub.bf16 1065369472, %v1057
    %v1070 = vsub.bf16 1065369472, %v1058
    %v1071 = vsub.bf16 1065369472, %v1059
    %v1072 = vmax.bf16 %v1068, 0
    %v1073 = vmax.bf16 %v1069, 0
    %v1074 = vmax.bf16 %v1070, 0
    %v1075 = vmax.bf16 %v1071, 0
    %v1076 = vmul.bf16 %v1064, %v1064
    %v1077 = vmul.bf16 %v1065, %v1065
    %v1078 = vmul.bf16 %v1066, %v1066
    %v1079 = vmul.bf16 %v1067, %v1067
    %v1080 = vmul.bf16 %v1076, %v1064
    %v1081 = vmul.bf16 %v1077, %v1065
    %v1082 = vmul.bf16 %v1078, %v1066
    %v1083 = vmul.bf16 %v1079, %v1067
    %v1084 = vmul.bf16 %v1072, %v1072
    %v1085 = vmul.bf16 %v1073, %v1073
    %v1086 = vmul.bf16 %v1074, %v1074
    %v1087 = vmul.bf16 %v1075, %v1075
    %v1088 = vmul.bf16 %v1084, %v1072
    %v1089 = vmul.bf16 %v1085, %v1073
    %v1090 = vmul.bf16 %v1086, %v1074
    %v1091 = vmul.bf16 %v1087, %v1075
    %v1092 = vmul.bf16 %v1088, 1082146944
    %v1093 = vmul.bf16 %v1089, 1082146944
    %v1094 = vmul.bf16 %v1090, 1082146944
    %v1095 = vmul.bf16 %v1091, 1082146944
    %v1096 = vsub.bf16 %v1080, %v1092
    %v1097 = vsub.bf16 %v1081, %v1093
    %v1098 = vsub.bf16 %v1082, %v1094
    %v1099 = vsub.bf16 %v1083, %v1095
    %v1100 = vmul.bf16 %v1096, 1043021355
    %v1101 = vmul.bf16 %v1097, 1043021355
    %v1102 = vmul.bf16 %v1098, 1043021355
    %v1103 = vmul.bf16 %v1099, 1043021355
    %v1108 = vunpack.c.l.b16 %v1100
    %v1109 = vunpack.c.l.b16 %v1101
    %v1110 = vunpack.c.l.b16 %v1102
    %v1111 = vunpack.c.l.b16 %v1103
    %v1112 = vpack.c.b16 %v1109, %v1108
    %v1113 = vpack.c.b16 %v1111, %v1110
    %1116 = vst [vmem:[%s835 + $0x40] sm:$0xff] %v1112
    %1117 = vst [vmem:[%s835 + $0x48] sm:$0xff] %v1113
    %v1118 = vsub.bf16 %v842, 1082146944
    %v1119 = vsub.bf16 %v843, 1082146944
    %v1120 = vsub.bf16 %v844, 1082146944
    %v1121 = vsub.bf16 %v845, 1082146944
    %v1122 = vsub.bf16 %v1118, 1073758208
    %v1123 = vsub.bf16 %v1119, 1073758208
    %v1124 = vsub.bf16 %v1120, 1073758208
    %v1125 = vsub.bf16 %v1121, 1073758208
    %v1126 = vand.u32 2147450879, %v1122
    %v1127 = vand.u32 2147450879, %v1123
    %v1128 = vand.u32 2147450879, %v1124
    %v1129 = vand.u32 2147450879, %v1125
    %v1130 = vsub.bf16 1073758208, %v1126
    %v1131 = vsub.bf16 1073758208, %v1127
    %v1132 = vsub.bf16 1073758208, %v1128
    %v1133 = vsub.bf16 1073758208, %v1129
    %v1134 = vmax.bf16 %v1130, 0
    %v1135 = vmax.bf16 %v1131, 0
    %v1136 = vmax.bf16 %v1132, 0
    %v1137 = vmax.bf16 %v1133, 0
    %v1138 = vsub.bf16 1065369472, %v1126
    %v1139 = vsub.bf16 1065369472, %v1127
    %v1140 = vsub.bf16 1065369472, %v1128
    %v1141 = vsub.bf16 1065369472, %v1129
    %v1142 = vmax.bf16 %v1138, 0
    %v1143 = vmax.bf16 %v1139, 0
    %v1144 = vmax.bf16 %v1140, 0
    %v1145 = vmax.bf16 %v1141, 0
    %v1146 = vmul.bf16 %v1134, %v1134
    %v1147 = vmul.bf16 %v1135, %v1135
    %v1148 = vmul.bf16 %v1136, %v1136
    %v1149 = vmul.bf16 %v1137, %v1137
    %v1150 = vmul.bf16 %v1146, %v1134
    %v1151 = vmul.bf16 %v1147, %v1135
    %v1152 = vmul.bf16 %v1148, %v1136
    %v1153 = vmul.bf16 %v1149, %v1137
    %v1154 = vmul.bf16 %v1142, %v1142
    %v1155 = vmul.bf16 %v1143, %v1143
    %v1156 = vmul.bf16 %v1144, %v1144
    %v1157 = vmul.bf16 %v1145, %v1145
    %v1158 = vmul.bf16 %v1154, %v1142
    %v1159 = vmul.bf16 %v1155, %v1143
    %v1160 = vmul.bf16 %v1156, %v1144
    %v1161 = vmul.bf16 %v1157, %v1145
    %v1162 = vmul.bf16 %v1158, 1082146944
    %v1163 = vmul.bf16 %v1159, 1082146944
    %v1164 = vmul.bf16 %v1160, 1082146944
    %v1165 = vmul.bf16 %v1161, 1082146944
    %v1166 = vsub.bf16 %v1150, %v1162
    %v1167 = vsub.bf16 %v1151, %v1163
    %v1168 = vsub.bf16 %v1152, %v1164
    %v1169 = vsub.bf16 %v1153, %v1165
    %v1170 = vmul.bf16 %v1166, 1043021355
    %v1171 = vmul.bf16 %v1167, 1043021355
    %v1172 = vmul.bf16 %v1168, 1043021355
    %v1173 = vmul.bf16 %v1169, 1043021355
    %v1178 = vunpack.c.l.b16 %v1170
    %v1179 = vunpack.c.l.b16 %v1171
    %v1180 = vunpack.c.l.b16 %v1172
    %v1181 = vunpack.c.l.b16 %v1173
    %v1182 = vpack.c.b16 %v1179, %v1178
    %v1183 = vpack.c.b16 %v1181, %v1180
    %1186 = vst [vmem:[%s835 + $0x50] sm:$0xff] %v1182
    %1187 = vst [vmem:[%s835 + $0x58] sm:$0xff] %v1183
    %v1188 = vsub.bf16 %v842, 1084244128
    %v1189 = vsub.bf16 %v843, 1084244128
    %v1190 = vsub.bf16 %v844, 1084244128
    %v1191 = vsub.bf16 %v845, 1084244128
    %v1192 = vsub.bf16 %v1188, 1073758208
    %v1193 = vsub.bf16 %v1189, 1073758208
    %v1194 = vsub.bf16 %v1190, 1073758208
    %v1195 = vsub.bf16 %v1191, 1073758208
    %v1196 = vand.u32 2147450879, %v1192
    %v1197 = vand.u32 2147450879, %v1193
    %v1198 = vand.u32 2147450879, %v1194
    %v1199 = vand.u32 2147450879, %v1195
    %v1200 = vsub.bf16 1073758208, %v1196
    %v1201 = vsub.bf16 1073758208, %v1197
    %v1202 = vsub.bf16 1073758208, %v1198
    %v1203 = vsub.bf16 1073758208, %v1199
    %v1204 = vmax.bf16 %v1200, 0
    %v1205 = vmax.bf16 %v1201, 0
    %v1206 = vmax.bf16 %v1202, 0
    %v1207 = vmax.bf16 %v1203, 0
    %v1208 = vsub.bf16 1065369472, %v1196
    %v1209 = vsub.bf16 1065369472, %v1197
    %v1210 = vsub.bf16 1065369472, %v1198
    %v1211 = vsub.bf16 1065369472, %v1199
    %v1212 = vmax.bf16 %v1208, 0
    %v1213 = vmax.bf16 %v1209, 0
    %v1214 = vmax.bf16 %v1210, 0
    %v1215 = vmax.bf16 %v1211, 0
    %v1216 = vmul.bf16 %v1204, %v1204
    %v1217 = vmul.bf16 %v1205, %v1205
    %v1218 = vmul.bf16 %v1206, %v1206
    %v1219 = vmul.bf16 %v1207, %v1207
    %v1220 = vmul.bf16 %v1216, %v1204
    %v1221 = vmul.bf16 %v1217, %v1205
    %v1222 = vmul.bf16 %v1218, %v1206
    %v1223 = vmul.bf16 %v1219, %v1207
    %v1224 = vmul.bf16 %v1212, %v1212
    %v1225 = vmul.bf16 %v1213, %v1213
    %v1226 = vmul.bf16 %v1214, %v1214
    %v1227 = vmul.bf16 %v1215, %v1215
    %v1228 = vmul.bf16 %v1224, %v1212
    %v1229 = vmul.bf16 %v1225, %v1213
    %v1230 = vmul.bf16 %v1226, %v1214
    %v1231 = vmul.bf16 %v1227, %v1215
    %v1232 = vmul.bf16 %v1228, 1082146944
    %v1233 = vmul.bf16 %v1229, 1082146944
    %v1234 = vmul.bf16 %v1230, 1082146944
    %v1235 = vmul.bf16 %v1231, 1082146944
    %v1236 = vsub.bf16 %v1220, %v1232
    %v1237 = vsub.bf16 %v1221, %v1233
    %v1238 = vsub.bf16 %v1222, %v1234
    %v1239 = vsub.bf16 %v1223, %v1235
    %v1240 = vmul.bf16 %v1236, 1043021355
    %v1241 = vmul.bf16 %v1237, 1043021355
    %v1242 = vmul.bf16 %v1238, 1043021355
    %v1243 = vmul.bf16 %v1239, 1043021355
    %v1248 = vunpack.c.l.b16 %v1240
    %v1249 = vunpack.c.l.b16 %v1241
    %v1250 = vunpack.c.l.b16 %v1242
    %v1251 = vunpack.c.l.b16 %v1243
    %v1252 = vpack.c.b16 %v1249, %v1248
    %v1253 = vpack.c.b16 %v1251, %v1250
    %1256 = vst [vmem:[%s835 + $0x60] sm:$0xff] %v1252
    %1257 = vst [vmem:[%s835 + $0x68] sm:$0xff] %v1253
    %v1258 = vsub.bf16 %v842, 1086341312
    %v1259 = vsub.bf16 %v843, 1086341312
    %v1260 = vsub.bf16 %v844, 1086341312
    %v1261 = vsub.bf16 %v845, 1086341312
    %v1262 = vsub.bf16 %v1258, 1073758208
    %v1263 = vsub.bf16 %v1259, 1073758208
    %v1264 = vsub.bf16 %v1260, 1073758208
    %v1265 = vsub.bf16 %v1261, 1073758208
    %v1266 = vand.u32 2147450879, %v1262
    %v1267 = vand.u32 2147450879, %v1263
    %v1268 = vand.u32 2147450879, %v1264
    %v1269 = vand.u32 2147450879, %v1265
    %v1270 = vsub.bf16 1073758208, %v1266
    %v1271 = vsub.bf16 1073758208, %v1267
    %v1272 = vsub.bf16 1073758208, %v1268
    %v1273 = vsub.bf16 1073758208, %v1269
    %v1274 = vmax.bf16 %v1270, 0
    %v1275 = vmax.bf16 %v1271, 0
    %v1276 = vmax.bf16 %v1272, 0
    %v1277 = vmax.bf16 %v1273, 0
    %v1278 = vsub.bf16 1065369472, %v1266
    %v1279 = vsub.bf16 1065369472, %v1267
    %v1280 = vsub.bf16 1065369472, %v1268
    %v1281 = vsub.bf16 1065369472, %v1269
    %v1282 = vmax.bf16 %v1278, 0
    %v1283 = vmax.bf16 %v1279, 0
    %v1284 = vmax.bf16 %v1280, 0
    %v1285 = vmax.bf16 %v1281, 0
    %v1286 = vmul.bf16 %v1274, %v1274
    %v1287 = vmul.bf16 %v1275, %v1275
    %v1288 = vmul.bf16 %v1276, %v1276
    %v1289 = vmul.bf16 %v1277, %v1277
    %v1290 = vmul.bf16 %v1286, %v1274
    %v1291 = vmul.bf16 %v1287, %v1275
    %v1292 = vmul.bf16 %v1288, %v1276
    %v1293 = vmul.bf16 %v1289, %v1277
    %v1294 = vmul.bf16 %v1282, %v1282
    %v1295 = vmul.bf16 %v1283, %v1283
    %v1296 = vmul.bf16 %v1284, %v1284
    %v1297 = vmul.bf16 %v1285, %v1285
    %v1298 = vmul.bf16 %v1294, %v1282
    %v1299 = vmul.bf16 %v1295, %v1283
    %v1300 = vmul.bf16 %v1296, %v1284
    %v1301 = vmul.bf16 %v1297, %v1285
    %v1302 = vmul.bf16 %v1298, 1082146944
    %v1303 = vmul.bf16 %v1299, 1082146944
    %v1304 = vmul.bf16 %v1300, 1082146944
    %v1305 = vmul.bf16 %v1301, 1082146944
    %v1306 = vsub.bf16 %v1290, %v1302
    %v1307 = vsub.bf16 %v1291, %v1303
    %v1308 = vsub.bf16 %v1292, %v1304
    %v1309 = vsub.bf16 %v1293, %v1305
    %v1310 = vmul.bf16 %v1306, 1043021355
    %v1311 = vmul.bf16 %v1307, 1043021355
    %v1312 = vmul.bf16 %v1308, 1043021355
    %v1313 = vmul.bf16 %v1309, 1043021355
    %v1318 = vunpack.c.l.b16 %v1310
    %v1319 = vunpack.c.l.b16 %v1311
    %v1320 = vunpack.c.l.b16 %v1312
    %v1321 = vunpack.c.l.b16 %v1313
    %v1322 = vpack.c.b16 %v1319, %v1318
    %v1323 = vpack.c.b16 %v1321, %v1320
    %1326 = vst [vmem:[%s835 + $0x70] sm:$0xff] %v1322
    %1327 = vst [vmem:[%s835 + $0x78] sm:$0xff] %v1323
    %v1328 = vsub.bf16 %v842, 1088438496
    %v1329 = vsub.bf16 %v843, 1088438496
    %v1330 = vsub.bf16 %v844, 1088438496
    %v1331 = vsub.bf16 %v845, 1088438496
    %v1332 = vsub.bf16 %v1328, 1073758208
    %v1333 = vsub.bf16 %v1329, 1073758208
    %v1334 = vsub.bf16 %v1330, 1073758208
    %v1335 = vsub.bf16 %v1331, 1073758208
    %v1336 = vand.u32 2147450879, %v1332
    %v1337 = vand.u32 2147450879, %v1333
    %v1338 = vand.u32 2147450879, %v1334
    %v1339 = vand.u32 2147450879, %v1335
    %v1340 = vsub.bf16 1073758208, %v1336
    %v1341 = vsub.bf16 1073758208, %v1337
    %v1342 = vsub.bf16 1073758208, %v1338
    %v1343 = vsub.bf16 1073758208, %v1339
    %v1344 = vmax.bf16 %v1340, 0
    %v1345 = vmax.bf16 %v1341, 0
    %v1346 = vmax.bf16 %v1342, 0
    %v1347 = vmax.bf16 %v1343, 0
    %v1348 = vsub.bf16 1065369472, %v1336
    %v1349 = vsub.bf16 1065369472, %v1337
    %v1350 = vsub.bf16 1065369472, %v1338
    %v1351 = vsub.bf16 1065369472, %v1339
    %v1352 = vmax.bf16 %v1348, 0
    %v1353 = vmax.bf16 %v1349, 0
    %v1354 = vmax.bf16 %v1350, 0
    %v1355 = vmax.bf16 %v1351, 0
    %v1356 = vmul.bf16 %v1344, %v1344
    %v1357 = vmul.bf16 %v1345, %v1345
    %v1358 = vmul.bf16 %v1346, %v1346
    %v1359 = vmul.bf16 %v1347, %v1347
    %v1360 = vmul.bf16 %v1356, %v1344
    %v1361 = vmul.bf16 %v1357, %v1345
    %v1362 = vmul.bf16 %v1358, %v1346
    %v1363 = vmul.bf16 %v1359, %v1347
    %v1364 = vmul.bf16 %v1352, %v1352
    %v1365 = vmul.bf16 %v1353, %v1353
    %v1366 = vmul.bf16 %v1354, %v1354
    %v1367 = vmul.bf16 %v1355, %v1355
    %v1368 = vmul.bf16 %v1364, %v1352
    %v1369 = vmul.bf16 %v1365, %v1353
    %v1370 = vmul.bf16 %v1366, %v1354
    %v1371 = vmul.bf16 %v1367, %v1355
    %v1372 = vmul.bf16 %v1368, 1082146944
    %v1373 = vmul.bf16 %v1369, 1082146944
    %v1374 = vmul.bf16 %v1370, 1082146944
    %v1375 = vmul.bf16 %v1371, 1082146944
    %v1376 = vsub.bf16 %v1360, %v1372
    %v1377 = vsub.bf16 %v1361, %v1373
    %v1378 = vsub.bf16 %v1362, %v1374
    %v1379 = vsub.bf16 %v1363, %v1375
    %v1380 = vmul.bf16 %v1376, 1043021355
    %v1381 = vmul.bf16 %v1377, 1043021355
    %v1382 = vmul.bf16 %v1378, 1043021355
    %v1383 = vmul.bf16 %v1379, 1043021355
    %v1388 = vunpack.c.l.b16 %v1380
    %v1389 = vunpack.c.l.b16 %v1381
    %v1390 = vunpack.c.l.b16 %v1382
    %v1391 = vunpack.c.l.b16 %v1383
    %v1392 = vpack.c.b16 %v1389, %v1388
    %v1393 = vpack.c.b16 %v1391, %v1390
    %1396 = vst [vmem:[%s835 + $0x80] sm:$0xff] %v1392
    %1397 = vst [vmem:[%s835 + $0x88] sm:$0xff] %v1393
    %v1398 = vld [vmem:[#allocation6] sm:$0xff]
    %v1399 = vld [vmem:[#allocation6 + $0x8] sm:$0xf]
    %v1400 = vld [vmem:[#allocation6 + $0xc] sm:$0xff]
    %v1401 = vld [vmem:[#allocation6 + $0x14] sm:$0xf]
    %v1402 = vld [vmem:[%s835] sm:$0xff]
    %v1403 = vld [vmem:[%s835 + $0x8] sm:$0xff]
    %v1404 = vld [vmem:[%s835 + $0x10] sm:$0xff]
    %v1405 = vld [vmem:[%s835 + $0x18] sm:$0xff]
    %v1406 = vld [vmem:[%s835 + $0x20] sm:$0xff]
    %v1407 = vld [vmem:[%s835 + $0x28] sm:$0xff]
    %v1408 = vld [vmem:[%s835 + $0x30] sm:$0xff]
    %v1409 = vld [vmem:[%s835 + $0x38] sm:$0xff]
    %v1410 = vld [vmem:[%s835 + $0x40] sm:$0xff]
    %v1411 = vld [vmem:[%s835 + $0x48] sm:$0xff]
    %v1412 = vld [vmem:[%s835 + $0x50] sm:$0xff]
    %v1413 = vld [vmem:[%s835 + $0x58] sm:$0xff]
    %v1414 = vld [vmem:[%s835 + $0x60] sm:$0xff]
    %v1415 = vld [vmem:[%s835 + $0x68] sm:$0xff]
    %v1416 = vld [vmem:[%s835 + $0x70] sm:$0xff]
    %v1417 = vld [vmem:[%s835 + $0x78] sm:$0xff]
    %v1418 = vld [vmem:[%s835 + $0x80] sm:$0xff]
    %v1419 = vld [vmem:[%s835 + $0x88] sm:$0xff]
    %v1424 = vunpack.c.l.b16 %v1398
    %v1425 = vunpack.c.h.b16 %v1398
    %v1426 = vunpack.c.l.b16 %v1399
    %v1427 = vunpack.c.l.b16 %v1400
    %v1428 = vunpack.c.h.b16 %v1400
    %v1429 = vunpack.c.l.b16 %v1401
    %v1430 = vpack.c.b16 %v1427, %v1424
    %v1431 = vpack.c.b16 %v1428, %v1425
    %v1432 = vpack.c.b16 %v1429, %v1426
    %v1436 = vsel %vm698, %v1432, 0
    %1438 = vmatprep.subr.bf16.mxu0 0
    %1439 = vmatpush1.bf16.msra.mxu0 %v1402
    %1440 = vmatprep.subr.bf16.mxu0 0
    %1441 = vmatpush1.bf16.msra.mxu0 %v1403
    %1442 = vmatprep.subr.bf16.mxu0 0
    %1443 = vmatpush1.bf16.msra.mxu0 %v1404
    %1444 = vmatprep.subr.bf16.mxu0 0
    %1445 = vmatpush1.bf16.msra.mxu0 %v1405
    %1446 = vmatprep.subr.bf16.mxu0 0
    %1447 = vmatpush1.bf16.msra.mxu0 %v1406
    %1448 = vmatprep.subr.bf16.mxu0 0
    %1449 = vmatpush1.bf16.msra.mxu0 %v1407
    %1450 = vmatprep.subr.bf16.mxu0 0
    %1451 = vmatpush1.bf16.msra.mxu0 %v1408
    %1452 = vmatprep.subr.bf16.mxu0 0
    %1453 = vmatpush1.bf16.msra.mxu0 %v1409
    %1454 = vmatprep.subr.bf16.mxu0 0
    %1455 = vmatpush1.bf16.msra.mxu0 %v1410
    %1456 = vmatprep.subr.bf16.mxu0 0
    %1457 = vmatpush1.bf16.msra.mxu0 %v1411
    %1458 = vmatprep.subr.bf16.mxu0 0
    %1459 = vmatpush1.bf16.msra.mxu0 %v1412
    %1460 = vmatprep.subr.bf16.mxu0 0
    %1461 = vmatpush1.bf16.msra.mxu0 %v1413
    %1462 = vmatprep.subr.bf16.mxu0 0
    %1463 = vmatpush1.bf16.msra.mxu0 %v1414
    %1464 = vmatprep.subr.bf16.mxu0 0
    %1465 = vmatpush1.bf16.msra.mxu0 %v1415
    %1466 = vmatprep.subr.bf16.mxu0 0
    %1467 = vmatpush1.bf16.msra.mxu0 %v1416
    %1468 = vmatprep.subr.bf16.mxu0 0
    %1469 = vmatpush1.bf16.msra.mxu0 %v1417
    %1470 = vmatprep.mubr.bf16.mxu0 %v1431
    %1471 = vmatmul.mubr.bf16.gmra.mrb[0].mxu0 %v1430
    %v1472 = vpop.f32.mrb[0].mxu0
    %v1473 = vadd.f32 0.0, %v1472
    %v1474 = vpop.f32.mrb[0].mxu0
    %v1475 = vpop.f32.mrb[0].mxu0
    %v1476 = vadd.f32 0.0, %v1475
    %v1477 = vpop.f32.mrb[0].mxu0
    %1478 = vdwg.mxu0
    %1479 = vmatprep.subr.bf16.mxu0 0
    %1480 = vmatpush1.bf16.msra.mxu0 %v1418
    %1481 = vmatprep.subr.bf16.mxu0 0
    %1482 = vmatpush1.bf16.msra.mxu0 %v1419
    %1483 = vmatprep.subr.bf16.mxu0 0
    %1484 = vmatpush1.bf16.msra.mxu0 0
    %1485 = vmatprep.subr.bf16.mxu0 0
    %1486 = vmatpush1.bf16.msra.mxu0 0
    %1487 = vmatprep.subr.bf16.mxu0 0
    %1488 = vmatpush1.bf16.msra.mxu0 0
    %1489 = vmatprep.subr.bf16.mxu0 0
    %1490 = vmatpush1.bf16.msra.mxu0 0
    %1491 = vmatprep.subr.bf16.mxu0 0
    %1492 = vmatpush1.bf16.msra.mxu0 0
    %1493 = vmatprep.subr.bf16.mxu0 0
    %1494 = vmatpush1.bf16.msra.mxu0 0
    %1495 = vmatprep.subr.bf16.mxu0 0
    %1496 = vmatpush1.bf16.msra.mxu0 0
    %1497 = vmatprep.subr.bf16.mxu0 0
    %1498 = vmatpush1.bf16.msra.mxu0 0
    %1499 = vmatprep.subr.bf16.mxu0 0
    %1500 = vmatpush1.bf16.msra.mxu0 0
    %1501 = vmatprep.subr.bf16.mxu0 0
    %1502 = vmatpush1.bf16.msra.mxu0 0
    %1503 = vmatprep.subr.bf16.mxu0 0
    %1504 = vmatpush1.bf16.msra.mxu0 0
    %1505 = vmatprep.subr.bf16.mxu0 0
    %1506 = vmatpush1.bf16.msra.mxu0 0
    %1507 = vmatprep.subr.bf16.mxu0 0
    %1508 = vmatpush1.bf16.msra.mxu0 0
    %1509 = vmatprep.subr.bf16.mxu0 0
    %1510 = vmatpush1.bf16.msra.mxu0 0
    %1511 = vmatprep.mubr.bf16.mxu0 0
    %1512 = vmatmul.mubr.bf16.gmra.mrb[0].mxu0 %v1436
    %v1513 = vpop.f32.mrb[0].mxu0
    %v1514 = vadd.f32 %v1473, %v1513
    %v1515 = vpop.f32.mrb[0].mxu0
    %v1516 = vpop.f32.mrb[0].mxu0
    %v1517 = vadd.f32 %v1476, %v1516
    %v1518 = vpop.f32.mrb[0].mxu0
    %1519 = vdwg.mxu0
    %v1520 = vld [vmem:[#allocation8] sm:$0xff]
    %v1521 = vld [vmem:[#allocation8 + $0x8] sm:$0xff]
    %v1522 = vmax.f32 %v1520, %v1514
    %v1523 = vmax.f32 %v1521, %v1517
    %1524 = vst [vmem:[#allocation8] sm:$0xff] %v1522
    %1525 = vst [vmem:[#allocation8 + $0x8] sm:$0xff] %v1523
    %s1526 = scalar_lea.vmem [#allocation3], 32
    %v1527 = vld [vmem:[%s1526] sm:$0xf]
    %v1528 = vld [vmem:[%s1526 + $0x4] sm:$0xf]
    %v1529 = vld [vmem:[%s1526 + $0x8] sm:$0xf]
    %v1530 = vld [vmem:[%s1526 + $0xc] sm:$0xf]
    %v1531 = vxor.u32 %v1527, 2147516416
    %v1532 = vxor.u32 %v1528, 2147516416
    %v1533 = vxor.u32 %v1529, 2147516416
    %v1534 = vxor.u32 %v1530, 2147516416
    %v1536 = vmul.bf16 %v1531, 1069105081
    %v1537 = vpow.bf16.pop %v1536
    %v1539 = vmul.bf16 %v1532, 1069105081
    %v1540 = vpow.bf16.pop %v1539
    %v1542 = vmul.bf16 %v1533, 1069105081
    %v1543 = vpow.bf16.pop %v1542
    %v1545 = vmul.bf16 %v1534, 1069105081
    %v1546 = vpow.bf16.pop %v1545
    %v1547 = vadd.bf16 %v1537, 1065369472
    %v1548 = vadd.bf16 %v1540, 1065369472
    %v1549 = vadd.bf16 %v1543, 1065369472
    %v1550 = vadd.bf16 %v1546, 1065369472
    %v1551 = vrcp.bf16.pop %v1547
    %v1552 = vmul.bf16 1065369472, %v1551
    %v1553 = vrcp.bf16.pop %v1548
    %v1554 = vmul.bf16 1065369472, %v1553
    %v1555 = vrcp.bf16.pop %v1549
    %v1556 = vmul.bf16 1065369472, %v1555
    %v1557 = vrcp.bf16.pop %v1550
    %v1558 = vmul.bf16 1065369472, %v1557
    %v1559 = vmul.bf16 %v1527, %v1552
    %v1560 = vmul.bf16 %v1528, %v1554
    %v1561 = vmul.bf16 %v1529, %v1556
    %v1562 = vmul.bf16 %v1530, %v1558
    %v1567 = vunpack.c.l.b16 %v1559
    %v1568 = vunpack.c.l.b16 %v1560
    %v1569 = vunpack.c.l.b16 %v1561
    %v1570 = vunpack.c.l.b16 %v1562
    %v1571 = vpack.c.b16 %v1568, %v1567
    %v1572 = vpack.c.b16 %v1570, %v1569
    %1575 = vst [vmem:[#allocation2] sm:$0xff] %v1571
    %1576 = vst [vmem:[#allocation2 + $0x8] sm:$0xff] %v1572
    %v1577 = vsub.bf16 %v1527, 3222126605
    %v1578 = vsub.bf16 %v1528, 3222126605
    %v1579 = vsub.bf16 %v1529, 3222126605
    %v1580 = vsub.bf16 %v1530, 3222126605
    %v1581 = vmul.bf16 %v1577, 1075855392
    %v1582 = vmul.bf16 %v1578, 1075855392
    %v1583 = vmul.bf16 %v1579, 1075855392
    %v1584 = vmul.bf16 %v1580, 1075855392
    %v1585 = vsub.bf16 %v1581, 1073758208
    %v1586 = vsub.bf16 %v1582, 1073758208
    %v1587 = vsub.bf16 %v1583, 1073758208
    %v1588 = vsub.bf16 %v1584, 1073758208
    %v1589 = vand.u32 2147450879, %v1585
    %v1590 = vand.u32 2147450879, %v1586
    %v1591 = vand.u32 2147450879, %v1587
    %v1592 = vand.u32 2147450879, %v1588
    %v1593 = vsub.bf16 1073758208, %v1589
    %v1594 = vsub.bf16 1073758208, %v1590
    %v1595 = vsub.bf16 1073758208, %v1591
    %v1596 = vsub.bf16 1073758208, %v1592
    %v1597 = vmax.bf16 %v1593, 0
    %v1598 = vmax.bf16 %v1594, 0
    %v1599 = vmax.bf16 %v1595, 0
    %v1600 = vmax.bf16 %v1596, 0
    %v1601 = vsub.bf16 1065369472, %v1589
    %v1602 = vsub.bf16 1065369472, %v1590
    %v1603 = vsub.bf16 1065369472, %v1591
    %v1604 = vsub.bf16 1065369472, %v1592
    %v1605 = vmax.bf16 %v1601, 0
    %v1606 = vmax.bf16 %v1602, 0
    %v1607 = vmax.bf16 %v1603, 0
    %v1608 = vmax.bf16 %v1604, 0
    %v1609 = vmul.bf16 %v1597, %v1597
    %v1610 = vmul.bf16 %v1598, %v1598
    %v1611 = vmul.bf16 %v1599, %v1599
    %v1612 = vmul.bf16 %v1600, %v1600
    %v1613 = vmul.bf16 %v1609, %v1597
    %v1614 = vmul.bf16 %v1610, %v1598
    %v1615 = vmul.bf16 %v1611, %v1599
    %v1616 = vmul.bf16 %v1612, %v1600
    %v1617 = vmul.bf16 %v1605, %v1605
    %v1618 = vmul.bf16 %v1606, %v1606
    %v1619 = vmul.bf16 %v1607, %v1607
    %v1620 = vmul.bf16 %v1608, %v1608
    %v1621 = vmul.bf16 %v1617, %v1605
    %v1622 = vmul.bf16 %v1618, %v1606
    %v1623 = vmul.bf16 %v1619, %v1607
    %v1624 = vmul.bf16 %v1620, %v1608
    %v1625 = vmul.bf16 %v1621, 1082146944
    %v1626 = vmul.bf16 %v1622, 1082146944
    %v1627 = vmul.bf16 %v1623, 1082146944
    %v1628 = vmul.bf16 %v1624, 1082146944
    %v1629 = vsub.bf16 %v1613, %v1625
    %v1630 = vsub.bf16 %v1614, %v1626
    %v1631 = vsub.bf16 %v1615, %v1627
    %v1632 = vsub.bf16 %v1616, %v1628
    %v1633 = vmul.bf16 %v1629, 1043021355
    %v1634 = vmul.bf16 %v1630, 1043021355
    %v1635 = vmul.bf16 %v1631, 1043021355
    %v1636 = vmul.bf16 %v1632, 1043021355
    %v1641 = vunpack.c.l.b16 %v1633
    %v1642 = vunpack.c.l.b16 %v1634
    %v1643 = vunpack.c.l.b16 %v1635
    %v1644 = vunpack.c.l.b16 %v1636
    %v1645 = vpack.c.b16 %v1642, %v1641
    %v1646 = vpack.c.b16 %v1644, %v1643
    %1649 = vst [vmem:[#allocation2 + $0x10] sm:$0xff] %v1645
    %1650 = vst [vmem:[#allocation2 + $0x18] sm:$0xff] %v1646
    %v1651 = vsub.bf16 %v1581, 1065369472
    %v1652 = vsub.bf16 %v1582, 1065369472
    %v1653 = vsub.bf16 %v1583, 1065369472
    %v1654 = vsub.bf16 %v1584, 1065369472
    %v1655 = vsub.bf16 %v1651, 1073758208
    %v1656 = vsub.bf16 %v1652, 1073758208
    %v1657 = vsub.bf16 %v1653, 1073758208
    %v1658 = vsub.bf16 %v1654, 1073758208
    %v1659 = vand.u32 2147450879, %v1655
    %v1660 = vand.u32 2147450879, %v1656
    %v1661 = vand.u32 2147450879, %v1657
    %v1662 = vand.u32 2147450879, %v1658
    %v1663 = vsub.bf16 1073758208, %v1659
    %v1664 = vsub.bf16 1073758208, %v1660
    %v1665 = vsub.bf16 1073758208, %v1661
    %v1666 = vsub.bf16 1073758208, %v1662
    %v1667 = vmax.bf16 %v1663, 0
    %v1668 = vmax.bf16 %v1664, 0
    %v1669 = vmax.bf16 %v1665, 0
    %v1670 = vmax.bf16 %v1666, 0
    %v1671 = vsub.bf16 1065369472, %v1659
    %v1672 = vsub.bf16 1065369472, %v1660
    %v1673 = vsub.bf16 1065369472, %v1661
    %v1674 = vsub.bf16 1065369472, %v1662
    %v1675 = vmax.bf16 %v1671, 0
    %v1676 = vmax.bf16 %v1672, 0
    %v1677 = vmax.bf16 %v1673, 0
    %v1678 = vmax.bf16 %v1674, 0
    %v1679 = vmul.bf16 %v1667, %v1667
    %v1680 = vmul.bf16 %v1668, %v1668
    %v1681 = vmul.bf16 %v1669, %v1669
    %v1682 = vmul.bf16 %v1670, %v1670
    %v1683 = vmul.bf16 %v1679, %v1667
    %v1684 = vmul.bf16 %v1680, %v1668
    %v1685 = vmul.bf16 %v1681, %v1669
    %v1686 = vmul.bf16 %v1682, %v1670
    %v1687 = vmul.bf16 %v1675, %v1675
    %v1688 = vmul.bf16 %v1676, %v1676
    %v1689 = vmul.bf16 %v1677, %v1677
    %v1690 = vmul.bf16 %v1678, %v1678
    %v1691 = vmul.bf16 %v1687, %v1675
    %v1692 = vmul.bf16 %v1688, %v1676
    %v1693 = vmul.bf16 %v1689, %v1677
    %v1694 = vmul.bf16 %v1690, %v1678
    %v1695 = vmul.bf16 %v1691, 1082146944
    %v1696 = vmul.bf16 %v1692, 1082146944
    %v1697 = vmul.bf16 %v1693, 1082146944
    %v1698 = vmul.bf16 %v1694, 1082146944
    %v1699 = vsub.bf16 %v1683, %v1695
    %v1700 = vsub.bf16 %v1684, %v1696
    %v1701 = vsub.bf16 %v1685, %v1697
    %v1702 = vsub.bf16 %v1686, %v1698
    %v1703 = vmul.bf16 %v1699, 1043021355
    %v1704 = vmul.bf16 %v1700, 1043021355
    %v1705 = vmul.bf16 %v1701, 1043021355
    %v1706 = vmul.bf16 %v1702, 1043021355
    %v1711 = vunpack.c.l.b16 %v1703
    %v1712 = vunpack.c.l.b16 %v1704
    %v1713 = vunpack.c.l.b16 %v1705
    %v1714 = vunpack.c.l.b16 %v1706
    %v1715 = vpack.c.b16 %v1712, %v1711
    %v1716 = vpack.c.b16 %v1714, %v1713
    %1719 = vst [vmem:[#allocation2 + $0x20] sm:$0xff] %v1715
    %1720 = vst [vmem:[#allocation2 + $0x28] sm:$0xff] %v1716
    %v1721 = vsub.bf16 %v1585, 1073758208
    %v1722 = vsub.bf16 %v1586, 1073758208
    %v1723 = vsub.bf16 %v1587, 1073758208
    %v1724 = vsub.bf16 %v1588, 1073758208
    %v1725 = vand.u32 2147450879, %v1721
    %v1726 = vand.u32 2147450879, %v1722
    %v1727 = vand.u32 2147450879, %v1723
    %v1728 = vand.u32 2147450879, %v1724
    %v1729 = vsub.bf16 1073758208, %v1725
    %v1730 = vsub.bf16 1073758208, %v1726
    %v1731 = vsub.bf16 1073758208, %v1727
    %v1732 = vsub.bf16 1073758208, %v1728
    %v1733 = vmax.bf16 %v1729, 0
    %v1734 = vmax.bf16 %v1730, 0
    %v1735 = vmax.bf16 %v1731, 0
    %v1736 = vmax.bf16 %v1732, 0
    %v1737 = vsub.bf16 1065369472, %v1725
    %v1738 = vsub.bf16 1065369472, %v1726
    %v1739 = vsub.bf16 1065369472, %v1727
    %v1740 = vsub.bf16 1065369472, %v1728
    %v1741 = vmax.bf16 %v1737, 0
    %v1742 = vmax.bf16 %v1738, 0
    %v1743 = vmax.bf16 %v1739, 0
    %v1744 = vmax.bf16 %v1740, 0
    %v1745 = vmul.bf16 %v1733, %v1733
    %v1746 = vmul.bf16 %v1734, %v1734
    %v1747 = vmul.bf16 %v1735, %v1735
    %v1748 = vmul.bf16 %v1736, %v1736
    %v1749 = vmul.bf16 %v1745, %v1733
    %v1750 = vmul.bf16 %v1746, %v1734
    %v1751 = vmul.bf16 %v1747, %v1735
    %v1752 = vmul.bf16 %v1748, %v1736
    %v1753 = vmul.bf16 %v1741, %v1741
    %v1754 = vmul.bf16 %v1742, %v1742
    %v1755 = vmul.bf16 %v1743, %v1743
    %v1756 = vmul.bf16 %v1744, %v1744
    %v1757 = vmul.bf16 %v1753, %v1741
    %v1758 = vmul.bf16 %v1754, %v1742
    %v1759 = vmul.bf16 %v1755, %v1743
    %v1760 = vmul.bf16 %v1756, %v1744
    %v1761 = vmul.bf16 %v1757, 1082146944
    %v1762 = vmul.bf16 %v1758, 1082146944
    %v1763 = vmul.bf16 %v1759, 1082146944
    %v1764 = vmul.bf16 %v1760, 1082146944
    %v1765 = vsub.bf16 %v1749, %v1761
    %v1766 = vsub.bf16 %v1750, %v1762
    %v1767 = vsub.bf16 %v1751, %v1763
    %v1768 = vsub.bf16 %v1752, %v1764
    %v1769 = vmul.bf16 %v1765, 1043021355
    %v1770 = vmul.bf16 %v1766, 1043021355
    %v1771 = vmul.bf16 %v1767, 1043021355
    %v1772 = vmul.bf16 %v1768, 1043021355
    %v1777 = vunpack.c.l.b16 %v1769
    %v1778 = vunpack.c.l.b16 %v1770
    %v1779 = vunpack.c.l.b16 %v1771
    %v1780 = vunpack.c.l.b16 %v1772
    %v1781 = vpack.c.b16 %v1778, %v1777
    %v1782 = vpack.c.b16 %v1780, %v1779
    %1785 = vst [vmem:[#allocation2 + $0x30] sm:$0xff] %v1781
    %1786 = vst [vmem:[#allocation2 + $0x38] sm:$0xff] %v1782
    %v1787 = vsub.bf16 %v1581, 1077952576
    %v1788 = vsub.bf16 %v1582, 1077952576
    %v1789 = vsub.bf16 %v1583, 1077952576
    %v1790 = vsub.bf16 %v1584, 1077952576
    %v1791 = vsub.bf16 %v1787, 1073758208
    %v1792 = vsub.bf16 %v1788, 1073758208
    %v1793 = vsub.bf16 %v1789, 1073758208
    %v1794 = vsub.bf16 %v1790, 1073758208
    %v1795 = vand.u32 2147450879, %v1791
    %v1796 = vand.u32 2147450879, %v1792
    %v1797 = vand.u32 2147450879, %v1793
    %v1798 = vand.u32 2147450879, %v1794
    %v1799 = vsub.bf16 1073758208, %v1795
    %v1800 = vsub.bf16 1073758208, %v1796
    %v1801 = vsub.bf16 1073758208, %v1797
    %v1802 = vsub.bf16 1073758208, %v1798
    %v1803 = vmax.bf16 %v1799, 0
    %v1804 = vmax.bf16 %v1800, 0
    %v1805 = vmax.bf16 %v1801, 0
    %v1806 = vmax.bf16 %v1802, 0
    %v1807 = vsub.bf16 1065369472, %v1795
    %v1808 = vsub.bf16 1065369472, %v1796
    %v1809 = vsub.bf16 1065369472, %v1797
    %v1810 = vsub.bf16 1065369472, %v1798
    %v1811 = vmax.bf16 %v1807, 0
    %v1812 = vmax.bf16 %v1808, 0
    %v1813 = vmax.bf16 %v1809, 0
    %v1814 = vmax.bf16 %v1810, 0
    %v1815 = vmul.bf16 %v1803, %v1803
    %v1816 = vmul.bf16 %v1804, %v1804
    %v1817 = vmul.bf16 %v1805, %v1805
    %v1818 = vmul.bf16 %v1806, %v1806
    %v1819 = vmul.bf16 %v1815, %v1803
    %v1820 = vmul.bf16 %v1816, %v1804
    %v1821 = vmul.bf16 %v1817, %v1805
    %v1822 = vmul.bf16 %v1818, %v1806
    %v1823 = vmul.bf16 %v1811, %v1811
    %v1824 = vmul.bf16 %v1812, %v1812
    %v1825 = vmul.bf16 %v1813, %v1813
    %v1826 = vmul.bf16 %v1814, %v1814
    %v1827 = vmul.bf16 %v1823, %v1811
    %v1828 = vmul.bf16 %v1824, %v1812
    %v1829 = vmul.bf16 %v1825, %v1813
    %v1830 = vmul.bf16 %v1826, %v1814
    %v1831 = vmul.bf16 %v1827, 1082146944
    %v1832 = vmul.bf16 %v1828, 1082146944
    %v1833 = vmul.bf16 %v1829, 1082146944
    %v1834 = vmul.bf16 %v1830, 1082146944
    %v1835 = vsub.bf16 %v1819, %v1831
    %v1836 = vsub.bf16 %v1820, %v1832
    %v1837 = vsub.bf16 %v1821, %v1833
    %v1838 = vsub.bf16 %v1822, %v1834
    %v1839 = vmul.bf16 %v1835, 1043021355
    %v1840 = vmul.bf16 %v1836, 1043021355
    %v1841 = vmul.bf16 %v1837, 1043021355
    %v1842 = vmul.bf16 %v1838, 1043021355
    %v1847 = vunpack.c.l.b16 %v1839
    %v1848 = vunpack.c.l.b16 %v1840
    %v1849 = vunpack.c.l.b16 %v1841
    %v1850 = vunpack.c.l.b16 %v1842
    %v1851 = vpack.c.b16 %v1848, %v1847
    %v1852 = vpack.c.b16 %v1850, %v1849
    %1855 = vst [vmem:[#allocation2 + $0x40] sm:$0xff] %v1851
    %1856 = vst [vmem:[#allocation2 + $0x48] sm:$0xff] %v1852
    %v1857 = vsub.bf16 %v1581, 1082146944
    %v1858 = vsub.bf16 %v1582, 1082146944
    %v1859 = vsub.bf16 %v1583, 1082146944
    %v1860 = vsub.bf16 %v1584, 1082146944
    %v1861 = vsub.bf16 %v1857, 1073758208
    %v1862 = vsub.bf16 %v1858, 1073758208
    %v1863 = vsub.bf16 %v1859, 1073758208
    %v1864 = vsub.bf16 %v1860, 1073758208
    %v1865 = vand.u32 2147450879, %v1861
    %v1866 = vand.u32 2147450879, %v1862
    %v1867 = vand.u32 2147450879, %v1863
    %v1868 = vand.u32 2147450879, %v1864
    %v1869 = vsub.bf16 1073758208, %v1865
    %v1870 = vsub.bf16 1073758208, %v1866
    %v1871 = vsub.bf16 1073758208, %v1867
    %v1872 = vsub.bf16 1073758208, %v1868
    %v1873 = vmax.bf16 %v1869, 0
    %v1874 = vmax.bf16 %v1870, 0
    %v1875 = vmax.bf16 %v1871, 0
    %v1876 = vmax.bf16 %v1872, 0
    %v1877 = vsub.bf16 1065369472, %v1865
    %v1878 = vsub.bf16 1065369472, %v1866
    %v1879 = vsub.bf16 1065369472, %v1867
    %v1880 = vsub.bf16 1065369472, %v1868
    %v1881 = vmax.bf16 %v1877, 0
    %v1882 = vmax.bf16 %v1878, 0
    %v1883 = vmax.bf16 %v1879, 0
    %v1884 = vmax.bf16 %v1880, 0
    %v1885 = vmul.bf16 %v1873, %v1873
    %v1886 = vmul.bf16 %v1874, %v1874
    %v1887 = vmul.bf16 %v1875, %v1875
    %v1888 = vmul.bf16 %v1876, %v1876
    %v1889 = vmul.bf16 %v1885, %v1873
    %v1890 = vmul.bf16 %v1886, %v1874
    %v1891 = vmul.bf16 %v1887, %v1875
    %v1892 = vmul.bf16 %v1888, %v1876
    %v1893 = vmul.bf16 %v1881, %v1881
    %v1894 = vmul.bf16 %v1882, %v1882
    %v1895 = vmul.bf16 %v1883, %v1883
    %v1896 = vmul.bf16 %v1884, %v1884
    %v1897 = vmul.bf16 %v1893, %v1881
    %v1898 = vmul.bf16 %v1894, %v1882
    %v1899 = vmul.bf16 %v1895, %v1883
    %v1900 = vmul.bf16 %v1896, %v1884
    %v1901 = vmul.bf16 %v1897, 1082146944
    %v1902 = vmul.bf16 %v1898, 1082146944
    %v1903 = vmul.bf16 %v1899, 1082146944
    %v1904 = vmul.bf16 %v1900, 1082146944
    %v1905 = vsub.bf16 %v1889, %v1901
    %v1906 = vsub.bf16 %v1890, %v1902
    %v1907 = vsub.bf16 %v1891, %v1903
    %v1908 = vsub.bf16 %v1892, %v1904
    %v1909 = vmul.bf16 %v1905, 1043021355
    %v1910 = vmul.bf16 %v1906, 1043021355
    %v1911 = vmul.bf16 %v1907, 1043021355
    %v1912 = vmul.bf16 %v1908, 1043021355
    %v1917 = vunpack.c.l.b16 %v1909
    %v1918 = vunpack.c.l.b16 %v1910
    %v1919 = vunpack.c.l.b16 %v1911
    %v1920 = vunpack.c.l.b16 %v1912
    %v1921 = vpack.c.b16 %v1918, %v1917
    %v1922 = vpack.c.b16 %v1920, %v1919
    %1925 = vst [vmem:[#allocation2 + $0x50] sm:$0xff] %v1921
    %1926 = vst [vmem:[#allocation2 + $0x58] sm:$0xff] %v1922
    %v1927 = vsub.bf16 %v1581, 1084244128
    %v1928 = vsub.bf16 %v1582, 1084244128
    %v1929 = vsub.bf16 %v1583, 1084244128
    %v1930 = vsub.bf16 %v1584, 1084244128
    %v1931 = vsub.bf16 %v1927, 1073758208
    %v1932 = vsub.bf16 %v1928, 1073758208
    %v1933 = vsub.bf16 %v1929, 1073758208
    %v1934 = vsub.bf16 %v1930, 1073758208
    %v1935 = vand.u32 2147450879, %v1931
    %v1936 = vand.u32 2147450879, %v1932
    %v1937 = vand.u32 2147450879, %v1933
    %v1938 = vand.u32 2147450879, %v1934
    %v1939 = vsub.bf16 1073758208, %v1935
    %v1940 = vsub.bf16 1073758208, %v1936
    %v1941 = vsub.bf16 1073758208, %v1937
    %v1942 = vsub.bf16 1073758208, %v1938
    %v1943 = vmax.bf16 %v1939, 0
    %v1944 = vmax.bf16 %v1940, 0
    %v1945 = vmax.bf16 %v1941, 0
    %v1946 = vmax.bf16 %v1942, 0
    %v1947 = vsub.bf16 1065369472, %v1935
    %v1948 = vsub.bf16 1065369472, %v1936
    %v1949 = vsub.bf16 1065369472, %v1937
    %v1950 = vsub.bf16 1065369472, %v1938
    %v1951 = vmax.bf16 %v1947, 0
    %v1952 = vmax.bf16 %v1948, 0
    %v1953 = vmax.bf16 %v1949, 0
    %v1954 = vmax.bf16 %v1950, 0
    %v1955 = vmul.bf16 %v1943, %v1943
    %v1956 = vmul.bf16 %v1944, %v1944
    %v1957 = vmul.bf16 %v1945, %v1945
    %v1958 = vmul.bf16 %v1946, %v1946
    %v1959 = vmul.bf16 %v1955, %v1943
    %v1960 = vmul.bf16 %v1956, %v1944
    %v1961 = vmul.bf16 %v1957, %v1945
    %v1962 = vmul.bf16 %v1958, %v1946
    %v1963 = vmul.bf16 %v1951, %v1951
    %v1964 = vmul.bf16 %v1952, %v1952
    %v1965 = vmul.bf16 %v1953, %v1953
    %v1966 = vmul.bf16 %v1954, %v1954
    %v1967 = vmul.bf16 %v1963, %v1951
    %v1968 = vmul.bf16 %v1964, %v1952
    %v1969 = vmul.bf16 %v1965, %v1953
    %v1970 = vmul.bf16 %v1966, %v1954
    %v1971 = vmul.bf16 %v1967, 1082146944
    %v1972 = vmul.bf16 %v1968, 1082146944
    %v1973 = vmul.bf16 %v1969, 1082146944
    %v1974 = vmul.bf16 %v1970, 1082146944
    %v1975 = vsub.bf16 %v1959, %v1971
    %v1976 = vsub.bf16 %v1960, %v1972
    %v1977 = vsub.bf16 %v1961, %v1973
    %v1978 = vsub.bf16 %v1962, %v1974
    %v1979 = vmul.bf16 %v1975, 1043021355
    %v1980 = vmul.bf16 %v1976, 1043021355
    %v1981 = vmul.bf16 %v1977, 1043021355
    %v1982 = vmul.bf16 %v1978, 1043021355
    %v1987 = vunpack.c.l.b16 %v1979
    %v1988 = vunpack.c.l.b16 %v1980
    %v1989 = vunpack.c.l.b16 %v1981
    %v1990 = vunpack.c.l.b16 %v1982
    %v1991 = vpack.c.b16 %v1988, %v1987
    %v1992 = vpack.c.b16 %v1990, %v1989
    %1995 = vst [vmem:[#allocation2 + $0x60] sm:$0xff] %v1991
    %1996 = vst [vmem:[#allocation2 + $0x68] sm:$0xff] %v1992
    %v1997 = vsub.bf16 %v1581, 1086341312
    %v1998 = vsub.bf16 %v1582, 1086341312
    %v1999 = vsub.bf16 %v1583, 1086341312
    %v2000 = vsub.bf16 %v1584, 1086341312
    %v2001 = vsub.bf16 %v1997, 1073758208
    %v2002 = vsub.bf16 %v1998, 1073758208
    %v2003 = vsub.bf16 %v1999, 1073758208
    %v2004 = vsub.bf16 %v2000, 1073758208
    %v2005 = vand.u32 2147450879, %v2001
    %v2006 = vand.u32 2147450879, %v2002
    %v2007 = vand.u32 2147450879, %v2003
    %v2008 = vand.u32 2147450879, %v2004
    %v2009 = vsub.bf16 1073758208, %v2005
    %v2010 = vsub.bf16 1073758208, %v2006
    %v2011 = vsub.bf16 1073758208, %v2007
    %v2012 = vsub.bf16 1073758208, %v2008
    %v2013 = vmax.bf16 %v2009, 0
    %v2014 = vmax.bf16 %v2010, 0
    %v2015 = vmax.bf16 %v2011, 0
    %v2016 = vmax.bf16 %v2012, 0
    %v2017 = vsub.bf16 1065369472, %v2005
    %v2018 = vsub.bf16 1065369472, %v2006
    %v2019 = vsub.bf16 1065369472, %v2007
    %v2020 = vsub.bf16 1065369472, %v2008
    %v2021 = vmax.bf16 %v2017, 0
    %v2022 = vmax.bf16 %v2018, 0
    %v2023 = vmax.bf16 %v2019, 0
    %v2024 = vmax.bf16 %v2020, 0
    %v2025 = vmul.bf16 %v2013, %v2013
    %v2026 = vmul.bf16 %v2014, %v2014
    %v2027 = vmul.bf16 %v2015, %v2015
    %v2028 = vmul.bf16 %v2016, %v2016
    %v2029 = vmul.bf16 %v2025, %v2013
    %v2030 = vmul.bf16 %v2026, %v2014
    %v2031 = vmul.bf16 %v2027, %v2015
    %v2032 = vmul.bf16 %v2028, %v2016
    %v2033 = vmul.bf16 %v2021, %v2021
    %v2034 = vmul.bf16 %v2022, %v2022
    %v2035 = vmul.bf16 %v2023, %v2023
    %v2036 = vmul.bf16 %v2024, %v2024
    %v2037 = vmul.bf16 %v2033, %v2021
    %v2038 = vmul.bf16 %v2034, %v2022
    %v2039 = vmul.bf16 %v2035, %v2023
    %v2040 = vmul.bf16 %v2036, %v2024
    %v2041 = vmul.bf16 %v2037, 1082146944
    %v2042 = vmul.bf16 %v2038, 1082146944
    %v2043 = vmul.bf16 %v2039, 1082146944
    %v2044 = vmul.bf16 %v2040, 1082146944
    %v2045 = vsub.bf16 %v2029, %v2041
    %v2046 = vsub.bf16 %v2030, %v2042
    %v2047 = vsub.bf16 %v2031, %v2043
    %v2048 = vsub.bf16 %v2032, %v2044
    %v2049 = vmul.bf16 %v2045, 1043021355
    %v2050 = vmul.bf16 %v2046, 1043021355
    %v2051 = vmul.bf16 %v2047, 1043021355
    %v2052 = vmul.bf16 %v2048, 1043021355
    %v2057 = vunpack.c.l.b16 %v2049
    %v2058 = vunpack.c.l.b16 %v2050
    %v2059 = vunpack.c.l.b16 %v2051
    %v2060 = vunpack.c.l.b16 %v2052
    %v2061 = vpack.c.b16 %v2058, %v2057
    %v2062 = vpack.c.b16 %v2060, %v2059
    %2065 = vst [vmem:[#allocation2 + $0x70] sm:$0xff] %v2061
    %2066 = vst [vmem:[#allocation2 + $0x78] sm:$0xff] %v2062
    %v2067 = vsub.bf16 %v1581, 1088438496
    %v2068 = vsub.bf16 %v1582, 1088438496
    %v2069 = vsub.bf16 %v1583, 1088438496
    %v2070 = vsub.bf16 %v1584, 1088438496
    %v2071 = vsub.bf16 %v2067, 1073758208
    %v2072 = vsub.bf16 %v2068, 1073758208
    %v2073 = vsub.bf16 %v2069, 1073758208
    %v2074 = vsub.bf16 %v2070, 1073758208
    %v2075 = vand.u32 2147450879, %v2071
    %v2076 = vand.u32 2147450879, %v2072
    %v2077 = vand.u32 2147450879, %v2073
    %v2078 = vand.u32 2147450879, %v2074
    %v2079 = vsub.bf16 1073758208, %v2075
    %v2080 = vsub.bf16 1073758208, %v2076
    %v2081 = vsub.bf16 1073758208, %v2077
    %v2082 = vsub.bf16 1073758208, %v2078
    %v2083 = vmax.bf16 %v2079, 0
    %v2084 = vmax.bf16 %v2080, 0
    %v2085 = vmax.bf16 %v2081, 0
    %v2086 = vmax.bf16 %v2082, 0
    %v2087 = vsub.bf16 1065369472, %v2075
    %v2088 = vsub.bf16 1065369472, %v2076
    %v2089 = vsub.bf16 1065369472, %v2077
    %v2090 = vsub.bf16 1065369472, %v2078
    %v2091 = vmax.bf16 %v2087, 0
    %v2092 = vmax.bf16 %v2088, 0
    %v2093 = vmax.bf16 %v2089, 0
    %v2094 = vmax.bf16 %v2090, 0
    %v2095 = vmul.bf16 %v2083, %v2083
    %v2096 = vmul.bf16 %v2084, %v2084
    %v2097 = vmul.bf16 %v2085, %v2085
    %v2098 = vmul.bf16 %v2086, %v2086
    %v2099 = vmul.bf16 %v2095, %v2083
    %v2100 = vmul.bf16 %v2096, %v2084
    %v2101 = vmul.bf16 %v2097, %v2085
    %v2102 = vmul.bf16 %v2098, %v2086
    %v2103 = vmul.bf16 %v2091, %v2091
    %v2104 = vmul.bf16 %v2092, %v2092
    %v2105 = vmul.bf16 %v2093, %v2093
    %v2106 = vmul.bf16 %v2094, %v2094
    %v2107 = vmul.bf16 %v2103, %v2091
    %v2108 = vmul.bf16 %v2104, %v2092
    %v2109 = vmul.bf16 %v2105, %v2093
    %v2110 = vmul.bf16 %v2106, %v2094
    %v2111 = vmul.bf16 %v2107, 1082146944
    %v2112 = vmul.bf16 %v2108, 1082146944
    %v2113 = vmul.bf16 %v2109, 1082146944
    %v2114 = vmul.bf16 %v2110, 1082146944
    %v2115 = vsub.bf16 %v2099, %v2111
    %v2116 = vsub.bf16 %v2100, %v2112
    %v2117 = vsub.bf16 %v2101, %v2113
    %v2118 = vsub.bf16 %v2102, %v2114
    %v2119 = vmul.bf16 %v2115, 1043021355
    %v2120 = vmul.bf16 %v2116, 1043021355
    %v2121 = vmul.bf16 %v2117, 1043021355
    %v2122 = vmul.bf16 %v2118, 1043021355
    %v2127 = vunpack.c.l.b16 %v2119
    %v2128 = vunpack.c.l.b16 %v2120
    %v2129 = vunpack.c.l.b16 %v2121
    %v2130 = vunpack.c.l.b16 %v2122
    %v2131 = vpack.c.b16 %v2128, %v2127
    %v2132 = vpack.c.b16 %v2130, %v2129
    %2135 = vst [vmem:[#allocation2 + $0x80] sm:$0xff] %v2131
    %2136 = vst [vmem:[#allocation2 + $0x88] sm:$0xff] %v2132
    %v2137 = vld [vmem:[#allocation6] sm:$0xff]
    %v2138 = vld [vmem:[#allocation6 + $0x8] sm:$0xf]
    %v2139 = vld [vmem:[#allocation6 + $0xc] sm:$0xff]
    %v2140 = vld [vmem:[#allocation6 + $0x14] sm:$0xf]
    %v2141 = vld [vmem:[#allocation2] sm:$0xff]
    %v2142 = vld [vmem:[#allocation2 + $0x8] sm:$0xff]
    %v2143 = vld [vmem:[#allocation2 + $0x10] sm:$0xff]
    %v2144 = vld [vmem:[#allocation2 + $0x18] sm:$0xff]
    %v2145 = vld [vmem:[#allocation2 + $0x20] sm:$0xff]
    %v2146 = vld [vmem:[#allocation2 + $0x28] sm:$0xff]
    %v2147 = vld [vmem:[#allocation2 + $0x30] sm:$0xff]
    %v2148 = vld [vmem:[#allocation2 + $0x38] sm:$0xff]
    %v2149 = vld [vmem:[#allocation2 + $0x40] sm:$0xff]
    %v2150 = vld [vmem:[#allocation2 + $0x48] sm:$0xff]
    %v2151 = vld [vmem:[#allocation2 + $0x50] sm:$0xff]
    %v2152 = vld [vmem:[#allocation2 + $0x58] sm:$0xff]
    %v2153 = vld [vmem:[#allocation2 + $0x60] sm:$0xff]
    %v2154 = vld [vmem:[#allocation2 + $0x68] sm:$0xff]
    %v2155 = vld [vmem:[#allocation2 + $0x70] sm:$0xff]
    %v2156 = vld [vmem:[#allocation2 + $0x78] sm:$0xff]
    %v2157 = vld [vmem:[#allocation2 + $0x80] sm:$0xff]
    %v2158 = vld [vmem:[#allocation2 + $0x88] sm:$0xff]
    %v2163 = vunpack.c.l.b16 %v2137
    %v2164 = vunpack.c.h.b16 %v2137
    %v2165 = vunpack.c.l.b16 %v2138
    %v2166 = vunpack.c.l.b16 %v2139
    %v2167 = vunpack.c.h.b16 %v2139
    %v2168 = vunpack.c.l.b16 %v2140
    %v2169 = vpack.c.b16 %v2166, %v2163
    %v2170 = vpack.c.b16 %v2167, %v2164
    %v2171 = vpack.c.b16 %v2168, %v2165
    %v2175 = vsel %vm698, %v2171, 0
    %2177 = vmatprep.subr.bf16.mxu0 0
    %2178 = vmatpush1.bf16.msra.mxu0 %v2141
    %2179 = vmatprep.subr.bf16.mxu0 0
    %2180 = vmatpush1.bf16.msra.mxu0 %v2142
    %2181 = vmatprep.subr.bf16.mxu0 0
    %2182 = vmatpush1.bf16.msra.mxu0 %v2143
    %2183 = vmatprep.subr.bf16.mxu0 0
    %2184 = vmatpush1.bf16.msra.mxu0 %v2144
    %2185 = vmatprep.subr.bf16.mxu0 0
    %2186 = vmatpush1.bf16.msra.mxu0 %v2145
    %2187 = vmatprep.subr.bf16.mxu0 0
    %2188 = vmatpush1.bf16.msra.mxu0 %v2146
    %2189 = vmatprep.subr.bf16.mxu0 0
    %2190 = vmatpush1.bf16.msra.mxu0 %v2147
    %2191 = vmatprep.subr.bf16.mxu0 0
    %2192 = vmatpush1.bf16.msra.mxu0 %v2148
    %2193 = vmatprep.subr.bf16.mxu0 0
    %2194 = vmatpush1.bf16.msra.mxu0 %v2149
    %2195 = vmatprep.subr.bf16.mxu0 0
    %2196 = vmatpush1.bf16.msra.mxu0 %v2150
    %2197 = vmatprep.subr.bf16.mxu0 0
    %2198 = vmatpush1.bf16.msra.mxu0 %v2151
    %2199 = vmatprep.subr.bf16.mxu0 0
    %2200 = vmatpush1.bf16.msra.mxu0 %v2152
    %2201 = vmatprep.subr.bf16.mxu0 0
    %2202 = vmatpush1.bf16.msra.mxu0 %v2153
    %2203 = vmatprep.subr.bf16.mxu0 0
    %2204 = vmatpush1.bf16.msra.mxu0 %v2154
    %2205 = vmatprep.subr.bf16.mxu0 0
    %2206 = vmatpush1.bf16.msra.mxu0 %v2155
    %2207 = vmatprep.subr.bf16.mxu0 0
    %2208 = vmatpush1.bf16.msra.mxu0 %v2156
    %2209 = vmatprep.mubr.bf16.mxu0 %v2170
    %2210 = vmatmul.mubr.bf16.gmra.mrb[0].mxu0 %v2169
    %v2211 = vpop.f32.mrb[0].mxu0
    %v2212 = vadd.f32 0.0, %v2211
    %v2213 = vpop.f32.mrb[0].mxu0
    %v2214 = vpop.f32.mrb[0].mxu0
    %v2215 = vadd.f32 0.0, %v2214
    %v2216 = vpop.f32.mrb[0].mxu0
    %2217 = vdwg.mxu0
    %2218 = vmatprep.subr.bf16.mxu0 0
    %2219 = vmatpush1.bf16.msra.mxu0 %v2157
    %2220 = vmatprep.subr.bf16.mxu0 0
    %2221 = vmatpush1.bf16.msra.mxu0 %v2158
    %2222 = vmatprep.subr.bf16.mxu0 0
    %2223 = vmatpush1.bf16.msra.mxu0 0
    %2224 = vmatprep.subr.bf16.mxu0 0
    %2225 = vmatpush1.bf16.msra.mxu0 0
    %2226 = vmatprep.subr.bf16.mxu0 0
    %2227 = vmatpush1.bf16.msra.mxu0 0
    %2228 = vmatprep.subr.bf16.mxu0 0
    %2229 = vmatpush1.bf16.msra.mxu0 0
    %2230 = vmatprep.subr.bf16.mxu0 0
    %2231 = vmatpush1.bf16.msra.mxu0 0
    %2232 = vmatprep.subr.bf16.mxu0 0
    %2233 = vmatpush1.bf16.msra.mxu0 0
    %2234 = vmatprep.subr.bf16.mxu0 0
    %2235 = vmatpush1.bf16.msra.mxu0 0
    %2236 = vmatprep.subr.bf16.mxu0 0
    %2237 = vmatpush1.bf16.msra.mxu0 0
    %2238 = vmatprep.subr.bf16.mxu0 0
    %2239 = vmatpush1.bf16.msra.mxu0 0
    %2240 = vmatprep.subr.bf16.mxu0 0
    %2241 = vmatpush1.bf16.msra.mxu0 0
    %2242 = vmatprep.subr.bf16.mxu0 0
    %2243 = vmatpush1.bf16.msra.mxu0 0
    %2244 = vmatprep.subr.bf16.mxu0 0
    %2245 = vmatpush1.bf16.msra.mxu0 0
    %2246 = vmatprep.subr.bf16.mxu0 0
    %2247 = vmatpush1.bf16.msra.mxu0 0
    %2248 = vmatprep.subr.bf16.mxu0 0
    %2249 = vmatpush1.bf16.msra.mxu0 0
    %2250 = vmatprep.mubr.bf16.mxu0 0
    %2251 = vmatmul.mubr.bf16.gmra.mrb[0].mxu0 %v2175
    %v2252 = vpop.f32.mrb[0].mxu0
    %v2253 = vadd.f32 %v2212, %v2252
    %v2254 = vpop.f32.mrb[0].mxu0
    %v2255 = vpop.f32.mrb[0].mxu0
    %v2256 = vadd.f32 %v2215, %v2255
    %v2257 = vpop.f32.mrb[0].mxu0
    %2258 = vdwg.mxu0
    %v2259 = vld [vmem:[#allocation8] sm:$0xff]
    %v2260 = vld [vmem:[#allocation8 + $0x8] sm:$0xff]
    %v2261 = vmax.f32 %v2259, %v2253
    %v2262 = vmax.f32 %v2260, %v2256
    %2263 = vst [vmem:[#allocation8] sm:$0xff] %v2261
    %2264 = vst [vmem:[#allocation8 + $0x8] sm:$0xff] %v2262
    %s2265 = scalar_lea.vmem [#allocation3], 48
    %v2266 = vld [vmem:[%s2265] sm:$0xf]
    %v2267 = vld [vmem:[%s2265 + $0x4] sm:$0xf]
    %v2268 = vld [vmem:[%s2265 + $0x8] sm:$0xf]
    %v2269 = vld [vmem:[%s2265 + $0xc] sm:$0xf]
    %v2270 = vxor.u32 %v2266, 2147516416
    %v2271 = vxor.u32 %v2267, 2147516416
    %v2272 = vxor.u32 %v2268, 2147516416
    %v2273 = vxor.u32 %v2269, 2147516416
    %v2275 = vmul.bf16 %v2270, 1069105081
    %v2276 = vpow.bf16.pop %v2275
    %v2278 = vmul.bf16 %v2271, 1069105081
    %v2279 = vpow.bf16.pop %v2278
    %v2281 = vmul.bf16 %v2272, 1069105081
    %v2282 = vpow.bf16.pop %v2281
    %v2284 = vmul.bf16 %v2273, 1069105081
    %v2285 = vpow.bf16.pop %v2284
    %v2286 = vadd.bf16 %v2276, 1065369472
    %v2287 = vadd.bf16 %v2279, 1065369472
    %v2288 = vadd.bf16 %v2282, 1065369472
    %v2289 = vadd.bf16 %v2285, 1065369472
    %v2290 = vrcp.bf16.pop %v2286
    %v2291 = vmul.bf16 1065369472, %v2290
    %v2292 = vrcp.bf16.pop %v2287
    %v2293 = vmul.bf16 1065369472, %v2292
    %v2294 = vrcp.bf16.pop %v2288
    %v2295 = vmul.bf16 1065369472, %v2294
    %v2296 = vrcp.bf16.pop %v2289
    %v2297 = vmul.bf16 1065369472, %v2296
    %v2298 = vmul.bf16 %v2266, %v2291
    %v2299 = vmul.bf16 %v2267, %v2293
    %v2300 = vmul.bf16 %v2268, %v2295
    %v2301 = vmul.bf16 %v2269, %v2297
    %v2306 = vunpack.c.l.b16 %v2298
    %v2307 = vunpack.c.l.b16 %v2299
    %v2308 = vunpack.c.l.b16 %v2300
    %v2309 = vunpack.c.l.b16 %v2301
    %v2310 = vpack.c.b16 %v2307, %v2306
    %v2311 = vpack.c.b16 %v2309, %v2308
    %2314 = vst [vmem:[%s835] sm:$0xff] %v2310
    %2315 = vst [vmem:[%s835 + $0x8] sm:$0xff] %v2311
    %v2316 = vsub.bf16 %v2266, 3222126605
    %v2317 = vsub.bf16 %v2267, 3222126605
    %v2318 = vsub.bf16 %v2268, 3222126605
    %v2319 = vsub.bf16 %v2269, 3222126605
    %v2320 = vmul.bf16 %v2316, 1075855392
    %v2321 = vmul.bf16 %v2317, 1075855392
    %v2322 = vmul.bf16 %v2318, 1075855392
    %v2323 = vmul.bf16 %v2319, 1075855392
    %v2324 = vsub.bf16 %v2320, 1073758208
    %v2325 = vsub.bf16 %v2321, 1073758208
    %v2326 = vsub.bf16 %v2322, 1073758208
    %v2327 = vsub.bf16 %v2323, 1073758208
    %v2328 = vand.u32 2147450879, %v2324
    %v2329 = vand.u32 2147450879, %v2325
    %v2330 = vand.u32 2147450879, %v2326
    %v2331 = vand.u32 2147450879, %v2327
    %v2332 = vsub.bf16 1073758208, %v2328
    %v2333 = vsub.bf16 1073758208, %v2329
    %v2334 = vsub.bf16 1073758208, %v2330
    %v2335 = vsub.bf16 1073758208, %v2331
    %v2336 = vmax.bf16 %v2332, 0
    %v2337 = vmax.bf16 %v2333, 0
    %v2338 = vmax.bf16 %v2334, 0
    %v2339 = vmax.bf16 %v2335, 0
    %v2340 = vsub.bf16 1065369472, %v2328
    %v2341 = vsub.bf16 1065369472, %v2329
    %v2342 = vsub.bf16 1065369472, %v2330
    %v2343 = vsub.bf16 1065369472, %v2331
    %v2344 = vmax.bf16 %v2340, 0
    %v2345 = vmax.bf16 %v2341, 0
    %v2346 = vmax.bf16 %v2342, 0
    %v2347 = vmax.bf16 %v2343, 0
    %v2348 = vmul.bf16 %v2336, %v2336
    %v2349 = vmul.bf16 %v2337, %v2337
    %v2350 = vmul.bf16 %v2338, %v2338
    %v2351 = vmul.bf16 %v2339, %v2339
    %v2352 = vmul.bf16 %v2348, %v2336
    %v2353 = vmul.bf16 %v2349, %v2337
    %v2354 = vmul.bf16 %v2350, %v2338
    %v2355 = vmul.bf16 %v2351, %v2339
    %v2356 = vmul.bf16 %v2344, %v2344
    %v2357 = vmul.bf16 %v2345, %v2345
    %v2358 = vmul.bf16 %v2346, %v2346
    %v2359 = vmul.bf16 %v2347, %v2347
    %v2360 = vmul.bf16 %v2356, %v2344
    %v2361 = vmul.bf16 %v2357, %v2345
    %v2362 = vmul.bf16 %v2358, %v2346
    %v2363 = vmul.bf16 %v2359, %v2347
    %v2364 = vmul.bf16 %v2360, 1082146944
    %v2365 = vmul.bf16 %v2361, 1082146944
    %v2366 = vmul.bf16 %v2362, 1082146944
    %v2367 = vmul.bf16 %v2363, 1082146944
    %v2368 = vsub.bf16 %v2352, %v2364
    %v2369 = vsub.bf16 %v2353, %v2365
    %v2370 = vsub.bf16 %v2354, %v2366
    %v2371 = vsub.bf16 %v2355, %v2367
    %v2372 = vmul.bf16 %v2368, 1043021355
    %v2373 = vmul.bf16 %v2369, 1043021355
    %v2374 = vmul.bf16 %v2370, 1043021355
    %v2375 = vmul.bf16 %v2371, 1043021355
    %v2380 = vunpack.c.l.b16 %v2372
    %v2381 = vunpack.c.l.b16 %v2373
    %v2382 = vunpack.c.l.b16 %v2374
    %v2383 = vunpack.c.l.b16 %v2375
    %v2384 = vpack.c.b16 %v2381, %v2380
    %v2385 = vpack.c.b16 %v2383, %v2382
    %2388 = vst [vmem:[%s835 + $0x10] sm:$0xff] %v2384
    %2389 = vst [vmem:[%s835 + $0x18] sm:$0xff] %v2385
    %v2390 = vsub.bf16 %v2320, 1065369472
    %v2391 = vsub.bf16 %v2321, 1065369472
    %v2392 = vsub.bf16 %v2322, 1065369472
    %v2393 = vsub.bf16 %v2323, 1065369472
    %v2394 = vsub.bf16 %v2390, 1073758208
    %v2395 = vsub.bf16 %v2391, 1073758208
    %v2396 = vsub.bf16 %v2392, 1073758208
    %v2397 = vsub.bf16 %v2393, 1073758208
    %v2398 = vand.u32 2147450879, %v2394
    %v2399 = vand.u32 2147450879, %v2395
    %v2400 = vand.u32 2147450879, %v2396
    %v2401 = vand.u32 2147450879, %v2397
    %v2402 = vsub.bf16 1073758208, %v2398
    %v2403 = vsub.bf16 1073758208, %v2399
    %v2404 = vsub.bf16 1073758208, %v2400
    %v2405 = vsub.bf16 1073758208, %v2401
    %v2406 = vmax.bf16 %v2402, 0
    %v2407 = vmax.bf16 %v2403, 0
    %v2408 = vmax.bf16 %v2404, 0
    %v2409 = vmax.bf16 %v2405, 0
    %v2410 = vsub.bf16 1065369472, %v2398
    %v2411 = vsub.bf16 1065369472, %v2399
    %v2412 = vsub.bf16 1065369472, %v2400
    %v2413 = vsub.bf16 1065369472, %v2401
    %v2414 = vmax.bf16 %v2410, 0
    %v2415 = vmax.bf16 %v2411, 0
    %v2416 = vmax.bf16 %v2412, 0
    %v2417 = vmax.bf16 %v2413, 0
    %v2418 = vmul.bf16 %v2406, %v2406
    %v2419 = vmul.bf16 %v2407, %v2407
    %v2420 = vmul.bf16 %v2408, %v2408
    %v2421 = vmul.bf16 %v2409, %v2409
    %v2422 = vmul.bf16 %v2418, %v2406
    %v2423 = vmul.bf16 %v2419, %v2407
    %v2424 = vmul.bf16 %v2420, %v2408
    %v2425 = vmul.bf16 %v2421, %v2409
    %v2426 = vmul.bf16 %v2414, %v2414
    %v2427 = vmul.bf16 %v2415, %v2415
    %v2428 = vmul.bf16 %v2416, %v2416
    %v2429 = vmul.bf16 %v2417, %v2417
    %v2430 = vmul.bf16 %v2426, %v2414
    %v2431 = vmul.bf16 %v2427, %v2415
    %v2432 = vmul.bf16 %v2428, %v2416
    %v2433 = vmul.bf16 %v2429, %v2417
    %v2434 = vmul.bf16 %v2430, 1082146944
    %v2435 = vmul.bf16 %v2431, 1082146944
    %v2436 = vmul.bf16 %v2432, 1082146944
    %v2437 = vmul.bf16 %v2433, 1082146944
    %v2438 = vsub.bf16 %v2422, %v2434
    %v2439 = vsub.bf16 %v2423, %v2435
    %v2440 = vsub.bf16 %v2424, %v2436
    %v2441 = vsub.bf16 %v2425, %v2437
    %v2442 = vmul.bf16 %v2438, 1043021355
    %v2443 = vmul.bf16 %v2439, 1043021355
    %v2444 = vmul.bf16 %v2440, 1043021355
    %v2445 = vmul.bf16 %v2441, 1043021355
    %v2450 = vunpack.c.l.b16 %v2442
    %v2451 = vunpack.c.l.b16 %v2443
    %v2452 = vunpack.c.l.b16 %v2444
    %v2453 = vunpack.c.l.b16 %v2445
    %v2454 = vpack.c.b16 %v2451, %v2450
    %v2455 = vpack.c.b16 %v2453, %v2452
    %2458 = vst [vmem:[%s835 + $0x20] sm:$0xff] %v2454
    %2459 = vst [vmem:[%s835 + $0x28] sm:$0xff] %v2455
    %v2460 = vsub.bf16 %v2324, 1073758208
    %v2461 = vsub.bf16 %v2325, 1073758208
    %v2462 = vsub.bf16 %v2326, 1073758208
    %v2463 = vsub.bf16 %v2327, 1073758208
    %v2464 = vand.u32 2147450879, %v2460
    %v2465 = vand.u32 2147450879, %v2461
    %v2466 = vand.u32 2147450879, %v2462
    %v2467 = vand.u32 2147450879, %v2463
    %v2468 = vsub.bf16 1073758208, %v2464
    %v2469 = vsub.bf16 1073758208, %v2465
    %v2470 = vsub.bf16 1073758208, %v2466
    %v2471 = vsub.bf16 1073758208, %v2467
    %v2472 = vmax.bf16 %v2468, 0
    %v2473 = vmax.bf16 %v2469, 0
    %v2474 = vmax.bf16 %v2470, 0
    %v2475 = vmax.bf16 %v2471, 0
    %v2476 = vsub.bf16 1065369472, %v2464
    %v2477 = vsub.bf16 1065369472, %v2465
    %v2478 = vsub.bf16 1065369472, %v2466
    %v2479 = vsub.bf16 1065369472, %v2467
    %v2480 = vmax.bf16 %v2476, 0
    %v2481 = vmax.bf16 %v2477, 0
    %v2482 = vmax.bf16 %v2478, 0
    %v2483 = vmax.bf16 %v2479, 0
    %v2484 = vmul.bf16 %v2472, %v2472
    %v2485 = vmul.bf16 %v2473, %v2473
    %v2486 = vmul.bf16 %v2474, %v2474
    %v2487 = vmul.bf16 %v2475, %v2475
    %v2488 = vmul.bf16 %v2484, %v2472
    %v2489 = vmul.bf16 %v2485, %v2473
    %v2490 = vmul.bf16 %v2486, %v2474
    %v2491 = vmul.bf16 %v2487, %v2475
    %v2492 = vmul.bf16 %v2480, %v2480
    %v2493 = vmul.bf16 %v2481, %v2481
    %v2494 = vmul.bf16 %v2482, %v2482
    %v2495 = vmul.bf16 %v2483, %v2483
    %v2496 = vmul.bf16 %v2492, %v2480
    %v2497 = vmul.bf16 %v2493, %v2481
    %v2498 = vmul.bf16 %v2494, %v2482
    %v2499 = vmul.bf16 %v2495, %v2483
    %v2500 = vmul.bf16 %v2496, 1082146944
    %v2501 = vmul.bf16 %v2497, 1082146944
    %v2502 = vmul.bf16 %v2498, 1082146944
    %v2503 = vmul.bf16 %v2499, 1082146944
    %v2504 = vsub.bf16 %v2488, %v2500
    %v2505 = vsub.bf16 %v2489, %v2501
    %v2506 = vsub.bf16 %v2490, %v2502
    %v2507 = vsub.bf16 %v2491, %v2503
    %v2508 = vmul.bf16 %v2504, 1043021355
    %v2509 = vmul.bf16 %v2505, 1043021355
    %v2510 = vmul.bf16 %v2506, 1043021355
    %v2511 = vmul.bf16 %v2507, 1043021355
    %v2516 = vunpack.c.l.b16 %v2508
    %v2517 = vunpack.c.l.b16 %v2509
    %v2518 = vunpack.c.l.b16 %v2510
    %v2519 = vunpack.c.l.b16 %v2511
    %v2520 = vpack.c.b16 %v2517, %v2516
    %v2521 = vpack.c.b16 %v2519, %v2518
    %2524 = vst [vmem:[%s835 + $0x30] sm:$0xff] %v2520
    %2525 = vst [vmem:[%s835 + $0x38] sm:$0xff] %v2521
    %v2526 = vsub.bf16 %v2320, 1077952576
    %v2527 = vsub.bf16 %v2321, 1077952576
    %v2528 = vsub.bf16 %v2322, 1077952576
    %v2529 = vsub.bf16 %v2323, 1077952576
    %v2530 = vsub.bf16 %v2526, 1073758208
    %v2531 = vsub.bf16 %v2527, 1073758208
    %v2532 = vsub.bf16 %v2528, 1073758208
    %v2533 = vsub.bf16 %v2529, 1073758208
    %v2534 = vand.u32 2147450879, %v2530
    %v2535 = vand.u32 2147450879, %v2531
    %v2536 = vand.u32 2147450879, %v2532
    %v2537 = vand.u32 2147450879, %v2533
    %v2538 = vsub.bf16 1073758208, %v2534
    %v2539 = vsub.bf16 1073758208, %v2535
    %v2540 = vsub.bf16 1073758208, %v2536
    %v2541 = vsub.bf16 1073758208, %v2537
    %v2542 = vmax.bf16 %v2538, 0
    %v2543 = vmax.bf16 %v2539, 0
    %v2544 = vmax.bf16 %v2540, 0
    %v2545 = vmax.bf16 %v2541, 0
    %v2546 = vsub.bf16 1065369472, %v2534
    %v2547 = vsub.bf16 1065369472, %v2535
    %v2548 = vsub.bf16 1065369472, %v2536
    %v2549 = vsub.bf16 1065369472, %v2537
    %v2550 = vmax.bf16 %v2546, 0
    %v2551 = vmax.bf16 %v2547, 0
    %v2552 = vmax.bf16 %v2548, 0
    %v2553 = vmax.bf16 %v2549, 0
    %v2554 = vmul.bf16 %v2542, %v2542
    %v2555 = vmul.bf16 %v2543, %v2543
    %v2556 = vmul.bf16 %v2544, %v2544
    %v2557 = vmul.bf16 %v2545, %v2545
    %v2558 = vmul.bf16 %v2554, %v2542
    %v2559 = vmul.bf16 %v2555, %v2543
    %v2560 = vmul.bf16 %v2556, %v2544
    %v2561 = vmul.bf16 %v2557, %v2545
    %v2562 = vmul.bf16 %v2550, %v2550
    %v2563 = vmul.bf16 %v2551, %v2551
    %v2564 = vmul.bf16 %v2552, %v2552
    %v2565 = vmul.bf16 %v2553, %v2553
    %v2566 = vmul.bf16 %v2562, %v2550
    %v2567 = vmul.bf16 %v2563, %v2551
    %v2568 = vmul.bf16 %v2564, %v2552
    %v2569 = vmul.bf16 %v2565, %v2553
    %v2570 = vmul.bf16 %v2566, 1082146944
    %v2571 = vmul.bf16 %v2567, 1082146944
    %v2572 = vmul.bf16 %v2568, 1082146944
    %v2573 = vmul.bf16 %v2569, 1082146944
    %v2574 = vsub.bf16 %v2558, %v2570
    %v2575 = vsub.bf16 %v2559, %v2571
    %v2576 = vsub.bf16 %v2560, %v2572
    %v2577 = vsub.bf16 %v2561, %v2573
    %v2578 = vmul.bf16 %v2574, 1043021355
    %v2579 = vmul.bf16 %v2575, 1043021355
    %v2580 = vmul.bf16 %v2576, 1043021355
    %v2581 = vmul.bf16 %v2577, 1043021355
    %v2586 = vunpack.c.l.b16 %v2578
    %v2587 = vunpack.c.l.b16 %v2579
    %v2588 = vunpack.c.l.b16 %v2580
    %v2589 = vunpack.c.l.b16 %v2581
    %v2590 = vpack.c.b16 %v2587, %v2586
    %v2591 = vpack.c.b16 %v2589, %v2588
    %2594 = vst [vmem:[%s835 + $0x40] sm:$0xff] %v2590
    %2595 = vst [vmem:[%s835 + $0x48] sm:$0xff] %v2591
    %v2596 = vsub.bf16 %v2320, 1082146944
    %v2597 = vsub.bf16 %v2321, 1082146944
    %v2598 = vsub.bf16 %v2322, 1082146944
    %v2599 = vsub.bf16 %v2323, 1082146944
    %v2600 = vsub.bf16 %v2596, 1073758208
    %v2601 = vsub.bf16 %v2597, 1073758208
    %v2602 = vsub.bf16 %v2598, 1073758208
    %v2603 = vsub.bf16 %v2599, 1073758208
    %v2604 = vand.u32 2147450879, %v2600
    %v2605 = vand.u32 2147450879, %v2601
    %v2606 = vand.u32 2147450879, %v2602
    %v2607 = vand.u32 2147450879, %v2603
    %v2608 = vsub.bf16 1073758208, %v2604
    %v2609 = vsub.bf16 1073758208, %v2605
    %v2610 = vsub.bf16 1073758208, %v2606
    %v2611 = vsub.bf16 1073758208, %v2607
    %v2612 = vmax.bf16 %v2608, 0
    %v2613 = vmax.bf16 %v2609, 0
    %v2614 = vmax.bf16 %v2610, 0
    %v2615 = vmax.bf16 %v2611, 0
    %v2616 = vsub.bf16 1065369472, %v2604
    %v2617 = vsub.bf16 1065369472, %v2605
    %v2618 = vsub.bf16 1065369472, %v2606
    %v2619 = vsub.bf16 1065369472, %v2607
    %v2620 = vmax.bf16 %v2616, 0
    %v2621 = vmax.bf16 %v2617, 0
    %v2622 = vmax.bf16 %v2618, 0
    %v2623 = vmax.bf16 %v2619, 0
    %v2624 = vmul.bf16 %v2612, %v2612
    %v2625 = vmul.bf16 %v2613, %v2613
    %v2626 = vmul.bf16 %v2614, %v2614
    %v2627 = vmul.bf16 %v2615, %v2615
    %v2628 = vmul.bf16 %v2624, %v2612
    %v2629 = vmul.bf16 %v2625, %v2613
    %v2630 = vmul.bf16 %v2626, %v2614
    %v2631 = vmul.bf16 %v2627, %v2615
    %v2632 = vmul.bf16 %v2620, %v2620
    %v2633 = vmul.bf16 %v2621, %v2621
    %v2634 = vmul.bf16 %v2622, %v2622
    %v2635 = vmul.bf16 %v2623, %v2623
    %v2636 = vmul.bf16 %v2632, %v2620
    %v2637 = vmul.bf16 %v2633, %v2621
    %v2638 = vmul.bf16 %v2634, %v2622
    %v2639 = vmul.bf16 %v2635, %v2623
    %v2640 = vmul.bf16 %v2636, 1082146944
    %v2641 = vmul.bf16 %v2637, 1082146944
    %v2642 = vmul.bf16 %v2638, 1082146944
    %v2643 = vmul.bf16 %v2639, 1082146944
    %v2644 = vsub.bf16 %v2628, %v2640
    %v2645 = vsub.bf16 %v2629, %v2641
    %v2646 = vsub.bf16 %v2630, %v2642
    %v2647 = vsub.bf16 %v2631, %v2643
    %v2648 = vmul.bf16 %v2644, 1043021355
    %v2649 = vmul.bf16 %v2645, 1043021355
    %v2650 = vmul.bf16 %v2646, 1043021355
    %v2651 = vmul.bf16 %v2647, 1043021355
    %v2656 = vunpack.c.l.b16 %v2648
    %v2657 = vunpack.c.l.b16 %v2649
    %v2658 = vunpack.c.l.b16 %v2650
    %v2659 = vunpack.c.l.b16 %v2651
    %v2660 = vpack.c.b16 %v2657, %v2656
    %v2661 = vpack.c.b16 %v2659, %v2658
    %2664 = vst [vmem:[%s835 + $0x50] sm:$0xff] %v2660
    %2665 = vst [vmem:[%s835 + $0x58] sm:$0xff] %v2661
    %v2666 = vsub.bf16 %v2320, 1084244128
    %v2667 = vsub.bf16 %v2321, 1084244128
    %v2668 = vsub.bf16 %v2322, 1084244128
    %v2669 = vsub.bf16 %v2323, 1084244128
    %v2670 = vsub.bf16 %v2666, 1073758208
    %v2671 = vsub.bf16 %v2667, 1073758208
    %v2672 = vsub.bf16 %v2668, 1073758208
    %v2673 = vsub.bf16 %v2669, 1073758208
    %v2674 = vand.u32 2147450879, %v2670
    %v2675 = vand.u32 2147450879, %v2671
    %v2676 = vand.u32 2147450879, %v2672
    %v2677 = vand.u32 2147450879, %v2673
    %v2678 = vsub.bf16 1073758208, %v2674
    %v2679 = vsub.bf16 1073758208, %v2675
    %v2680 = vsub.bf16 1073758208, %v2676
    %v2681 = vsub.bf16 1073758208, %v2677
    %v2682 = vmax.bf16 %v2678, 0
    %v2683 = vmax.bf16 %v2679, 0
    %v2684 = vmax.bf16 %v2680, 0
    %v2685 = vmax.bf16 %v2681, 0
    %v2686 = vsub.bf16 1065369472, %v2674
    %v2687 = vsub.bf16 1065369472, %v2675
    %v2688 = vsub.bf16 1065369472, %v2676
    %v2689 = vsub.bf16 1065369472, %v2677
    %v2690 = vmax.bf16 %v2686, 0
    %v2691 = vmax.bf16 %v2687, 0
    %v2692 = vmax.bf16 %v2688, 0
    %v2693 = vmax.bf16 %v2689, 0
    %v2694 = vmul.bf16 %v2682, %v2682
    %v2695 = vmul.bf16 %v2683, %v2683
    %v2696 = vmul.bf16 %v2684, %v2684
    %v2697 = vmul.bf16 %v2685, %v2685
    %v2698 = vmul.bf16 %v2694, %v2682
    %v2699 = vmul.bf16 %v2695, %v2683
    %v2700 = vmul.bf16 %v2696, %v2684
    %v2701 = vmul.bf16 %v2697, %v2685
    %v2702 = vmul.bf16 %v2690, %v2690
    %v2703 = vmul.bf16 %v2691, %v2691
    %v2704 = vmul.bf16 %v2692, %v2692
    %v2705 = vmul.bf16 %v2693, %v2693
    %v2706 = vmul.bf16 %v2702, %v2690
    %v2707 = vmul.bf16 %v2703, %v2691
    %v2708 = vmul.bf16 %v2704, %v2692
    %v2709 = vmul.bf16 %v2705, %v2693
    %v2710 = vmul.bf16 %v2706, 1082146944
    %v2711 = vmul.bf16 %v2707, 1082146944
    %v2712 = vmul.bf16 %v2708, 1082146944
    %v2713 = vmul.bf16 %v2709, 1082146944
    %v2714 = vsub.bf16 %v2698, %v2710
    %v2715 = vsub.bf16 %v2699, %v2711
    %v2716 = vsub.bf16 %v2700, %v2712
    %v2717 = vsub.bf16 %v2701, %v2713
    %v2718 = vmul.bf16 %v2714, 1043021355
    %v2719 = vmul.bf16 %v2715, 1043021355
    %v2720 = vmul.bf16 %v2716, 1043021355
    %v2721 = vmul.bf16 %v2717, 1043021355
    %v2726 = vunpack.c.l.b16 %v2718
    %v2727 = vunpack.c.l.b16 %v2719
    %v2728 = vunpack.c.l.b16 %v2720
    %v2729 = vunpack.c.l.b16 %v2721
    %v2730 = vpack.c.b16 %v2727, %v2726
    %v2731 = vpack.c.b16 %v2729, %v2728
    %2734 = vst [vmem:[%s835 + $0x60] sm:$0xff] %v2730
    %2735 = vst [vmem:[%s835 + $0x68] sm:$0xff] %v2731
    %v2736 = vsub.bf16 %v2320, 1086341312
    %v2737 = vsub.bf16 %v2321, 1086341312
    %v2738 = vsub.bf16 %v2322, 1086341312
    %v2739 = vsub.bf16 %v2323, 1086341312
    %v2740 = vsub.bf16 %v2736, 1073758208
    %v2741 = vsub.bf16 %v2737, 1073758208
    %v2742 = vsub.bf16 %v2738, 1073758208
    %v2743 = vsub.bf16 %v2739, 1073758208
    %v2744 = vand.u32 2147450879, %v2740
    %v2745 = vand.u32 2147450879, %v2741
    %v2746 = vand.u32 2147450879, %v2742
    %v2747 = vand.u32 2147450879, %v2743
    %v2748 = vsub.bf16 1073758208, %v2744
    %v2749 = vsub.bf16 1073758208, %v2745
    %v2750 = vsub.bf16 1073758208, %v2746
    %v2751 = vsub.bf16 1073758208, %v2747
    %v2752 = vmax.bf16 %v2748, 0
    %v2753 = vmax.bf16 %v2749, 0
    %v2754 = vmax.bf16 %v2750, 0
    %v2755 = vmax.bf16 %v2751, 0
    %v2756 = vsub.bf16 1065369472, %v2744
    %v2757 = vsub.bf16 1065369472, %v2745
    %v2758 = vsub.bf16 1065369472, %v2746
    %v2759 = vsub.bf16 1065369472, %v2747
    %v2760 = vmax.bf16 %v2756, 0
    %v2761 = vmax.bf16 %v2757, 0
    %v2762 = vmax.bf16 %v2758, 0
    %v2763 = vmax.bf16 %v2759, 0
    %v2764 = vmul.bf16 %v2752, %v2752
    %v2765 = vmul.bf16 %v2753, %v2753
    %v2766 = vmul.bf16 %v2754, %v2754
    %v2767 = vmul.bf16 %v2755, %v2755
    %v2768 = vmul.bf16 %v2764, %v2752
    %v2769 = vmul.bf16 %v2765, %v2753
    %v2770 = vmul.bf16 %v2766, %v2754
    %v2771 = vmul.bf16 %v2767, %v2755
    %v2772 = vmul.bf16 %v2760, %v2760
    %v2773 = vmul.bf16 %v2761, %v2761
    %v2774 = vmul.bf16 %v2762, %v2762
    %v2775 = vmul.bf16 %v2763, %v2763
    %v2776 = vmul.bf16 %v2772, %v2760
    %v2777 = vmul.bf16 %v2773, %v2761
    %v2778 = vmul.bf16 %v2774, %v2762
    %v2779 = vmul.bf16 %v2775, %v2763
    %v2780 = vmul.bf16 %v2776, 1082146944
    %v2781 = vmul.bf16 %v2777, 1082146944
    %v2782 = vmul.bf16 %v2778, 1082146944
    %v2783 = vmul.bf16 %v2779, 1082146944
    %v2784 = vsub.bf16 %v2768, %v2780
    %v2785 = vsub.bf16 %v2769, %v2781
    %v2786 = vsub.bf16 %v2770, %v2782
    %v2787 = vsub.bf16 %v2771, %v2783
    %v2788 = vmul.bf16 %v2784, 1043021355
    %v2789 = vmul.bf16 %v2785, 1043021355
    %v2790 = vmul.bf16 %v2786, 1043021355
    %v2791 = vmul.bf16 %v2787, 1043021355
    %v2796 = vunpack.c.l.b16 %v2788
    %v2797 = vunpack.c.l.b16 %v2789
    %v2798 = vunpack.c.l.b16 %v2790
    %v2799 = vunpack.c.l.b16 %v2791
    %v2800 = vpack.c.b16 %v2797, %v2796
    %v2801 = vpack.c.b16 %v2799, %v2798
    %2804 = vst [vmem:[%s835 + $0x70] sm:$0xff] %v2800
    %2805 = vst [vmem:[%s835 + $0x78] sm:$0xff] %v2801
    %v2806 = vsub.bf16 %v2320, 1088438496
    %v2807 = vsub.bf16 %v2321, 1088438496
    %v2808 = vsub.bf16 %v2322, 1088438496
    %v2809 = vsub.bf16 %v2323, 1088438496
    %v2810 = vsub.bf16 %v2806, 1073758208
    %v2811 = vsub.bf16 %v2807, 1073758208
    %v2812 = vsub.bf16 %v2808, 1073758208
    %v2813 = vsub.bf16 %v2809, 1073758208
    %v2814 = vand.u32 2147450879, %v2810
    %v2815 = vand.u32 2147450879, %v2811
    %v2816 = vand.u32 2147450879, %v2812
    %v2817 = vand.u32 2147450879, %v2813
    %v2818 = vsub.bf16 1073758208, %v2814
    %v2819 = vsub.bf16 1073758208, %v2815
    %v2820 = vsub.bf16 1073758208, %v2816
    %v2821 = vsub.bf16 1073758208, %v2817
    %v2822 = vmax.bf16 %v2818, 0
    %v2823 = vmax.bf16 %v2819, 0
    %v2824 = vmax.bf16 %v2820, 0
    %v2825 = vmax.bf16 %v2821, 0
    %v2826 = vsub.bf16 1065369472, %v2814
    %v2827 = vsub.bf16 1065369472, %v2815
    %v2828 = vsub.bf16 1065369472, %v2816
    %v2829 = vsub.bf16 1065369472, %v2817
    %v2830 = vmax.bf16 %v2826, 0
    %v2831 = vmax.bf16 %v2827, 0
    %v2832 = vmax.bf16 %v2828, 0
    %v2833 = vmax.bf16 %v2829, 0
    %v2834 = vmul.bf16 %v2822, %v2822
    %v2835 = vmul.bf16 %v2823, %v2823
    %v2836 = vmul.bf16 %v2824, %v2824
    %v2837 = vmul.bf16 %v2825, %v2825
    %v2838 = vmul.bf16 %v2834, %v2822
    %v2839 = vmul.bf16 %v2835, %v2823
    %v2840 = vmul.bf16 %v2836, %v2824
    %v2841 = vmul.bf16 %v2837, %v2825
    %v2842 = vmul.bf16 %v2830, %v2830
    %v2843 = vmul.bf16 %v2831, %v2831
    %v2844 = vmul.bf16 %v2832, %v2832
    %v2845 = vmul.bf16 %v2833, %v2833
    %v2846 = vmul.bf16 %v2842, %v2830
    %v2847 = vmul.bf16 %v2843, %v2831
    %v2848 = vmul.bf16 %v2844, %v2832
    %v2849 = vmul.bf16 %v2845, %v2833
    %v2850 = vmul.bf16 %v2846, 1082146944
    %v2851 = vmul.bf16 %v2847, 1082146944
    %v2852 = vmul.bf16 %v2848, 1082146944
    %v2853 = vmul.bf16 %v2849, 1082146944
    %v2854 = vsub.bf16 %v2838, %v2850
    %v2855 = vsub.bf16 %v2839, %v2851
    %v2856 = vsub.bf16 %v2840, %v2852
    %v2857 = vsub.bf16 %v2841, %v2853
    %v2858 = vmul.bf16 %v2854, 1043021355
    %v2859 = vmul.bf16 %v2855, 1043021355
    %v2860 = vmul.bf16 %v2856, 1043021355
    %v2861 = vmul.bf16 %v2857, 1043021355
    %v2866 = vunpack.c.l.b16 %v2858
    %v2867 = vunpack.c.l.b16 %v2859
    %v2868 = vunpack.c.l.b16 %v2860
    %v2869 = vunpack.c.l.b16 %v2861
    %v2870 = vpack.c.b16 %v2867, %v2866
    %v2871 = vpack.c.b16 %v2869, %v2868
    %2874 = vst [vmem:[%s835 + $0x80] sm:$0xff] %v2870
    %2875 = vst [vmem:[%s835 + $0x88] sm:$0xff] %v2871
    %v2876 = vld [vmem:[#allocation6] sm:$0xff]
    %v2877 = vld [vmem:[#allocation6 + $0x8] sm:$0xf]
    %v2878 = vld [vmem:[#allocation6 + $0xc] sm:$0xff]
    %v2879 = vld [vmem:[#allocation6 + $0x14] sm:$0xf]
    %v2880 = vld [vmem:[%s835] sm:$0xff]
    %v2881 = vld [vmem:[%s835 + $0x8] sm:$0xff]
    %v2882 = vld [vmem:[%s835 + $0x10] sm:$0xff]
    %v2883 = vld [vmem:[%s835 + $0x18] sm:$0xff]
    %v2884 = vld [vmem:[%s835 + $0x20] sm:$0xff]
    %v2885 = vld [vmem:[%s835 + $0x28] sm:$0xff]
    %v2886 = vld [vmem:[%s835 + $0x30] sm:$0xff]
    %v2887 = vld [vmem:[%s835 + $0x38] sm:$0xff]
    %v2888 = vld [vmem:[%s835 + $0x40] sm:$0xff]
    %v2889 = vld [vmem:[%s835 + $0x48] sm:$0xff]
    %v2890 = vld [vmem:[%s835 + $0x50] sm:$0xff]
    %v2891 = vld [vmem:[%s835 + $0x58] sm:$0xff]
    %v2892 = vld [vmem:[%s835 + $0x60] sm:$0xff]
    %v2893 = vld [vmem:[%s835 + $0x68] sm:$0xff]
    %v2894 = vld [vmem:[%s835 + $0x70] sm:$0xff]
    %v2895 = vld [vmem:[%s835 + $0x78] sm:$0xff]
    %v2896 = vld [vmem:[%s835 + $0x80] sm:$0xff]
    %v2897 = vld [vmem:[%s835 + $0x88] sm:$0xff]
    %v2902 = vunpack.c.l.b16 %v2876
    %v2903 = vunpack.c.h.b16 %v2876
    %v2904 = vunpack.c.l.b16 %v2877
    %v2905 = vunpack.c.l.b16 %v2878
    %v2906 = vunpack.c.h.b16 %v2878
    %v2907 = vunpack.c.l.b16 %v2879
    %v2908 = vpack.c.b16 %v2905, %v2902
    %v2909 = vpack.c.b16 %v2906, %v2903
    %v2910 = vpack.c.b16 %v2907, %v2904
    %v2914 = vsel %vm698, %v2910, 0
    %2916 = vmatprep.subr.bf16.mxu0 0
    %2917 = vmatpush1.bf16.msra.mxu0 %v2880
    %2918 = vmatprep.subr.bf16.mxu0 0
    %2919 = vmatpush1.bf16.msra.mxu0 %v2881
    %2920 = vmatprep.subr.bf16.mxu0 0
    %2921 = vmatpush1.bf16.msra.mxu0 %v2882
    %2922 = vmatprep.subr.bf16.mxu0 0
    %2923 = vmatpush1.bf16.msra.mxu0 %v2883
    %2924 = vmatprep.subr.bf16.mxu0 0
    %2925 = vmatpush1.bf16.msra.mxu0 %v2884
    %2926 = vmatprep.subr.bf16.mxu0 0
    %2927 = vmatpush1.bf16.msra.mxu0 %v2885
    %2928 = vmatprep.subr.bf16.mxu0 0
    %2929 = vmatpush1.bf16.msra.mxu0 %v2886
    %2930 = vmatprep.subr.bf16.mxu0 0
    %2931 = vmatpush1.bf16.msra.mxu0 %v2887
    %2932 = vmatprep.subr.bf16.mxu0 0
    %2933 = vmatpush1.bf16.msra.mxu0 %v2888
    %2934 = vmatprep.subr.bf16.mxu0 0
    %2935 = vmatpush1.bf16.msra.mxu0 %v2889
    %2936 = vmatprep.subr.bf16.mxu0 0
    %2937 = vmatpush1.bf16.msra.mxu0 %v2890
    %2938 = vmatprep.subr.bf16.mxu0 0
    %2939 = vmatpush1.bf16.msra.mxu0 %v2891
    %2940 = vmatprep.subr.bf16.mxu0 0
    %2941 = vmatpush1.bf16.msra.mxu0 %v2892
    %2942 = vmatprep.subr.bf16.mxu0 0
    %2943 = vmatpush1.bf16.msra.mxu0 %v2893
    %2944 = vmatprep.subr.bf16.mxu0 0
    %2945 = vmatpush1.bf16.msra.mxu0 %v2894
    %2946 = vmatprep.subr.bf16.mxu0 0
    %2947 = vmatpush1.bf16.msra.mxu0 %v2895
    %2948 = vmatprep.mubr.bf16.mxu0 %v2909
    %2949 = vmatmul.mubr.bf16.gmra.mrb[0].mxu0 %v2908
    %v2950 = vpop.f32.mrb[0].mxu0
    %v2951 = vadd.f32 0.0, %v2950
    %v2952 = vpop.f32.mrb[0].mxu0
    %v2953 = vpop.f32.mrb[0].mxu0
    %v2954 = vadd.f32 0.0, %v2953
    %v2955 = vpop.f32.mrb[0].mxu0
    %2956 = vdwg.mxu0
    %2957 = vmatprep.subr.bf16.mxu0 0
    %2958 = vmatpush1.bf16.msra.mxu0 %v2896
    %2959 = vmatprep.subr.bf16.mxu0 0
    %2960 = vmatpush1.bf16.msra.mxu0 %v2897
    %2961 = vmatprep.subr.bf16.mxu0 0
    %2962 = vmatpush1.bf16.msra.mxu0 0
    %2963 = vmatprep.subr.bf16.mxu0 0
    %2964 = vmatpush1.bf16.msra.mxu0 0
    %2965 = vmatprep.subr.bf16.mxu0 0
    %2966 = vmatpush1.bf16.msra.mxu0 0
    %2967 = vmatprep.subr.bf16.mxu0 0
    %2968 = vmatpush1.bf16.msra.mxu0 0
    %2969 = vmatprep.subr.bf16.mxu0 0
    %2970 = vmatpush1.bf16.msra.mxu0 0
    %2971 = vmatprep.subr.bf16.mxu0 0
    %2972 = vmatpush1.bf16.msra.mxu0 0
    %2973 = vmatprep.subr.bf16.mxu0 0
    %2974 = vmatpush1.bf16.msra.mxu0 0
    %2975 = vmatprep.subr.bf16.mxu0 0
    %2976 = vmatpush1.bf16.msra.mxu0 0
    %2977 = vmatprep.subr.bf16.mxu0 0
    %2978 = vmatpush1.bf16.msra.mxu0 0
    %2979 = vmatprep.subr.bf16.mxu0 0
    %2980 = vmatpush1.bf16.msra.mxu0 0
    %2981 = vmatprep.subr.bf16.mxu0 0
    %2982 = vmatpush1.bf16.msra.mxu0 0
    %2983 = vmatprep.subr.bf16.mxu0 0
    %2984 = vmatpush1.bf16.msra.mxu0 0
    %2985 = vmatprep.subr.bf16.mxu0 0
    %2986 = vmatpush1.bf16.msra.mxu0 0
    %2987 = vmatprep.subr.bf16.mxu0 0
    %2988 = vmatpush1.bf16.msra.mxu0 0
    %2989 = vmatprep.mubr.bf16.mxu0 0
    %2990 = vmatmul.mubr.bf16.gmra.mrb[0].mxu0 %v2914
    %v2991 = vpop.f32.mrb[0].mxu0
    %v2992 = vadd.f32 %v2951, %v2991
    %v2993 = vpop.f32.mrb[0].mxu0
    %v2994 = vpop.f32.mrb[0].mxu0
    %v2995 = vadd.f32 %v2954, %v2994
    %v2996 = vpop.f32.mrb[0].mxu0
    %2997 = vdwg.mxu0
    %v2998 = vld [vmem:[#allocation8] sm:$0xff]
    %v2999 = vld [vmem:[#allocation8 + $0x8] sm:$0xff]
    %v3000 = vmax.f32 %v2998, %v2992
    %v3001 = vmax.f32 %v2999, %v2995
    %3002 = vst [vmem:[#allocation8] sm:$0xff] %v3000
    %3003 = vst [vmem:[#allocation8 + $0x8] sm:$0xff] %v3001
    // Predicated region
    $region18: #{tpu_custom_call.1} parent=1 // pred_check
      _
    $region19: #{tpu_custom_call.1} parent=1 // pred_check_branch
      %3005 = sbr.rel (0) target = $region21
    $region20: #{tpu_custom_call.1} parent=1 // pred_region
      %s3007 = ssub.s32 256, 256
      %3008 = vsyncadd [#allocation5], %s3007
      %s3009 = sshll.u32 [#allocation8], 4
      %s3010 = int_to_ptr.vmem [resolvable:$true] %s3009
      %3015 = dma.vmem_to_hbm [thread:$0]  %s3010, 256, %s2, [#allocation5], 128, 128, 8
    $region21: #{tpu_custom_call.1} parent=1 // pred_fallthru
      _
    // Predicated region
    $region22: #{tpu_custom_call.1} parent=1 // pred_check
      _
    $region23: #{tpu_custom_call.1} parent=1 // pred_check_branch
      %3017 = sbr.rel (0) target = $region25
    $region24: #{tpu_custom_call.1} parent=1 // pred_region
      %3018 = dma.done [#allocation5], 256
    $region25: #{tpu_custom_call.1} parent=1 // pred_fallthru
      _
    %3019 = vsyncpa [#allocation4], 1
    %3020 = vsyncpa [#allocation7], 1
    %3021 = vsyncpa [#allocation5], 1

</llo_original>
